<compile_context>
chip_gen: v7x
topology: tpu7x:2x2x1
jax: 0.10.0
libtpu: 0.0.40
codegen_flags: <defaults>
</compile_context>

<pallas_src>
import functools
import math

import jax
import jax.numpy as jnp
from jax.experimental import pallas as pl
from jax.experimental.pallas import tpu as pltpu


# --------------------------- Pallas kernels ---------------------------------
def _make_linear_kernel(relu):
    def kernel(x_ref, w_ref, b_ref, o_ref):
        y = jnp.dot(x_ref[...], w_ref[...], preferred_element_type=jnp.float32)
        y = y + b_ref[...]
        if relu:
            y = jnp.maximum(y, 0.0)
        o_ref[...] = y
    return kernel


def linear(x2d, w, b=None, relu=False, block_rows=512):
    """Row-tiled Pallas matmul (+bias, +optional ReLU).

    Only used for the qkv projection now: geo_proj is plain jnp and the output
    projection is fused into the attention kernel epilogue.
    """
    M, K = x2d.shape
    Kw, Nout = w.shape
    assert K == Kw
    if b is None:
        b = jnp.zeros((Nout,), jnp.float32)
    TM = min(block_rows, M)
    # TODO(synk): give the constant-index w/b specs pipeline_mode=pl.Buffered(1)
    # on VMEM-tight parts (v7x) once single-buffered revisited blocks are
    # verified on the target jax version.
    return pl.pallas_call(
        _make_linear_kernel(relu),
        out_shape=jax.ShapeDtypeStruct((M, Nout), jnp.float32),
        grid=(pl.cdiv(M, TM),),
        in_specs=[
            pl.BlockSpec((TM, K), lambda i: (i, 0)),
            pl.BlockSpec((K, Nout), lambda i: (0, 0)),
            pl.BlockSpec((1, Nout), lambda i: (0, 0)),
        ],
        out_specs=pl.BlockSpec((TM, Nout), lambda i: (i, 0)),
        compiler_params=pltpu.CompilerParams(
            dimension_semantics=("parallel",),
            vmem_limit_bytes=32 * 1024 * 1024),
    )(x2d, w, b.reshape(1, Nout))


def _make_attn_kernel(q_pe_scale):
    def kernel(q_ref, kv_ref, idx_ref, side_ref, wp_ref, bp_ref, sel_ref,
               expand_ref, wproj_ref, bproj_ref, o_ref):
        q = q_ref[0]              # [TN, D]   f32, already scaled by dim**-0.5
        kv = kv_ref[0]            # [N, 2D]   bf16, keys|values fused on lanes
        idx = idx_ref[0]          # [TN, K]   int32 kNN indices
        side = side_ref[0]        # [TN, 4K+H] packed rel_x|rel_y|rel_z|nsim|gw

        TN, D = q.shape
        Nf = kv.shape[0]
        K = idx.shape[1]
        H = sel_ref.shape[1]

        rel_x = side[:, 0 * K:1 * K]           # [TN, K]
        rel_y = side[:, 1 * K:2 * K]
        rel_z = side[:, 2 * K:3 * K]
        nsim = side[:, 3 * K:4 * K]            # [TN, K]
        gw = side[:, 4 * K:4 * K + H]          # [TN, H]  (already * 0.3)

        # In-kernel neighbourhood gather of packed k|v as ONE bf16 MXU matmul:
        # [TN*K, N] @ [N, 2D] -> [TN*K, 2D] (f32 accumulation).
        # TODO(synk): at large N replace with a per-row DMA gather
        # (scalar-prefetched idx + pl.ANY kv ref) so the full [N,2D] block
        # need not be VMEM-resident (matters most on v7x's 64 MiB VMEM).
        oh = (jax.lax.broadcasted_iota(jnp.int32, (TN, K, Nf), 2)
              == idx[:, :, None]).astype(jnp.bfloat16).reshape(TN * K, Nf)
        kv_g = jnp.dot(oh, kv, preferred_element_type=jnp.float32
                       ).reshape(TN, K, 2 * D)
        k_g = kv_g[:, :, :D]                   # [TN, K, D]
        v_g = kv_g[:, :, D:]                   # [TN, K, D]

        # Positional MLP on the VPU: relu(rel_x*W0 + rel_y*W1 + rel_z*W2 + b),
        # head-tiled weights -> lane-dense [TN, K, D] (broadcast across heads).
        wp = wp_ref[...]                       # [3, D]
        pe = (rel_x[:, :, None] * wp[0:1, :][:, None, :]
              + rel_y[:, :, None] * wp[1:2, :][:, None, :]
              + rel_z[:, :, None] * wp[2:3, :][:, None, :]
              + bp_ref[...][:, None, :])
        pe = jnp.maximum(pe, 0.0)              # [TN, K, D]

        # Scores: q already carries the softmax scale (folded into w_qkv);
        # the pos term needs q * (0.5/scale) -> one [TN, D] VPU multiply.
        q_pe = q * q_pe_scale
        src = q[:, None, :] * k_g + q_pe[:, None, :] * pe        # [TN, K, D]
        # Per-head reduction over dh via a 0/1 selector matmul -> [TN, K, H].
        dots = jnp.dot(src.reshape(TN * K, D), sel_ref[...],
                       preferred_element_type=jnp.float32).reshape(TN, K, H)
        dots = dots + nsim[:, :, None] * gw[:, None, :]           # geo bias

        # Softmax over the K neighbours (sublane axis); EUP reciprocal.
        m = jnp.max(dots, axis=1, keepdims=True)
        p = jnp.exp(dots - m)
        inv = pl.reciprocal(jnp.sum(p, axis=1, keepdims=True), approx=True)
        attn = p * inv
        # attn_drop: identity at inference.

        # Expand per-head attn over the lane-dense channel dim, reduce over K.
        attn_full = jnp.dot(attn.reshape(TN * K, H), expand_ref[...],
                            preferred_element_type=jnp.float32
                            ).reshape(TN, K, D)
        ctx = jnp.sum(attn_full * (v_g + pe), axis=1)             # [TN, D]

        # Fused output projection (row-independent, so any garbage in padded
        # tail rows of the last N tile stays in those rows and is discarded).
        o_ref[0] = (jnp.dot(ctx, wproj_ref[...],
                            preferred_element_type=jnp.float32)
                    + bproj_ref[...])
    return kernel


def geo_attention_core(q, kv, idx, side, wp, bp, sel, expand, wproj, bproj,
                       q_pe_scale, tile_n=256):
    B, N, D = q.shape
    K = idx.shape[-1]
    C = side.shape[-1]
    H = sel.shape[-1]
    TN = min(tile_n, N)
    grid = (B, pl.cdiv(N, TN))
    # TODO(synk): re-derive TN / switch to a DMA gather for v7x's 64 MiB VMEM
    # at large N*D; on 128 MiB v5e/v6e parts tile_n and vmem_limit_bytes can
    # be raised further (512-1024 wide tiles, 64-96 MiB).
    return pl.pallas_call(
        _make_attn_kernel(q_pe_scale),
        out_shape=jax.ShapeDtypeStruct((B, N, D), jnp.float32),
        grid_spec=pltpu.PrefetchScalarGridSpec(
            num_scalar_prefetch=0,
            grid=grid,
            in_specs=[
                pl.BlockSpec((1, TN, D), lambda b, t: (b, t, 0)),       # q
                pl.BlockSpec((1, N, 2 * D), lambda b, t: (b, 0, 0)),    # kv bf16
                pl.BlockSpec((1, TN, K), lambda b, t: (b, t, 0)),       # knn idx
                pl.BlockSpec((1, TN, C), lambda b, t: (b, t, 0)),       # packed side
                pl.BlockSpec((3, D), lambda b, t: (0, 0)),              # pos W (tiled)
                pl.BlockSpec((1, D), lambda b, t: (0, 0)),              # pos b (tiled)
                pl.BlockSpec((D, H), lambda b, t: (0, 0)),              # head-sum sel
                pl.BlockSpec((H, D), lambda b, t: (0, 0)),              # head-expand
                pl.BlockSpec((D, D), lambda b, t: (0, 0)),              # w_proj
                pl.BlockSpec((1, D), lambda b, t: (0, 0)),              # b_proj
            ],
            out_specs=pl.BlockSpec((1, TN, D), lambda b, t: (b, t, 0)),
        ),
        compiler_params=pltpu.CompilerParams(
            # No reduction axis (each output tile depends only on (b, t)), so
            # both axes are parallel -> v7x megacore can split the N axis.
            dimension_semantics=("parallel", "parallel"),
            # 48 MiB fits every generation's physical VMEM.
            vmem_limit_bytes=48 * 1024 * 1024),
    )(q, kv, idx, side, wp, bp, sel, expand, wproj, bproj)


# ------------------------------ Forward -------------------------------------
def init_params(key, dim, heads):
    dh = dim // heads
    ks = jax.random.split(key, 7)

    def u(k, shape, fan_in):
        bound = 1.0 / math.sqrt(fan_in)
        return jax.random.uniform(k, shape, jnp.float32, -bound, bound)

    return dict(
        w_qkv=u(ks[0], (dim, 3 * dim), dim),     # to_qkv (no bias)
        w_geo=u(ks[1], (4, heads), 4),           # geo_proj
        b_geo=u(ks[2], (heads,), 4),
        w_pos=u(ks[3], (3, dh), 3),              # pos_enc Linear
        b_pos=u(ks[4], (dh,), 3),
        w_proj=u(ks[5], (dim, dim), dim),        # output proj
        b_proj=u(ks[6], (dim,), dim),
    )


def geometric_attention(params, x, points, geo, heads, k_nn):
    B, N, D = x.shape
    H, dh = heads, D // heads
    scale = float(D) ** -0.5

    # Fold the softmax scale into the q columns of to_qkv (weight-side, free).
    w_qkv = jnp.concatenate(
        [params['w_qkv'][:, :D] * scale, params['w_qkv'][:, D:]], axis=-1)

    # qkv projection (row-tiled Pallas matmul); heads stay fused on channels.
    qkv = linear(x.reshape(B * N, D), w_qkv).reshape(B, N, 3 * D)
    q = qkv[..., :D]                                   # [B,N,D] f32, pre-scaled
    kv = qkv[..., D:].astype(jnp.bfloat16)             # [B,N,2D] packed k|v bf16

    # k-NN via squared distances (monotone in distance -> same kNN set as
    # torch.cdist + topk(largest=False)); default matmul precision since it
    # only feeds a top-k; no [B,N,N,3] intermediate, no sqrt.
    sq = jnp.sum(points * points, axis=-1)
    gram = jnp.einsum('bnc,bmc->bnm', points, points)
    d2 = sq[:, :, None] + sq[:, None, :] - 2.0 * gram
    _, knn_idx = jax.lax.top_k(-d2, k_nn)                          # [B,N,K]
    knn_idx = knn_idx.astype(jnp.int32)

    # geo_proj is [*,4]@[4,H]: MXU-hostile and tiny -> plain jnp (XLA fuses it).
    # The 0.3 geo-bias factor is folded into the weights (trace-time, free).
    gw = geo @ (0.3 * params['w_geo']) + 0.3 * params['b_geo']     # [B,N,H]

    # Relative positions & normal cosine similarity (small glue gathers).
    knn_pts = jax.vmap(lambda p, i: p[i])(points, knn_idx)         # [B,N,K,3]
    rel = points[:, :, None, :] - knn_pts
    knn_geo = jax.vmap(lambda g, i: g[i])(geo, knn_idx)            # [B,N,K,4]
    n1, n2 = geo[..., :3], knn_geo[..., :3]
    nsim = jnp.sum(n1[:, :, None, :] * n2, axis=-1) / jnp.maximum(
        jnp.linalg.norm(n1, axis=-1)[:, :, None]
        * jnp.linalg.norm(n2, axis=-1), 1e-8)                      # [B,N,K]

    # Pack all small per-(b,n) side inputs into ONE lane-dense tensor
    # [rel_x(K) | rel_y(K) | rel_z(K) | nsim(K) | 0.3*geo_w(H)].
    side = jnp.concatenate(
        [rel[..., 0], rel[..., 1], rel[..., 2], nsim, gw],
        axis=-1).astype(jnp.float32)                               # [B,N,4K+H]

    # Head-tiled pos-MLP params + 0/1 head selector matrices (built once).
    # TODO(synk): reference head-split rearrange of pos_enc is inconsistent;
    # pos_enc is broadcast across heads here (only runnable interpretation).
    wp = jnp.tile(params['w_pos'], (1, H))                         # [3, D]
    bp = jnp.tile(params['b_pos'], H)[None, :]                     # [1, D]
    sel = jnp.kron(jnp.eye(H, dtype=jnp.float32),
                   jnp.ones((dh, 1), jnp.float32))                 # [D, H]
    expand = sel.T                                                 # [H, D]

    # Fused attention core: in-kernel gather + pos-MLP + scores + softmax +
    # weighted sum + output projection, lane-dense [B,N,D] output.
    out = geo_attention_core(q, kv, knn_idx, side, wp, bp, sel, expand,
                             params['w_proj'], params['b_proj'][None, :],
                             q_pe_scale=0.5 / scale)
    return out


# --------------------------- pure-JAX reference ------------------------------
def reference(params, x, points, geo, heads, k_nn):
    B, N, D = x.shape
    H, dh = heads, D // heads
    scale = float(D) ** -0.5
    qkv = (x.reshape(B * N, D) @ params['w_qkv']).reshape(B, N, 3 * D)
    q, k, v = jnp.split(qkv, 3, axis=-1)
    q, k, v = [t.reshape(B, N, H, dh).transpose(0, 2, 1, 3) for t in (q, k, v)]
    sq = jnp.sum(points * points, axis=-1)
    gram = jnp.einsum('bnc,bmc->bnm', points, points)
    d2 = sq[:, :, None] + sq[:, None, :] - 2.0 * gram
    _, knn_idx = jax.lax.top_k(-d2, k_nn)
    geo_w = geo.reshape(B * N, 4) @ params['w_geo'] + params['b_geo']
    geo_w = geo_w.reshape(B, N, H).transpose(0, 2, 1)[..., None]
    knn_pts = jax.vmap(lambda p, idx: p[idx])(points, knn_idx)
    rel_pos = points[:, :, None, :] - knn_pts
    pos_enc = jnp.maximum(rel_pos @ params['w_pos'] + params['b_pos'], 0.0)
    k_g = jax.vmap(lambda t, idx: t[:, idx, :])(k, knn_idx)
    v_g = jax.vmap(lambda t, idx: t[:, idx, :])(v, knn_idx)
    knn_geo = jax.vmap(lambda g, idx: g[idx])(geo, knn_idx)
    n1, n2 = geo[..., :3], knn_geo[..., :3]
    nsim = jnp.sum(n1[:, :, None, :] * n2, -1) / jnp.maximum(
        jnp.linalg.norm(n1, axis=-1)[:, :, None] * jnp.linalg.norm(n2, axis=-1),
        1e-8)
    dots = jnp.einsum('bhid,bhijd->bhij', q, k_g) * scale
    dots = dots + jnp.einsum('bhid,bijd->bhij', q, pos_enc) * 0.5
    dots = dots + 0.3 * nsim[:, None] * geo_w
    attn = jax.nn.softmax(dots, axis=-1)
    out = jnp.einsum('bhij,bhijd->bhid', attn, v_g + pos_enc[:, None])
    out = out.transpose(0, 2, 1, 3).reshape(B * N, D) @ params['w_proj'] \
        + params['b_proj']
    return out.reshape(B, N, D)


if __name__ == "__main__":
    B, N, D, H, K = 2, 16, 64, 8, 8   # dh = 8, K nearest neighbours
    key = jax.random.PRNGKey(0)
    kp, kx, kpt, kg = jax.random.split(key, 4)
    params = init_params(kp, D, H)
    x = jax.random.normal(kx, (B, N, D), jnp.float32)
    points = jax.random.normal(kpt, (B, N, 3), jnp.float32)
    geo = jax.random.normal(kg, (B, N, 4), jnp.float32)

    fwd = jax.jit(functools.partial(geometric_attention, heads=H, k_nn=K))
    out = fwd(params, x, points, geo)
    jax.block_until_ready(out)

    ref = reference(params, x, points, geo, H, K)
    assert out.shape == (B, N, D)
    max_err = float(jnp.max(jnp.abs(out - ref)))
    assert jnp.allclose(out, ref, atol=2e-2, rtol=2e-2), max_err
    print("KERNEL_OK")
</pallas_src>

<mosaic_0001>
module attributes {stable_mosaic.version = 11 : i64} {
  func.func @kernel(%arg0: i32, %arg1: memref<32x64xf32, #tpu.memory_space<vmem>>, %arg2: memref<64x192xf32, #tpu.memory_space<vmem>>, %arg3: memref<1x192xf32, #tpu.memory_space<vmem>>, %arg4: memref<32x192xf32, #tpu.memory_space<vmem>>) attributes {dimension_semantics = [#tpu.dimension_semantics<parallel>], iteration_bounds = array<i64: 1>, scalar_prefetch = 0 : i64, scratch_operands = 0 : i64, tpu.core_type = #tpu.core_type<tc>, window_params = [{transform_indices = @transform_0, window_bounds = array<i64: 32, 64>}, {pipeline_mode = #tpu.pipeline_mode<synchronous>, transform_indices = @transform_1, window_bounds = array<i64: 64, 192>}, {pipeline_mode = #tpu.pipeline_mode<synchronous>, transform_indices = @transform_2, window_bounds = array<i64: 1, 192>}, {transform_indices = @transform_3, window_bounds = array<i64: 32, 192>}]} {
    %c0 = arith.constant 0 : index
    %c0_0 = arith.constant 0 : index
    %0 = vector.load %arg1[%c0, %c0_0] : memref<32x64xf32, #tpu.memory_space<vmem>>, vector<32x64xf32>
    %c0_1 = arith.constant 0 : index
    %c0_2 = arith.constant 0 : index
    %1 = vector.load %arg2[%c0_1, %c0_2] : memref<64x192xf32, #tpu.memory_space<vmem>>, vector<64x192xf32>
    %cst = arith.constant dense<0.000000e+00> : vector<32x192xf32>
    %2 = tpu.matmul %0, %1, %cst {dimension_numbers = #tpu.dot_dimension_numbers<[1], [0], [0], [1], [0, 0, 1, 1], [], []>} : vector<32x64xf32>, vector<64x192xf32>, vector<32x192xf32> -> vector<32x192xf32>
    %c0_3 = arith.constant 0 : index
    %c0_4 = arith.constant 0 : index
    %3 = vector.load %arg3[%c0_3, %c0_4] : memref<1x192xf32, #tpu.memory_space<vmem>>, vector<1x192xf32>
    %4 = vector.broadcast %3 : vector<1x192xf32> to vector<32x192xf32>
    %5 = arith.addf %2, %4 : vector<32x192xf32>
    %c0_5 = arith.constant 0 : index
    %c0_6 = arith.constant 0 : index
    %6 = vector.load %arg4[%c0_5, %c0_6] : memref<32x192xf32, #tpu.memory_space<vmem>>, vector<32x192xf32>
    tpu.vector_store %arg4[%c0_5, %c0_6], %5 {strides = array<i32>} : memref<32x192xf32, #tpu.memory_space<vmem>>, vector<32x192xf32>,
    return
  }
  func.func @transform_0(%arg0: i32) -> (i32, i32) {
    %c0_i32 = arith.constant 0 : i32
    %c0_i32_0 = arith.constant 0 : i32
    return %arg0, %c0_i32 : i32, i32
  }
  func.func @transform_1(%arg0: i32) -> (i32, i32) {
    %c0_i32 = arith.constant 0 : i32
    %c0_i32_0 = arith.constant 0 : i32
    %c0_i32_1 = arith.constant 0 : i32
    return %c0_i32, %c0_i32_0 : i32, i32
  }
  func.func @transform_2(%arg0: i32) -> (i32, i32) {
    %c0_i32 = arith.constant 0 : i32
    %c0_i32_0 = arith.constant 0 : i32
    %c0_i32_1 = arith.constant 0 : i32
    return %c0_i32, %c0_i32_0 : i32, i32
  }
  func.func @transform_3(%arg0: i32) -> (i32, i32) {
    %c0_i32 = arith.constant 0 : i32
    %c0_i32_0 = arith.constant 0 : i32
    return %arg0, %c0_i32 : i32, i32
  }
}

module attributes {stable_mosaic.version = 11 : i64} {
  func.func @kernel(%arg0: i32, %arg1: i32, %arg2: memref<1x16x64xf32, #tpu.memory_space<vmem>>, %arg3: memref<1x16x128xbf16, #tpu.memory_space<vmem>>, %arg4: memref<1x16x8xi32, #tpu.memory_space<vmem>>, %arg5: memref<1x16x40xf32, #tpu.memory_space<vmem>>, %arg6: memref<3x64xf32, #tpu.memory_space<vmem>>, %arg7: memref<1x64xf32, #tpu.memory_space<vmem>>, %arg8: memref<64x8xf32, #tpu.memory_space<vmem>>, %arg9: memref<8x64xf32, #tpu.memory_space<vmem>>, %arg10: memref<64x64xf32, #tpu.memory_space<vmem>>, %arg11: memref<1x64xf32, #tpu.memory_space<vmem>>, %arg12: memref<1x16x64xf32, #tpu.memory_space<vmem>>) attributes {dimension_semantics = [#tpu.dimension_semantics<parallel>, #tpu.dimension_semantics<parallel>], iteration_bounds = array<i64: 2, 1>, scalar_prefetch = 0 : i64, scratch_operands = 0 : i64, tpu.core_type = #tpu.core_type<tc>, window_params = [{transform_indices = @transform_0, window_bounds = array<i64: 1, 16, 64>}, {transform_indices = @transform_1, window_bounds = array<i64: 1, 16, 128>}, {transform_indices = @transform_2, window_bounds = array<i64: 1, 16, 8>}, {transform_indices = @transform_3, window_bounds = array<i64: 1, 16, 40>}, {pipeline_mode = #tpu.pipeline_mode<synchronous>, transform_indices = @transform_4, window_bounds = array<i64: 3, 64>}, {pipeline_mode = #tpu.pipeline_mode<synchronous>, transform_indices = @transform_5, window_bounds = array<i64: 1, 64>}, {pipeline_mode = #tpu.pipeline_mode<synchronous>, transform_indices = @transform_6, window_bounds = array<i64: 64, 8>}, {pipeline_mode = #tpu.pipeline_mode<synchronous>, transform_indices = @transform_7, window_bounds = array<i64: 8, 64>}, {pipeline_mode = #tpu.pipeline_mode<synchronous>, transform_indices = @transform_8, window_bounds = array<i64: 64, 64>}, {pipeline_mode = #tpu.pipeline_mode<synchronous>, transform_indices = @transform_9, window_bounds = array<i64: 1, 64>}, {transform_indices = @transform_10, window_bounds = array<i64: 1, 16, 64>}]} {
    %c0 = arith.constant 0 : index
    %c0_0 = arith.constant 0 : index
    %c0_1 = arith.constant 0 : index
    %0 = vector.load %arg2[%c0, %c0_0, %c0_1] : memref<1x16x64xf32, #tpu.memory_space<vmem>>, vector<1x16x64xf32>
    %1 = vector.shape_cast %0 : vector<1x16x64xf32> to vector<16x64xf32>
    %c0_2 = arith.constant 0 : index
    %c0_3 = arith.constant 0 : index
    %c0_4 = arith.constant 0 : index
    %2 = vector.load %arg3[%c0_2, %c0_3, %c0_4] : memref<1x16x128xbf16, #tpu.memory_space<vmem>>, vector<1x16x128xbf16>
    %3 = vector.shape_cast %2 : vector<1x16x128xbf16> to vector<16x128xbf16>
    %c0_5 = arith.constant 0 : index
    %c0_6 = arith.constant 0 : index
    %c0_7 = arith.constant 0 : index
    %4 = vector.load %arg4[%c0_5, %c0_6, %c0_7] : memref<1x16x8xi32, #tpu.memory_space<vmem>>, vector<1x16x8xi32>
    %5 = vector.shape_cast %4 : vector<1x16x8xi32> to vector<16x8xi32>
    %c0_8 = arith.constant 0 : index
    %c0_9 = arith.constant 0 : index
    %c0_10 = arith.constant 0 : index
    %6 = vector.load %arg5[%c0_8, %c0_9, %c0_10] : memref<1x16x40xf32, #tpu.memory_space<vmem>>, vector<1x16x40xf32>
    %7 = vector.shape_cast %6 : vector<1x16x40xf32> to vector<16x40xf32>
    %8 = vector.extract_strided_slice %7 {offsets = [0, 0], sizes = [16, 8], strides = [1, 1]} : vector<16x40xf32> to vector<16x8xf32>
    %9 = vector.extract_strided_slice %7 {offsets = [0, 8], sizes = [16, 8], strides = [1, 1]} : vector<16x40xf32> to vector<16x8xf32>
    %10 = vector.extract_strided_slice %7 {offsets = [0, 16], sizes = [16, 8], strides = [1, 1]} : vector<16x40xf32> to vector<16x8xf32>
    %11 = vector.extract_strided_slice %7 {offsets = [0, 24], sizes = [16, 8], strides = [1, 1]} : vector<16x40xf32> to vector<16x8xf32>
    %12 = vector.extract_strided_slice %7 {offsets = [0, 32], sizes = [16, 8], strides = [1, 1]} : vector<16x40xf32> to vector<16x8xf32>
    %13 = tpu.iota {dimensions = array<i32: 2>} : vector<16x8x16xi32>
    %14 = vector.shape_cast %5 : vector<16x8xi32> to vector<16x8x1xi32>
    %15 = vector.broadcast %14 : vector<16x8x1xi32> to vector<16x8x16xi32>
    %16 = arith.cmpi eq, %13, %15 : vector<16x8x16xi32>
    %17 = arith.extui %16 : vector<16x8x16xi1> to vector<16x8x16xi32>
    %18 = arith.sitofp %17 : vector<16x8x16xi32> to vector<16x8x16xf32>
    %19 = arith.truncf %18 : vector<16x8x16xf32> to vector<16x8x16xbf16>
    %20 = vector.shape_cast %19 : vector<16x8x16xbf16> to vector<128x16xbf16>
    %cst = arith.constant dense<0.000000e+00> : vector<128x128xf32>
    %21 = tpu.matmul %20, %3, %cst {dimension_numbers = #tpu.dot_dimension_numbers<[1], [0], [0], [1], [0, 0, 1, 1], [], []>} : vector<128x16xbf16>, vector<16x128xbf16>, vector<128x128xf32> -> vector<128x128xf32>
    %22 = vector.shape_cast %21 : vector<128x128xf32> to vector<16x8x128xf32>
    %23 = vector.extract_strided_slice %22 {offsets = [0, 0, 0], sizes = [16, 8, 64], strides = [1, 1, 1]} : vector<16x8x128xf32> to vector<16x8x64xf32>
    %24 = vector.extract_strided_slice %22 {offsets = [0, 0, 64], sizes = [16, 8, 64], strides = [1, 1, 1]} : vector<16x8x128xf32> to vector<16x8x64xf32>
    %c0_11 = arith.constant 0 : index
    %c0_12 = arith.constant 0 : index
    %25 = vector.load %arg6[%c0_11, %c0_12] : memref<3x64xf32, #tpu.memory_space<vmem>>, vector<3x64xf32>
    %26 = vector.shape_cast %8 : vector<16x8xf32> to vector<16x8x1xf32>
    %27 = vector.extract_strided_slice %25 {offsets = [0, 0], sizes = [1, 64], strides = [1, 1]} : vector<3x64xf32> to vector<1x64xf32>
    %28 = vector.shape_cast %27 : vector<1x64xf32> to vector<1x1x64xf32>
    %29 = vector.broadcast %26 : vector<16x8x1xf32> to vector<16x8x64xf32>
    %30 = vector.broadcast %28 : vector<1x1x64xf32> to vector<16x8x64xf32>
    %31 = arith.mulf %29, %30 : vector<16x8x64xf32>
    %32 = vector.shape_cast %9 : vector<16x8xf32> to vector<16x8x1xf32>
    %33 = vector.extract_strided_slice %25 {offsets = [1, 0], sizes = [1, 64], strides = [1, 1]} : vector<3x64xf32> to vector<1x64xf32>
    %34 = vector.shape_cast %33 : vector<1x64xf32> to vector<1x1x64xf32>
    %35 = vector.broadcast %32 : vector<16x8x1xf32> to vector<16x8x64xf32>
    %36 = vector.broadcast %34 : vector<1x1x64xf32> to vector<16x8x64xf32>
    %37 = arith.mulf %35, %36 : vector<16x8x64xf32>
    %38 = arith.addf %31, %37 : vector<16x8x64xf32>
    %39 = vector.shape_cast %10 : vector<16x8xf32> to vector<16x8x1xf32>
    %40 = vector.extract_strided_slice %25 {offsets = [2, 0], sizes = [1, 64], strides = [1, 1]} : vector<3x64xf32> to vector<1x64xf32>
    %41 = vector.shape_cast %40 : vector<1x64xf32> to vector<1x1x64xf32>
    %42 = vector.broadcast %39 : vector<16x8x1xf32> to vector<16x8x64xf32>
    %43 = vector.broadcast %41 : vector<1x1x64xf32> to vector<16x8x64xf32>
    %44 = arith.mulf %42, %43 : vector<16x8x64xf32>
    %45 = arith.addf %38, %44 : vector<16x8x64xf32>
    %c0_13 = arith.constant 0 : index
    %c0_14 = arith.constant 0 : index
    %46 = vector.load %arg7[%c0_13, %c0_14] : memref<1x64xf32, #tpu.memory_space<vmem>>, vector<1x64xf32>
    %47 = vector.shape_cast %46 : vector<1x64xf32> to vector<1x1x64xf32>
    %48 = vector.broadcast %47 : vector<1x1x64xf32> to vector<16x8x64xf32>
    %49 = arith.addf %45, %48 : vector<16x8x64xf32>
    %cst_15 = arith.constant 0.000000e+00 : f32
    %50 = vector.broadcast %cst_15 : f32 to vector<16x8x64xf32>
    %51 = arith.maximumf %49, %50 : vector<16x8x64xf32>
    %cst_16 = arith.constant 4.000000e+00 : f32
    %52 = vector.broadcast %cst_16 : f32 to vector<16x64xf32>
    %53 = arith.mulf %1, %52 : vector<16x64xf32>
    %54 = vector.shape_cast %1 : vector<16x64xf32> to vector<16x1x64xf32>
    %55 = vector.broadcast %54 : vector<16x1x64xf32> to vector<16x8x64xf32>
    %56 = arith.mulf %55, %23 : vector<16x8x64xf32>
    %57 = vector.shape_cast %53 : vector<16x64xf32> to vector<16x1x64xf32>
    %58 = vector.broadcast %57 : vector<16x1x64xf32> to vector<16x8x64xf32>
    %59 = arith.mulf %58, %51 : vector<16x8x64xf32>
    %60 = arith.addf %56, %59 : vector<16x8x64xf32>
    %61 = vector.shape_cast %60 : vector<16x8x64xf32> to vector<128x64xf32>
    %c0_17 = arith.constant 0 : index
    %c0_18 = arith.constant 0 : index
    %62 = vector.load %arg8[%c0_17, %c0_18] : memref<64x8xf32, #tpu.memory_space<vmem>>, vector<64x8xf32>
    %cst_19 = arith.constant dense<0.000000e+00> : vector<128x8xf32>
    %63 = tpu.matmul %61, %62, %cst_19 {dimension_numbers = #tpu.dot_dimension_numbers<[1], [0], [0], [1], [0, 0, 1, 1], [], []>} : vector<128x64xf32>, vector<64x8xf32>, vector<128x8xf32> -> vector<128x8xf32>
    %64 = vector.shape_cast %63 : vector<128x8xf32> to vector<16x8x8xf32>
    %65 = vector.shape_cast %11 : vector<16x8xf32> to vector<16x8x1xf32>
    %66 = vector.shape_cast %12 : vector<16x8xf32> to vector<16x1x8xf32>
    %67 = vector.broadcast %65 : vector<16x8x1xf32> to vector<16x8x8xf32>
    %68 = vector.broadcast %66 : vector<16x1x8xf32> to vector<16x8x8xf32>
    %69 = arith.mulf %67, %68 : vector<16x8x8xf32>
    %70 = arith.addf %64, %69 : vector<16x8x8xf32>
    %cst_20 = arith.constant dense<0xFF800000> : vector<16x8xf32>
    %71 = vector.multi_reduction <maximumf>, %70, %cst_20 [1] : vector<16x8x8xf32> to vector<16x8xf32>
    %72 = vector.shape_cast %71 : vector<16x8xf32> to vector<16x1x8xf32>
    %73 = vector.broadcast %72 : vector<16x1x8xf32> to vector<16x8x8xf32>
    %74 = arith.subf %70, %73 : vector<16x8x8xf32>
    %75 = math.exp %74 : vector<16x8x8xf32>
    %cst_21 = arith.constant dense<0.000000e+00> : vector<16x8xf32>
    %76 = vector.multi_reduction <add>, %75, %cst_21 [1] : vector<16x8x8xf32> to vector<16x8xf32>
    %77 = vector.shape_cast %76 : vector<16x8xf32> to vector<16x1x8xf32>
    %78 = tpu.reciprocal %77 {approx = true} : vector<16x1x8xf32> -> vector<16x1x8xf32>
    %79 = vector.broadcast %78 : vector<16x1x8xf32> to vector<16x8x8xf32>
    %80 = arith.mulf %75, %79 : vector<16x8x8xf32>
    %81 = vector.shape_cast %80 : vector<16x8x8xf32> to vector<128x8xf32>
    %c0_22 = arith.constant 0 : index
    %c0_23 = arith.constant 0 : index
    %82 = vector.load %arg9[%c0_22, %c0_23] : memref<8x64xf32, #tpu.memory_space<vmem>>, vector<8x64xf32>
    %cst_24 = arith.constant dense<0.000000e+00> : vector<128x64xf32>
    %83 = tpu.matmul %81, %82, %cst_24 {dimension_numbers = #tpu.dot_dimension_numbers<[1], [0], [0], [1], [0, 0, 1, 1], [], []>} : vector<128x8xf32>, vector<8x64xf32>, vector<128x64xf32> -> vector<128x64xf32>
    %84 = vector.shape_cast %83 : vector<128x64xf32> to vector<16x8x64xf32>
    %85 = arith.addf %24, %51 : vector<16x8x64xf32>
    %86 = arith.mulf %84, %85 : vector<16x8x64xf32>
    %cst_25 = arith.constant dense<0.000000e+00> : vector<16x64xf32>
    %87 = vector.multi_reduction <add>, %86, %cst_25 [1] : vector<16x8x64xf32> to vector<16x64xf32>
    %c0_26 = arith.constant 0 : index
    %c0_27 = arith.constant 0 : index
    %88 = vector.load %arg10[%c0_26, %c0_27] : memref<64x64xf32, #tpu.memory_space<vmem>>, vector<64x64xf32>
    %cst_28 = arith.constant dense<0.000000e+00> : vector<16x64xf32>
    %89 = tpu.matmul %87, %88, %cst_28 {dimension_numbers = #tpu.dot_dimension_numbers<[1], [0], [0], [1], [0, 0, 1, 1], [], []>} : vector<16x64xf32>, vector<64x64xf32>, vector<16x64xf32> -> vector<16x64xf32>
    %c0_29 = arith.constant 0 : index
    %c0_30 = arith.constant 0 : index
    %90 = vector.load %arg11[%c0_29, %c0_30] : memref<1x64xf32, #tpu.memory_space<vmem>>, vector<1x64xf32>
    %91 = vector.broadcast %90 : vector<1x64xf32> to vector<16x64xf32>
    %92 = arith.addf %89, %91 : vector<16x64xf32>
    %c0_31 = arith.constant 0 : index
    %c0_32 = arith.constant 0 : index
    %c0_33 = arith.constant 0 : index
    %93 = vector.load %arg12[%c0_31, %c0_32, %c0_33] : memref<1x16x64xf32, #tpu.memory_space<vmem>>, vector<1x16x64xf32>
    %94 = vector.shape_cast %93 : vector<1x16x64xf32> to vector<16x64xf32>
    %95 = vector.shape_cast %92 : vector<16x64xf32> to vector<1x16x64xf32>
    tpu.vector_store %arg12[%c0_31, %c0_32, %c0_33], %95 {strides = array<i32>} : memref<1x16x64xf32, #tpu.memory_space<vmem>>, vector<1x16x64xf32>,
    return
  }
  func.func @transform_0(%arg0: i32, %arg1: i32) -> (i32, i32, i32) {
    %c0_i32 = arith.constant 0 : i32
    %c0_i32_0 = arith.constant 0 : i32
    return %arg0, %arg1, %c0_i32 : i32, i32, i32
  }
  func.func @transform_1(%arg0: i32, %arg1: i32) -> (i32, i32, i32) {
    %c0_i32 = arith.constant 0 : i32
    %c0_i32_0 = arith.constant 0 : i32
    %c0_i32_1 = arith.constant 0 : i32
    return %arg0, %c0_i32, %c0_i32_0 : i32, i32, i32
  }
  func.func @transform_2(%arg0: i32, %arg1: i32) -> (i32, i32, i32) {
    %c0_i32 = arith.constant 0 : i32
    %c0_i32_0 = arith.constant 0 : i32
    return %arg0, %arg1, %c0_i32 : i32, i32, i32
  }
  func.func @transform_3(%arg0: i32, %arg1: i32) -> (i32, i32, i32) {
    %c0_i32 = arith.constant 0 : i32
    %c0_i32_0 = arith.constant 0 : i32
    return %arg0, %arg1, %c0_i32 : i32, i32, i32
  }
  func.func @transform_4(%arg0: i32, %arg1: i32) -> (i32, i32) {
    %c0_i32 = arith.constant 0 : i32
    %c0_i32_0 = arith.constant 0 : i32
    %c0_i32_1 = arith.constant 0 : i32
    return %c0_i32, %c0_i32_0 : i32, i32
  }
  func.func @transform_5(%arg0: i32, %arg1: i32) -> (i32, i32) {
    %c0_i32 = arith.constant 0 : i32
    %c0_i32_0 = arith.constant 0 : i32
    %c0_i32_1 = arith.constant 0 : i32
    return %c0_i32, %c0_i32_0 : i32, i32
  }
  func.func @transform_6(%arg0: i32, %arg1: i32) -> (i32, i32) {
    %c0_i32 = arith.constant 0 : i32
    %c0_i32_0 = arith.constant 0 : i32
    %c0_i32_1 = arith.constant 0 : i32
    return %c0_i32, %c0_i32_0 : i32, i32
  }
  func.func @transform_7(%arg0: i32, %arg1: i32) -> (i32, i32) {
    %c0_i32 = arith.constant 0 : i32
    %c0_i32_0 = arith.constant 0 : i32
    %c0_i32_1 = arith.constant 0 : i32
    return %c0_i32, %c0_i32_0 : i32, i32
  }
  func.func @transform_8(%arg0: i32, %arg1: i32) -> (i32, i32) {
    %c0_i32 = arith.constant 0 : i32
    %c0_i32_0 = arith.constant 0 : i32
    %c0_i32_1 = arith.constant 0 : i32
    return %c0_i32, %c0_i32_0 : i32, i32
  }
  func.func @transform_9(%arg0: i32, %arg1: i32) -> (i32, i32) {
    %c0_i32 = arith.constant 0 : i32
    %c0_i32_0 = arith.constant 0 : i32
    %c0_i32_1 = arith.constant 0 : i32
    return %c0_i32, %c0_i32_0 : i32, i32
  }
  func.func @transform_10(%arg0: i32, %arg1: i32) -> (i32, i32, i32) {
    %c0_i32 = arith.constant 0 : i32
    %c0_i32_0 = arith.constant 0 : i32
    return %arg0, %arg1, %c0_i32 : i32, i32, i32
  }
}

</mosaic_0001>

<llo_original>
// kernel: tile.14
$region0: #{tile.14}
  %s0 = inlined_call_operand.vmem [shape: f32[3,8,8], index: 0, kind: input, shape index: {}]
  %s1 = inlined_call_operand.vmem [shape: f32[3,64], index: 1, kind: output, shape index: {}]
  $region1: #{tile.14} parent=0
    #allocation0 [shape = 'u8[4096]{0}', space=vmem, size = 0x1000, scoped, tag = 'scoped mem for output reshape']
    %v2 = vld [vmem:[%s0] ss:$8 sm:$0x7]
    %vm3 = vcmask 64512
    %4 = vst.msk [vmem:[#allocation0] sm:$0x7] %vm3, %v2
    %s5 = scalar_lea.vmem %s0, 7
    %v6 = vld [vmem:[%s5] ss:$8 sm:$0x7]
    %7 = vrot.lane.b32.xlu0 %v6, 56
    %v8 = vpop.permute.xlu0 %7
    %vm9 = vcmask 523712
    %10 = vst.msk [vmem:[#allocation0] sm:$0x7] %vm9, %v8
    %s11 = scalar_lea.vmem %s0, 6
    %v12 = vld [vmem:[%s11] ss:$8 sm:$0x7]
    %13 = vrot.lane.b32.xlu0 %v12, 48
    %v14 = vpop.permute.xlu0 %13
    %vm15 = vcmask 458112
    %16 = vst.msk [vmem:[#allocation0] sm:$0x7] %vm15, %v14
    %s17 = scalar_lea.vmem %s0, 5
    %v18 = vld [vmem:[%s17] ss:$8 sm:$0x7]
    %19 = vrot.lane.b32.xlu0 %v18, 40
    %v20 = vpop.permute.xlu0 %19
    %vm21 = vcmask 392512
    %22 = vst.msk [vmem:[#allocation0] sm:$0x7] %vm21, %v20
    %s23 = scalar_lea.vmem %s0, 4
    %v24 = vld [vmem:[%s23] ss:$8 sm:$0x7]
    %25 = vrot.lane.b32.xlu0 %v24, 32
    %v26 = vpop.permute.xlu0 %25
    %vm27 = vcmask 326912
    %28 = vst.msk [vmem:[#allocation0] sm:$0x7] %vm27, %v26
    %s29 = scalar_lea.vmem %s0, 3
    %v30 = vld [vmem:[%s29] ss:$8 sm:$0x7]
    %31 = vrot.lane.b32.xlu0 %v30, 24
    %v32 = vpop.permute.xlu0 %31
    %vm33 = vcmask 261312
    %34 = vst.msk [vmem:[#allocation0] sm:$0x7] %vm33, %v32
    %s35 = scalar_lea.vmem %s0, 2
    %v36 = vld [vmem:[%s35] ss:$8 sm:$0x7]
    %37 = vrot.lane.b32.xlu0 %v36, 16
    %v38 = vpop.permute.xlu0 %37
    %vm39 = vcmask 195712
    %40 = vst.msk [vmem:[#allocation0] sm:$0x7] %vm39, %v38
    %s41 = scalar_lea.vmem %s0, 1
    %v42 = vld [vmem:[%s41] ss:$8 sm:$0x7]
    %43 = vrot.lane.b32.xlu0 %v42, 8
    %v44 = vpop.permute.xlu0 %43
    %vm45 = vcmask 130112
    %46 = vst.msk [vmem:[#allocation0] sm:$0x7] %vm45, %v44
    %s48 = sshllo.u32 0, 4
    %v50 = vld [vmem:[#allocation0] sm:%s48]
    %s51 = sshllo.u32 0, 4
    %52 = vst [vmem:[%s1] sm:%s51] %v50

// kernel: tile.18
$region0: #{tile.18}
  #allocation0 [shape = 's32[1]{0}', space=sflag, size = 0x4, scoped, tag = 'scoped memory for tile.18']
  %s0 = inlined_call_operand.vmem [shape: f32[8], index: 0, kind: input, shape index: {}]
  %s1 = inlined_call_operand.vmem [shape: f32[8,8], index: 1, kind: output, shape index: {}]
  // Predicated region
  $region2: #{tile.18} parent=0 // pred_check
    _
  $region3: #{tile.18} parent=0 // pred_check_branch
    %3 = sbr.rel (0) target = $region5
  $region4: #{tile.18} parent=0 // pred_region
    _
  $region5: #{tile.18} parent=0 // pred_fallthru
    _
  %v4 = vld [vmem:[%s0] ss:$0 sm:$0xff]
  %5 = vst [vmem:[%s1] sm:$0xff] %v4

// kernel: tile.19
$region0: #{tile.19}
  %s0 = inlined_call_operand.vmem [shape: f32[8,8], index: 0, kind: input, shape index: {}]
  %s1 = inlined_call_operand.vmem [shape: f32[1,64], index: 1, kind: output, shape index: {}]
  $region1: #{tile.19} parent=0
    #allocation0 [shape = 'u8[4096]{0}', space=vmem, size = 0x1000, scoped, tag = 'scoped mem for output reshape']
    %v2 = vld [vmem:[%s0] sm:$0x1]
    %vm3 = vcmask 64512
    %4 = vst.msk [vmem:[#allocation0] sm:$0x1] %vm3, %v2
    %s5 = scalar_lea.vmem %s0, 7
    %v6 = vld [vmem:[%s5] sm:$0x1]
    %7 = vrot.lane.b32.xlu0 %v6, 56
    %v8 = vpop.permute.xlu0 %7
    %vm9 = vcmask 523712
    %10 = vst.msk [vmem:[#allocation0] sm:$0x1] %vm9, %v8
    %s11 = scalar_lea.vmem %s0, 6
    %v12 = vld [vmem:[%s11] sm:$0x1]
    %13 = vrot.lane.b32.xlu0 %v12, 48
    %v14 = vpop.permute.xlu0 %13
    %vm15 = vcmask 458112
    %16 = vst.msk [vmem:[#allocation0] sm:$0x1] %vm15, %v14
    %s17 = scalar_lea.vmem %s0, 5
    %v18 = vld [vmem:[%s17] sm:$0x1]
    %19 = vrot.lane.b32.xlu0 %v18, 40
    %v20 = vpop.permute.xlu0 %19
    %vm21 = vcmask 392512
    %22 = vst.msk [vmem:[#allocation0] sm:$0x1] %vm21, %v20
    %s23 = scalar_lea.vmem %s0, 4
    %v24 = vld [vmem:[%s23] sm:$0x1]
    %25 = vrot.lane.b32.xlu0 %v24, 32
    %v26 = vpop.permute.xlu0 %25
    %vm27 = vcmask 326912
    %28 = vst.msk [vmem:[#allocation0] sm:$0x1] %vm27, %v26
    %s29 = scalar_lea.vmem %s0, 3
    %v30 = vld [vmem:[%s29] sm:$0x1]
    %31 = vrot.lane.b32.xlu0 %v30, 24
    %v32 = vpop.permute.xlu0 %31
    %vm33 = vcmask 261312
    %34 = vst.msk [vmem:[#allocation0] sm:$0x1] %vm33, %v32
    %s35 = scalar_lea.vmem %s0, 2
    %v36 = vld [vmem:[%s35] sm:$0x1]
    %37 = vrot.lane.b32.xlu0 %v36, 16
    %v38 = vpop.permute.xlu0 %37
    %vm39 = vcmask 195712
    %40 = vst.msk [vmem:[#allocation0] sm:$0x1] %vm39, %v38
    %s41 = scalar_lea.vmem %s0, 1
    %v42 = vld [vmem:[%s41] sm:$0x1]
    %43 = vrot.lane.b32.xlu0 %v42, 8
    %v44 = vpop.permute.xlu0 %43
    %vm45 = vcmask 130112
    %46 = vst.msk [vmem:[#allocation0] sm:$0x1] %vm45, %v44
    %s48 = sshllo.u32 0, 1
    %v50 = vld [vmem:[#allocation0] sm:%s48]
    %s51 = sshllo.u32 0, 1
    %52 = vst [vmem:[%s1] sm:%s51] %v50

// kernel: geometric_attention.2
$region0: #{geometric_attention.2}
  #allocation0 [shape = 'u32[]', space=smem, size = 0x4, offset = 0x4, fixed_abs, tag = 'smem constant byte address 0x4 - core index']
  #allocation1 [shape = 'u32[144,128]{1,0:T(1,128)}', space=vmem, size = 0x12000, scoped, tag = 'internal scratch']
  %s0 = inlined_call_operand.vmem [shape: f32[32,64], index: 0, kind: input, shape index: {}]
  %s1 = inlined_call_operand.vmem [shape: f32[64,192], index: 1, kind: input, shape index: {}]
  %s2 = inlined_call_operand.vmem [shape: f32[1,192], index: 2, kind: input, shape index: {}]
  %s3 = inlined_call_operand.vmem [shape: f32[32,192], index: 3, kind: output, shape index: {}]
  %s4 = sld [smem:[#allocation0]]
  $region22: #{geometric_attention.2} parent=0
    _
  %s6 = ssub.s32 1, %s4
  %s7 = scalar_select 0, %s6, %s4
  // Predicated region
  $region2: #{geometric_attention.2} parent=0 // pred_check
    _
  $region3: #{geometric_attention.2} parent=0 // pred_check_branch
    %9 = sbr.rel (0) target = $region5
  $region4: #{geometric_attention.2} parent=0 // pred_region
    _
  $region5: #{geometric_attention.2} parent=0 // pred_fallthru
    _
  // Predicated region
  $region6: #{geometric_attention.2} parent=0 // pred_check
    _
  $region7: #{geometric_attention.2} parent=0 // pred_check_branch
    %11 = sbr.rel (0) target = $region9
  $region8: #{geometric_attention.2} parent=0 // pred_region
    _
  $region9: #{geometric_attention.2} parent=0 // pred_fallthru
    _
  // Predicated region
  $region10: #{geometric_attention.2} parent=0 // pred_check
    _
  $region11: #{geometric_attention.2} parent=0 // pred_check_branch
    %13 = sbr.rel (0) target = $region13
  $region12: #{geometric_attention.2} parent=0 // pred_region
    _
  $region13: #{geometric_attention.2} parent=0 // pred_fallthru
    _
  %v14 = vld [vmem:[%s0] sm:$0xff]
  %v15 = vld [vmem:[%s0 + $0x8] sm:$0xff]
  %v16 = vld [vmem:[%s0 + $0x10] sm:$0xff]
  %v17 = vld [vmem:[%s0 + $0x18] sm:$0xff]
  %v18 = vld [vmem:[%s1] sm:$0xff]
  %v19 = vld [vmem:[%s1 + $0x8] sm:$0xff]
  %v20 = vld [vmem:[%s1 + $0x10] sm:$0xff]
  %v21 = vld [vmem:[%s1 + $0x18] sm:$0xff]
  %v22 = vld [vmem:[%s1 + $0x20] sm:$0xff]
  %v23 = vld [vmem:[%s1 + $0x28] sm:$0xff]
  %v24 = vld [vmem:[%s1 + $0x30] sm:$0xff]
  %v25 = vld [vmem:[%s1 + $0x38] sm:$0xff]
  %v26 = vld [vmem:[%s1 + $0x40] sm:$0xff]
  %v27 = vld [vmem:[%s1 + $0x48] sm:$0xff]
  %v28 = vld [vmem:[%s1 + $0x50] sm:$0xff]
  %v29 = vld [vmem:[%s1 + $0x58] sm:$0xff]
  %v30 = vld [vmem:[%s1 + $0x60] sm:$0xff]
  %v31 = vld [vmem:[%s1 + $0x68] sm:$0xff]
  %v32 = vld [vmem:[%s1 + $0x70] sm:$0xff]
  %v33 = vld [vmem:[%s1 + $0x78] sm:$0xff]
  %v34 = vld [vmem:[%s2] sm:$0x3]
  %v36 = vlaneseq
  %v37 = vshrl.u32 %v36, 7
  %v38 = vsub.s32 0, %v37
  %v39 = vrot.slane %v34, %v38
  %v40 = vlaneseq
  %v41 = vshrl.u32 %v40, 7
  %v42 = vsub.s32 1, %v41
  %v43 = vrot.slane %v34, %v42
  %vm46 = vcmask 523264
  %v48 = vsel %vm46, %v14, 0
  %v51 = vsel %vm46, %v15, 0
  %v54 = vsel %vm46, %v16, 0
  %v57 = vsel %vm46, %v17, 0
  %59 = vmatprep.subr.mxu0 %v19
  %60 = vmatpush1.msra.mxu0 %v18
  %61 = vmatprep.subr.mxu0 %v21
  %62 = vmatpush1.msra.mxu0 %v20
  %63 = vmatprep.subr.mxu0 %v23
  %64 = vmatpush1.msra.mxu0 %v22
  %65 = vmatprep.subr.mxu0 %v25
  %66 = vmatpush1.msra.mxu0 %v24
  %67 = vmatprep.subr.mxu0 %v27
  %68 = vmatpush1.msra.mxu0 %v26
  %69 = vmatprep.subr.mxu0 %v29
  %70 = vmatpush1.msra.mxu0 %v28
  %71 = vmatprep.subr.mxu0 %v31
  %72 = vmatpush1.msra.mxu0 %v30
  %73 = vmatprep.subr.mxu0 %v33
  %74 = vmatpush1.msra.mxu0 %v32
  %75 = vmatprep.subr.mxu0 0.0
  %76 = vmatpush1.msra.mxu0 0.0
  %77 = vmatprep.subr.mxu0 0.0
  %78 = vmatpush1.msra.mxu0 0.0
  %79 = vmatprep.subr.mxu0 0.0
  %80 = vmatpush1.msra.mxu0 0.0
  %81 = vmatprep.subr.mxu0 0.0
  %82 = vmatpush1.msra.mxu0 0.0
  %83 = vmatprep.subr.mxu0 0.0
  %84 = vmatpush1.msra.mxu0 0.0
  %85 = vmatprep.subr.mxu0 0.0
  %86 = vmatpush1.msra.mxu0 0.0
  %87 = vmatprep.subr.mxu0 0.0
  %88 = vmatpush1.msra.mxu0 0.0
  %89 = vmatprep.subr.mxu0 0.0
  %90 = vmatpush1.msra.mxu0 0.0
  %91 = vmatprep.subr.mxu0 0.0
  %92 = vmatpush1.msra.mxu0 0.0
  %93 = vmatprep.subr.mxu0 0.0
  %94 = vmatpush1.msra.mxu0 0.0
  %95 = vmatprep.subr.mxu0 0.0
  %96 = vmatpush1.msra.mxu0 0.0
  %97 = vmatprep.subr.mxu0 0.0
  %98 = vmatpush1.msra.mxu0 0.0
  %99 = vmatprep.subr.mxu0 0.0
  %100 = vmatpush1.msra.mxu0 0.0
  %101 = vmatprep.subr.mxu0 0.0
  %102 = vmatpush1.msra.mxu0 0.0
  %103 = vmatprep.subr.mxu0 0.0
  %104 = vmatpush1.msra.mxu0 0.0
  %105 = vmatprep.subr.mxu0 0.0
  %106 = vmatpush1.msra.mxu0 0.0
  %107 = vmatprep.subr.mxu0 0.0
  %108 = vmatpush1.msra.mxu0 0.0
  %109 = vmatprep.subr.mxu0 0.0
  %110 = vmatpush1.msra.mxu0 0.0
  %111 = vmatprep.subr.mxu0 0.0
  %112 = vmatpush1.msra.mxu0 0.0
  %113 = vmatprep.subr.mxu0 0.0
  %114 = vmatpush1.msra.mxu0 0.0
  %115 = vmatprep.subr.mxu0 0.0
  %116 = vmatpush1.msra.mxu0 0.0
  %117 = vmatprep.subr.mxu0 0.0
  %118 = vmatpush1.msra.mxu0 0.0
  %119 = vmatprep.subr.mxu0 0.0
  %120 = vmatpush1.msra.mxu0 0.0
  %121 = vmatprep.subr.mxu0 0.0
  %122 = vmatpush1.msra.mxu0 0.0
  %123 = vmatprep.mubr.f32.mxu0 0.0
  %124 = vmatmul.mubr.f32.gmra.mrb[0].mxu0 %v48
  %v125 = vpop.f32.mrb[0].mxu0
  %v126 = vadd.f32 %v39, %v125
  %v127 = vpop.f32.mrb[0].mxu0
  %v128 = vadd.f32 %v43, %v127
  %129 = vmatprep.mubr.f32.mxu0 0.0
  %130 = vmatmul.mubr.f32.gmra.mrb[0].mxu0 %v51
  %v131 = vpop.f32.mrb[0].mxu0
  %v132 = vadd.f32 %v39, %v131
  %v133 = vpop.f32.mrb[0].mxu0
  %v134 = vadd.f32 %v43, %v133
  %135 = vmatprep.mubr.f32.mxu0 0.0
  %136 = vmatmul.mubr.f32.gmra.mrb[0].mxu0 %v54
  %v137 = vpop.f32.mrb[0].mxu0
  %v138 = vadd.f32 %v39, %v137
  %v139 = vpop.f32.mrb[0].mxu0
  %v140 = vadd.f32 %v43, %v139
  %141 = vmatprep.mubr.f32.mxu0 0.0
  %142 = vmatmul.mubr.f32.gmra.mrb[0].mxu0 %v57
  %v143 = vpop.f32.mrb[0].mxu0
  %v144 = vadd.f32 %v39, %v143
  %v145 = vpop.f32.mrb[0].mxu0
  %v146 = vadd.f32 %v43, %v145
  %147 = vdwg.mxu0
  %148 = vst [vmem:[%s3] sm:$0xff] %v126
  %149 = vst.msk [vmem:[%s3 + $0x8] sm:$0xff] %vm46, %v128
  %150 = vst [vmem:[%s3 + $0x10] sm:$0xff] %v132
  %151 = vst.msk [vmem:[%s3 + $0x18] sm:$0xff] %vm46, %v134
  %152 = vst [vmem:[%s3 + $0x20] sm:$0xff] %v138
  %153 = vst.msk [vmem:[%s3 + $0x28] sm:$0xff] %vm46, %v140
  %154 = vst [vmem:[%s3 + $0x30] sm:$0xff] %v144
  %155 = vst.msk [vmem:[%s3 + $0x38] sm:$0xff] %vm46, %v146
  // Predicated region
  $region14: #{geometric_attention.2} parent=0 // pred_check
    _
  $region15: #{geometric_attention.2} parent=0 // pred_check_branch
    %157 = sbr.rel (0) target = $region17
  $region16: #{geometric_attention.2} parent=0 // pred_region
    _
  $region17: #{geometric_attention.2} parent=0 // pred_fallthru
    _
  // Predicated region
  $region18: #{geometric_attention.2} parent=0 // pred_check
    _
  $region19: #{geometric_attention.2} parent=0 // pred_check_branch
    %159 = sbr.rel (0) target = $region21
  $region20: #{geometric_attention.2} parent=0 // pred_region
    _
  $region21: #{geometric_attention.2} parent=0 // pred_fallthru
    _

// kernel: geometric_attention.3
$region0: #{geometric_attention.3}
  #allocation0 [shape = 'u32[]', space=smem, size = 0x4, offset = 0x4, fixed_abs, tag = 'smem constant byte address 0x4 - core index']
  #allocation1 [shape = 'u32[144,128]{1,0:T(1,128)}', space=vmem, size = 0x12000, scoped, tag = 'internal scratch']
  %s0 = inlined_call_operand.vmem [shape: f32[2,16,64], index: 0, kind: input, shape index: {}]
  %s1 = inlined_call_operand.vmem [shape: bf16[2,16,128], index: 1, kind: input, shape index: {}]
  %s2 = inlined_call_operand.vmem [shape: s32[2,16,8], index: 2, kind: input, shape index: {}]
  %s3 = inlined_call_operand.vmem [shape: f32[2,16,40], index: 3, kind: input, shape index: {}]
  %s4 = inlined_call_operand.vmem [shape: f32[3,64], index: 4, kind: input, shape index: {}]
  %s5 = inlined_call_operand.vmem [shape: f32[1,64], index: 5, kind: input, shape index: {}]
  %s6 = inlined_call_operand.vmem [shape: f32[64,8], index: 6, kind: input, shape index: {}]
  %s7 = inlined_call_operand.vmem [shape: f32[8,64], index: 7, kind: input, shape index: {}]
  %s8 = inlined_call_operand.vmem [shape: f32[64,64], index: 8, kind: input, shape index: {}]
  %s9 = inlined_call_operand.vmem [shape: f32[1,64], index: 9, kind: input, shape index: {}]
  %s10 = inlined_call_operand.hbm [shape: f32[2,16,64], index: 10, kind: output, shape index: {}]
  %s11 = sld [smem:[#allocation0]]
  $region73: #{geometric_attention.3} parent=0
    _
  %s13 = ssub.s32 1, %s11
  %s14 = scalar_select 0, %s13, %s11
  $region1: #{geometric_attention.3} parent=0
    #allocation2 [shape = 'u8[16384]{0}', space=vmem, size = 0x4000, scoped, tag = 'output window, operand 0']
    #allocation3 [shape = 's32[2]{0}', space=sflag, size = 0x8, scoped, tag = 'scoped memory for geometric_attention.3']
    %15 = vsyncpa [#allocation3], 0
    %s16 = scalar_lea.sflag [#allocation3], 1
    %17 = vsyncpa %s16, 0
    loop: start=0, step=1, limit=4
    $region2: #{geometric_attention.3} parent=1 // loop_pre_header
      _
    $region3: #{geometric_attention.3} parent=1 // loop_header
      %s19 = sphi 0, %s23
      %p20 = scmp.ge.s32.totalorder %s19, 4
      %s26 = sphi 0, %s38
      %s27 = sphi 0, %s34
      %s28 = sphi 0, %s26
      %s29 = sphi 0, %s27
      %s30 = sphi 0, %s28
      %s31 = sphi 0, %s29
      %s43 = sphi 0, %s45
      %s46 = sphi 0, %s43
      %s47 = sphi 0, %s46
      %s63 = sphi 0, %s47
      %s69 = sphi 0, %s71
      %s72 = sphi 0, %s69
      %s73 = sphi 0, %s72
      %s89 = sphi 0, %s73
      %s97 = sphi 0, %s99
      %s100 = sphi 0, %s97
      %s101 = sphi 0, %s100
      %s117 = sphi 0, %s101
      %s125 = sphi 0, %s127
      %s128 = sphi 0, %s125
      %s129 = sphi 0, %s128
      %s145 = sphi 0, %s129
      %s149 = sphi 0, %s149
      %s151 = sphi 0, %s149
      %s152 = sphi 0, %s151
      %s166 = sphi 0, %s152
      %s170 = sphi 0, %s170
      %s172 = sphi 0, %s170
      %s173 = sphi 0, %s172
      %s187 = sphi 0, %s173
      %s191 = sphi 0, %s191
      %s193 = sphi 0, %s191
      %s194 = sphi 0, %s193
      %s208 = sphi 0, %s194
      %s212 = sphi 0, %s212
      %s214 = sphi 0, %s212
      %s215 = sphi 0, %s214
      %s229 = sphi 0, %s215
      %s233 = sphi 0, %s233
      %s235 = sphi 0, %s233
      %s236 = sphi 0, %s235
      %s250 = sphi 0, %s236
      %s254 = sphi 0, %s254
      %s256 = sphi 0, %s254
      %s257 = sphi 0, %s256
      %s271 = sphi 0, %s257
      %s279 = sphi 0, %s281
      %s282 = sphi 0, %s279
      %s283 = sphi 0, %s282
      %s299 = sphi 0, %s283
    $region4: #{geometric_attention.3} parent=1 // loop_header_branch
      %22 = sbr.rel (%p20) target = $region8
    $region5: #{geometric_attention.3} parent=1 // loop_body
      %s24 = ssub.s32 %s19, 1
      %s25 = ssub.s32 %s19, 2
      %s32 = sadd.s32 1, %s27
      %p33 = scmp.ge.s32.totalorder %s32, 1
      %s34 = scalar_select %p33, 0, %s32
      %s35 = sadd.s32 1, %s26
      %s36 = scalar_select %p33, %s35, %s26
      %p37 = scmp.ge.s32.totalorder %s36, 2
      %s38 = scalar_select %p37, 0, %s36
      %s39 = ssub.s32 %s26, %s38
      %s40 = ssub.s32 %s27, %s34
      %s41 = sor.u32 %s39, %s40
      %p42 = scmp.eq.s32.totalorder %s41, 0
      %s44 = sadd.s32 %s43, 1
      %s45 = scalar_select %p42, %s43, %s44
      %p48 = pneg %p42
      %p49 = scmp.eq.s32.totalorder %s19, 1
      %p50 = por %p48, %p49
      %p51 = scmp.ne.s32.totalorder %s43, %s46
      %p52 = scmp.eq.s32.totalorder %s19, 0
      %p53 = por %p51, %p52
      %p54 = scmp.ne.s32.totalorder %s43, %s46
      %p55 = scmp.eq.s32.totalorder %s24, 1
      %p56 = por %p54, %p55
      %p57 = scmp.ne.s32.totalorder %s46, %s47
      %p58 = scmp.eq.s32.totalorder %s24, 0
      %p59 = por %p57, %p58
      %p60 = scmp.ne.s32.totalorder %s46, %s47
      %p61 = scmp.eq.s32.totalorder %s25, 1
      %p62 = por %p60, %p61
      %p64 = scmp.ne.s32.totalorder %s47, %s63
      %p65 = scmp.eq.s32.totalorder %s25, 0
      %p66 = por %p64, %p65
      %s67 = ssub.s32 %s26, %s38
      %p68 = scmp.eq.s32.totalorder %s67, 0
      %s70 = sadd.s32 %s69, 1
      %s71 = scalar_select %p68, %s69, %s70
      %p74 = pneg %p68
      %p75 = scmp.eq.s32.totalorder %s19, 1
      %p76 = por %p74, %p75
      %p77 = scmp.ne.s32.totalorder %s69, %s72
      %p78 = scmp.eq.s32.totalorder %s19, 0
      %p79 = por %p77, %p78
      %p80 = scmp.ne.s32.totalorder %s69, %s72
      %p81 = scmp.eq.s32.totalorder %s24, 1
      %p82 = por %p80, %p81
      %p83 = scmp.ne.s32.totalorder %s72, %s73
      %p84 = scmp.eq.s32.totalorder %s24, 0
      %p85 = por %p83, %p84
      %p86 = scmp.ne.s32.totalorder %s72, %s73
      %p87 = scmp.eq.s32.totalorder %s25, 1
      %p88 = por %p86, %p87
      %p90 = scmp.ne.s32.totalorder %s73, %s89
      %p91 = scmp.eq.s32.totalorder %s25, 0
      %p92 = por %p90, %p91
      %s93 = ssub.s32 %s26, %s38
      %s94 = ssub.s32 %s27, %s34
      %s95 = sor.u32 %s93, %s94
      %p96 = scmp.eq.s32.totalorder %s95, 0
      %s98 = sadd.s32 %s97, 1
      %s99 = scalar_select %p96, %s97, %s98
      %p102 = pneg %p96
      %p103 = scmp.eq.s32.totalorder %s19, 1
      %p104 = por %p102, %p103
      %p105 = scmp.ne.s32.totalorder %s97, %s100
      %p106 = scmp.eq.s32.totalorder %s19, 0
      %p107 = por %p105, %p106
      %p108 = scmp.ne.s32.totalorder %s97, %s100
      %p109 = scmp.eq.s32.totalorder %s24, 1
      %p110 = por %p108, %p109
      %p111 = scmp.ne.s32.totalorder %s100, %s101
      %p112 = scmp.eq.s32.totalorder %s24, 0
      %p113 = por %p111, %p112
      %p114 = scmp.ne.s32.totalorder %s100, %s101
      %p115 = scmp.eq.s32.totalorder %s25, 1
      %p116 = por %p114, %p115
      %p118 = scmp.ne.s32.totalorder %s101, %s117
      %p119 = scmp.eq.s32.totalorder %s25, 0
      %p120 = por %p118, %p119
      %s121 = ssub.s32 %s26, %s38
      %s122 = ssub.s32 %s27, %s34
      %s123 = sor.u32 %s121, %s122
      %p124 = scmp.eq.s32.totalorder %s123, 0
      %s126 = sadd.s32 %s125, 1
      %s127 = scalar_select %p124, %s125, %s126
      %p130 = pneg %p124
      %p131 = scmp.eq.s32.totalorder %s19, 1
      %p132 = por %p130, %p131
      %p133 = scmp.ne.s32.totalorder %s125, %s128
      %p134 = scmp.eq.s32.totalorder %s19, 0
      %p135 = por %p133, %p134
      %p136 = scmp.ne.s32.totalorder %s125, %s128
      %p137 = scmp.eq.s32.totalorder %s24, 1
      %p138 = por %p136, %p137
      %p139 = scmp.ne.s32.totalorder %s128, %s129
      %p140 = scmp.eq.s32.totalorder %s24, 0
      %p141 = por %p139, %p140
      %p142 = scmp.ne.s32.totalorder %s128, %s129
      %p143 = scmp.eq.s32.totalorder %s25, 1
      %p144 = por %p142, %p143
      %p146 = scmp.ne.s32.totalorder %s129, %s145
      %p147 = scmp.eq.s32.totalorder %s25, 0
      %p148 = por %p146, %p147
      %s150 = sadd.s32 %s149, 1
      %p153 = scmp.eq.s32.totalorder %s19, 1
      %p154 = scmp.ne.s32.totalorder %s149, %s151
      %p155 = scmp.eq.s32.totalorder %s19, 0
      %p156 = por %p154, %p155
      %p157 = scmp.ne.s32.totalorder %s149, %s151
      %p158 = scmp.eq.s32.totalorder %s24, 1
      %p159 = por %p157, %p158
      %p160 = scmp.ne.s32.totalorder %s151, %s152
      %p161 = scmp.eq.s32.totalorder %s24, 0
      %p162 = por %p160, %p161
      %p163 = scmp.ne.s32.totalorder %s151, %s152
      %p164 = scmp.eq.s32.totalorder %s25, 1
      %p165 = por %p163, %p164
      %p167 = scmp.ne.s32.totalorder %s152, %s166
      %p168 = scmp.eq.s32.totalorder %s25, 0
      %p169 = por %p167, %p168
      %s171 = sadd.s32 %s170, 1
      %p174 = scmp.eq.s32.totalorder %s19, 1
      %p175 = scmp.ne.s32.totalorder %s170, %s172
      %p176 = scmp.eq.s32.totalorder %s19, 0
      %p177 = por %p175, %p176
      %p178 = scmp.ne.s32.totalorder %s170, %s172
      %p179 = scmp.eq.s32.totalorder %s24, 1
      %p180 = por %p178, %p179
      %p181 = scmp.ne.s32.totalorder %s172, %s173
      %p182 = scmp.eq.s32.totalorder %s24, 0
      %p183 = por %p181, %p182
      %p184 = scmp.ne.s32.totalorder %s172, %s173
      %p185 = scmp.eq.s32.totalorder %s25, 1
      %p186 = por %p184, %p185
      %p188 = scmp.ne.s32.totalorder %s173, %s187
      %p189 = scmp.eq.s32.totalorder %s25, 0
      %p190 = por %p188, %p189
      %s192 = sadd.s32 %s191, 1
      %p195 = scmp.eq.s32.totalorder %s19, 1
      %p196 = scmp.ne.s32.totalorder %s191, %s193
      %p197 = scmp.eq.s32.totalorder %s19, 0
      %p198 = por %p196, %p197
      %p199 = scmp.ne.s32.totalorder %s191, %s193
      %p200 = scmp.eq.s32.totalorder %s24, 1
      %p201 = por %p199, %p200
      %p202 = scmp.ne.s32.totalorder %s193, %s194
      %p203 = scmp.eq.s32.totalorder %s24, 0
      %p204 = por %p202, %p203
      %p205 = scmp.ne.s32.totalorder %s193, %s194
      %p206 = scmp.eq.s32.totalorder %s25, 1
      %p207 = por %p205, %p206
      %p209 = scmp.ne.s32.totalorder %s194, %s208
      %p210 = scmp.eq.s32.totalorder %s25, 0
      %p211 = por %p209, %p210
      %s213 = sadd.s32 %s212, 1
      %p216 = scmp.eq.s32.totalorder %s19, 1
      %p217 = scmp.ne.s32.totalorder %s212, %s214
      %p218 = scmp.eq.s32.totalorder %s19, 0
      %p219 = por %p217, %p218
      %p220 = scmp.ne.s32.totalorder %s212, %s214
      %p221 = scmp.eq.s32.totalorder %s24, 1
      %p222 = por %p220, %p221
      %p223 = scmp.ne.s32.totalorder %s214, %s215
      %p224 = scmp.eq.s32.totalorder %s24, 0
      %p225 = por %p223, %p224
      %p226 = scmp.ne.s32.totalorder %s214, %s215
      %p227 = scmp.eq.s32.totalorder %s25, 1
      %p228 = por %p226, %p227
      %p230 = scmp.ne.s32.totalorder %s215, %s229
      %p231 = scmp.eq.s32.totalorder %s25, 0
      %p232 = por %p230, %p231
      %s234 = sadd.s32 %s233, 1
      %p237 = scmp.eq.s32.totalorder %s19, 1
      %p238 = scmp.ne.s32.totalorder %s233, %s235
      %p239 = scmp.eq.s32.totalorder %s19, 0
      %p240 = por %p238, %p239
      %p241 = scmp.ne.s32.totalorder %s233, %s235
      %p242 = scmp.eq.s32.totalorder %s24, 1
      %p243 = por %p241, %p242
      %p244 = scmp.ne.s32.totalorder %s235, %s236
      %p245 = scmp.eq.s32.totalorder %s24, 0
      %p246 = por %p244, %p245
      %p247 = scmp.ne.s32.totalorder %s235, %s236
      %p248 = scmp.eq.s32.totalorder %s25, 1
      %p249 = por %p247, %p248
      %p251 = scmp.ne.s32.totalorder %s236, %s250
      %p252 = scmp.eq.s32.totalorder %s25, 0
      %p253 = por %p251, %p252
      %s255 = sadd.s32 %s254, 1
      %p258 = scmp.eq.s32.totalorder %s19, 1
      %p259 = scmp.ne.s32.totalorder %s254, %s256
      %p260 = scmp.eq.s32.totalorder %s19, 0
      %p261 = por %p259, %p260
      %p262 = scmp.ne.s32.totalorder %s254, %s256
      %p263 = scmp.eq.s32.totalorder %s24, 1
      %p264 = por %p262, %p263
      %p265 = scmp.ne.s32.totalorder %s256, %s257
      %p266 = scmp.eq.s32.totalorder %s24, 0
      %p267 = por %p265, %p266
      %p268 = scmp.ne.s32.totalorder %s256, %s257
      %p269 = scmp.eq.s32.totalorder %s25, 1
      %p270 = por %p268, %p269
      %p272 = scmp.ne.s32.totalorder %s257, %s271
      %p273 = scmp.eq.s32.totalorder %s25, 0
      %p274 = por %p272, %p273
      %s275 = ssub.s32 %s26, %s38
      %s276 = ssub.s32 %s27, %s34
      %s277 = sor.u32 %s275, %s276
      %p278 = scmp.eq.s32.totalorder %s277, 0
      %s280 = sadd.s32 %s279, 1
      %s281 = scalar_select %p278, %s279, %s280
      %p284 = pneg %p278
      %p285 = scmp.eq.s32.totalorder %s19, 1
      %p286 = por %p284, %p285
      %p287 = scmp.ne.s32.totalorder %s279, %s282
      %p288 = scmp.eq.s32.totalorder %s19, 0
      %p289 = por %p287, %p288
      %p290 = scmp.ne.s32.totalorder %s279, %s282
      %p291 = scmp.eq.s32.totalorder %s24, 1
      %p292 = por %p290, %p291
      %p293 = scmp.ne.s32.totalorder %s282, %s283
      %p294 = scmp.eq.s32.totalorder %s24, 0
      %p295 = por %p293, %p294
      %p296 = scmp.ne.s32.totalorder %s282, %s283
      %p297 = scmp.eq.s32.totalorder %s25, 1
      %p298 = por %p296, %p297
      %p300 = scmp.ne.s32.totalorder %s283, %s299
      %p301 = scmp.eq.s32.totalorder %s25, 0
      %p302 = por %p300, %p301
      %p303 = scmp.le.s32.totalorder 1, %s19
      %p304 = scmp.lt.s32.totalorder %s19, 3
      %p305 = pnand %p303, %p304
      %p306 = pneg %p305
      // Predicated region
      $region9: #{geometric_attention.3} parent=5 // pred_check
        _
      $region10: #{geometric_attention.3} parent=5 // pred_check_branch
        %308 = sbr.rel (%p305) target = $region12
      $region11: #{geometric_attention.3} parent=5 // pred_region
        %s309 = ssub.s32 %s19, 1
        // Predicated region
        $region13: #{geometric_attention.3} parent=11 // pred_check
          %p310 = pneg %p162
        $region14: #{geometric_attention.3} parent=11 // pred_check_branch
          %312 = sbr.rel (%p310) target = $region16
        $region15: #{geometric_attention.3} parent=11 // pred_region
          _
        $region16: #{geometric_attention.3} parent=11 // pred_fallthru
          _
        // Predicated region
        $region17: #{geometric_attention.3} parent=11 // pred_check
          %p313 = pneg %p183
        $region18: #{geometric_attention.3} parent=11 // pred_check_branch
          %315 = sbr.rel (%p313) target = $region20
        $region19: #{geometric_attention.3} parent=11 // pred_region
          _
        $region20: #{geometric_attention.3} parent=11 // pred_fallthru
          _
        // Predicated region
        $region21: #{geometric_attention.3} parent=11 // pred_check
          %p316 = pneg %p204
        $region22: #{geometric_attention.3} parent=11 // pred_check_branch
          %318 = sbr.rel (%p316) target = $region24
        $region23: #{geometric_attention.3} parent=11 // pred_region
          _
        $region24: #{geometric_attention.3} parent=11 // pred_fallthru
          _
        // Predicated region
        $region25: #{geometric_attention.3} parent=11 // pred_check
          %p319 = pneg %p225
        $region26: #{geometric_attention.3} parent=11 // pred_check_branch
          %321 = sbr.rel (%p319) target = $region28
        $region27: #{geometric_attention.3} parent=11 // pred_region
          _
        $region28: #{geometric_attention.3} parent=11 // pred_fallthru
          _
        // Predicated region
        $region29: #{geometric_attention.3} parent=11 // pred_check
          %p322 = pneg %p246
        $region30: #{geometric_attention.3} parent=11 // pred_check_branch
          %324 = sbr.rel (%p322) target = $region32
        $region31: #{geometric_attention.3} parent=11 // pred_region
          _
        $region32: #{geometric_attention.3} parent=11 // pred_fallthru
          _
        // Predicated region
        $region33: #{geometric_attention.3} parent=11 // pred_check
          %p325 = pneg %p267
        $region34: #{geometric_attention.3} parent=11 // pred_check_branch
          %327 = sbr.rel (%p325) target = $region36
        $region35: #{geometric_attention.3} parent=11 // pred_region
          _
        $region36: #{geometric_attention.3} parent=11 // pred_fallthru
          _
      $region12: #{geometric_attention.3} parent=5 // pred_fallthru
        _
      %p328 = scmp.lt.s32.totalorder %s19, 2
      // Predicated region
      $region37: #{geometric_attention.3} parent=5 // pred_check
        %p329 = pneg %p328
      $region38: #{geometric_attention.3} parent=5 // pred_check_branch
        %331 = sbr.rel (%p329) target = $region40
      $region39: #{geometric_attention.3} parent=5 // pred_region
        // Predicated region
        $region41: #{geometric_attention.3} parent=39 // pred_check
          %p332 = pneg %p53
        $region42: #{geometric_attention.3} parent=39 // pred_check_branch
          %334 = sbr.rel (%p332) target = $region44
        $region43: #{geometric_attention.3} parent=39 // pred_region
          %s335 = smul.u32 2, %s27
          %p336 = scmp.lt.s32.totalorder %s26, 1
          %s337 = scalar_select %p336, %s26, 1
          %p338 = scmp.lt.s32.totalorder %s335, 1
          %s339 = scalar_select %p338, %s335, 1
          %s340 = smul.addr %s337, 2
          %s341 = sadd.s32 %s339, %s340
          %s342 = smul.addr %s341, 8
          %s343 = scalar_lea.vmem %s0, %s342
          %s344 = smul.u32 2, %s27
        $region44: #{geometric_attention.3} parent=39 // pred_fallthru
          _
        // Predicated region
        $region45: #{geometric_attention.3} parent=39 // pred_check
          %p345 = pneg %p79
        $region46: #{geometric_attention.3} parent=39 // pred_check_branch
          %347 = sbr.rel (%p345) target = $region48
        $region47: #{geometric_attention.3} parent=39 // pred_region
          %p348 = scmp.lt.s32.totalorder %s26, 1
          %s349 = scalar_select %p348, %s26, 1
          %s350 = smul.addr %s349, 2
          %s351 = smul.addr %s350, 4
          %s352 = scalar_lea.vmem %s1, %s351
        $region48: #{geometric_attention.3} parent=39 // pred_fallthru
          _
        // Predicated region
        $region49: #{geometric_attention.3} parent=39 // pred_check
          %p353 = pneg %p107
        $region50: #{geometric_attention.3} parent=39 // pred_check_branch
          %355 = sbr.rel (%p353) target = $region52
        $region51: #{geometric_attention.3} parent=39 // pred_region
          %s356 = smul.u32 2, %s27
          %p357 = scmp.lt.s32.totalorder %s26, 1
          %s358 = scalar_select %p357, %s26, 1
          %p359 = scmp.lt.s32.totalorder %s356, 1
          %s360 = scalar_select %p359, %s356, 1
          %s361 = smul.addr %s358, 2
          %s362 = sadd.s32 %s360, %s361
          %s363 = smul.addr %s362, 8
          %s364 = scalar_lea.vmem %s2, %s363
          %s365 = smul.u32 2, %s27
        $region52: #{geometric_attention.3} parent=39 // pred_fallthru
          _
        // Predicated region
        $region53: #{geometric_attention.3} parent=39 // pred_check
          %p366 = pneg %p135
        $region54: #{geometric_attention.3} parent=39 // pred_check_branch
          %368 = sbr.rel (%p366) target = $region56
        $region55: #{geometric_attention.3} parent=39 // pred_region
          %s369 = smul.u32 2, %s27
          %p370 = scmp.lt.s32.totalorder %s26, 1
          %s371 = scalar_select %p370, %s26, 1
          %p372 = scmp.lt.s32.totalorder %s369, 1
          %s373 = scalar_select %p372, %s369, 1
          %s374 = smul.addr %s371, 2
          %s375 = sadd.s32 %s373, %s374
          %s376 = smul.addr %s375, 8
          %s377 = scalar_lea.vmem %s3, %s376
          %s378 = smul.u32 2, %s27
        $region56: #{geometric_attention.3} parent=39 // pred_fallthru
          _
      $region40: #{geometric_attention.3} parent=5 // pred_fallthru
        _
      %p379 = scmp.le.s32.totalorder 1, %s19
      %p380 = scmp.lt.s32.totalorder %s19, 3
      %p381 = pnand %p379, %p380
      %p382 = pneg %p381
      // Predicated region
      $region57: #{geometric_attention.3} parent=5 // pred_check
        _
      $region58: #{geometric_attention.3} parent=5 // pred_check_branch
        %384 = sbr.rel (%p381) target = $region60
      $region59: #{geometric_attention.3} parent=5 // pred_region
        %s385 = ssub.s32 %s19, 1
        %s386 = smul.u32 2, %s29
        %p387 = scmp.lt.s32.totalorder %s28, 1
        %s388 = scalar_select %p387, %s28, 1
        %p389 = scmp.lt.s32.totalorder %s386, 1
        %s390 = scalar_select %p389, %s386, 1
        %s391 = smul.addr %s388, 2
        %s392 = sadd.s32 %s390, %s391
        %s393 = smul.addr %s392, 8
        %s394 = scalar_lea.vmem %s0, %s393
        %p395 = pneg %p59
        %p396 = pneg %p56
        %p397 = scmp.lt.s32.totalorder %s28, 1
        %s398 = scalar_select %p397, %s28, 1
        %s399 = smul.addr %s398, 2
        %s400 = smul.addr %s399, 4
        %s401 = scalar_lea.vmem %s1, %s400
        %p402 = pneg %p85
        %p403 = pneg %p82
        %s404 = smul.u32 2, %s29
        %p405 = scmp.lt.s32.totalorder %s28, 1
        %s406 = scalar_select %p405, %s28, 1
        %p407 = scmp.lt.s32.totalorder %s404, 1
        %s408 = scalar_select %p407, %s404, 1
        %s409 = smul.addr %s406, 2
        %s410 = sadd.s32 %s408, %s409
        %s411 = smul.addr %s410, 8
        %s412 = scalar_lea.vmem %s2, %s411
        %p413 = pneg %p113
        %p414 = pneg %p110
        %s415 = smul.u32 2, %s29
        %p416 = scmp.lt.s32.totalorder %s28, 1
        %s417 = scalar_select %p416, %s28, 1
        %p418 = scmp.lt.s32.totalorder %s415, 1
        %s419 = scalar_select %p418, %s415, 1
        %s420 = smul.addr %s417, 2
        %s421 = sadd.s32 %s419, %s420
        %s422 = smul.addr %s421, 8
        %s423 = scalar_lea.vmem %s3, %s422
        %p424 = pneg %p141
        %p425 = pneg %p138
        %p426 = pneg %p162
        %p427 = pneg %p159
        %p428 = pneg %p183
        %p429 = pneg %p180
        %p430 = pneg %p204
        %p431 = pneg %p201
        %p432 = pneg %p225
        %p433 = pneg %p222
        %p434 = pneg %p246
        %p435 = pneg %p243
        %p436 = pneg %p267
        %p437 = pneg %p264
        %p438 = pneg %p295
        %p439 = pneg %p292
        %s440 = sand.u32 %s282, 1
        %s441 = scalar_lea.sflag [#allocation3], %s440
        %s442 = sand.u32 %s282, 1
        %s443 = smul.addr %s442, 16
        %s444 = scalar_lea.vmem [#allocation2], %s443
        %s445 = smul.u32 2, %s29
        %p446 = scmp.lt.s32.totalorder %s28, 1
        %s447 = scalar_select %p446, %s28, 1
        %p448 = scmp.lt.s32.totalorder %s445, 1
        %s449 = scalar_select %p448, %s445, 1
        %s450 = smul.addr %s447, 2
        %s451 = sadd.s32 %s449, %s450
        %s452 = smul.addr %s451, 8
        %s453 = scalar_lea.vmem %s0, %s452
        %s454 = smul.u32 2, %s29
        %p455 = scmp.lt.s32.totalorder %s28, 1
        %s456 = scalar_select %p455, %s28, 1
        %s457 = smul.addr %s456, 2
        %s458 = smul.addr %s457, 4
        %s459 = scalar_lea.vmem %s1, %s458
        %s460 = smul.u32 2, %s29
        %p461 = scmp.lt.s32.totalorder %s28, 1
        %s462 = scalar_select %p461, %s28, 1
        %p463 = scmp.lt.s32.totalorder %s460, 1
        %s464 = scalar_select %p463, %s460, 1
        %s465 = smul.addr %s462, 2
        %s466 = sadd.s32 %s464, %s465
        %s467 = smul.addr %s466, 8
        %s468 = scalar_lea.vmem %s2, %s467
        %s469 = smul.u32 2, %s29
        %s470 = smul.u32 2, %s29
        %p471 = scmp.lt.s32.totalorder %s28, 1
        %s472 = scalar_select %p471, %s28, 1
        %p473 = scmp.lt.s32.totalorder %s470, 1
        %s474 = scalar_select %p473, %s470, 1
        %s475 = smul.addr %s472, 2
        %s476 = sadd.s32 %s474, %s475
        %s477 = smul.addr %s476, 8
        %s478 = scalar_lea.vmem %s3, %s477
        %s479 = smul.u32 2, %s29
        %s480 = smul.u32 2, %s29
        %v482 = vld [vmem:[%s453] sm:$0xff]
        %v483 = vld [vmem:[%s453 + $0x8] sm:$0xff]
        %v484 = vld [vmem:[%s459] sm:$0xf]
        %v485 = vld [vmem:[%s459 + $0x4] sm:$0xf]
        %v486 = vld [vmem:[%s468] sm:$0xff]
        %v487 = vld [vmem:[%s468 + $0x8] sm:$0xff]
        %v488 = vld [vmem:[%s478] sm:$0xff]
        %v489 = vld [vmem:[%s478 + $0x8] sm:$0xff]
        %v490 = vlaneseq
        %v491 = vand.u32 %v490, 127
        %v492 = vlaneseq
        %v493 = vshrl.u32 %v492, 7
        %v494 = vsub.s32 0, %v493
        %v495 = vrot.slane %v486, %v494
        %497 = vbcast.lane.b32.xlu0 %v495, 256
        %v498 = vpop.permute.xlu0 %497
        %v499 = vlaneseq
        %v500 = vshrl.u32 %v499, 7
        %v501 = vsub.s32 1, %v500
        %v502 = vrot.slane %v486, %v501
        %504 = vbcast.lane.b32.xlu0 %v502, 256
        %v505 = vpop.permute.xlu0 %504
        %v506 = vlaneseq
        %v507 = vshrl.u32 %v506, 7
        %v508 = vsub.s32 2, %v507
        %v509 = vrot.slane %v486, %v508
        %511 = vbcast.lane.b32.xlu0 %v509, 256
        %v512 = vpop.permute.xlu0 %511
        %v513 = vlaneseq
        %v514 = vshrl.u32 %v513, 7
        %v515 = vsub.s32 3, %v514
        %v516 = vrot.slane %v486, %v515
        %518 = vbcast.lane.b32.xlu0 %v516, 256
        %v519 = vpop.permute.xlu0 %518
        %v520 = vlaneseq
        %v521 = vshrl.u32 %v520, 7
        %v522 = vsub.s32 4, %v521
        %v523 = vrot.slane %v486, %v522
        %525 = vbcast.lane.b32.xlu0 %v523, 256
        %v526 = vpop.permute.xlu0 %525
        %v527 = vlaneseq
        %v528 = vshrl.u32 %v527, 7
        %v529 = vsub.s32 5, %v528
        %v530 = vrot.slane %v486, %v529
        %532 = vbcast.lane.b32.xlu0 %v530, 256
        %v533 = vpop.permute.xlu0 %532
        %v534 = vlaneseq
        %v535 = vshrl.u32 %v534, 7
        %v536 = vsub.s32 6, %v535
        %v537 = vrot.slane %v486, %v536
        %539 = vbcast.lane.b32.xlu0 %v537, 256
        %v540 = vpop.permute.xlu0 %539
        %v541 = vlaneseq
        %v542 = vshrl.u32 %v541, 7
        %v543 = vsub.s32 7, %v542
        %v544 = vrot.slane %v486, %v543
        %546 = vbcast.lane.b32.xlu0 %v544, 256
        %v547 = vpop.permute.xlu0 %546
        %v548 = vlaneseq
        %v549 = vshrl.u32 %v548, 7
        %v550 = vsub.s32 0, %v549
        %v551 = vrot.slane %v487, %v550
        %553 = vbcast.lane.b32.xlu0 %v551, 256
        %v554 = vpop.permute.xlu0 %553
        %v555 = vlaneseq
        %v556 = vshrl.u32 %v555, 7
        %v557 = vsub.s32 1, %v556
        %v558 = vrot.slane %v487, %v557
        %560 = vbcast.lane.b32.xlu0 %v558, 256
        %v561 = vpop.permute.xlu0 %560
        %v562 = vlaneseq
        %v563 = vshrl.u32 %v562, 7
        %v564 = vsub.s32 2, %v563
        %v565 = vrot.slane %v487, %v564
        %567 = vbcast.lane.b32.xlu0 %v565, 256
        %v568 = vpop.permute.xlu0 %567
        %v569 = vlaneseq
        %v570 = vshrl.u32 %v569, 7
        %v571 = vsub.s32 3, %v570
        %v572 = vrot.slane %v487, %v571
        %574 = vbcast.lane.b32.xlu0 %v572, 256
        %v575 = vpop.permute.xlu0 %574
        %v576 = vlaneseq
        %v577 = vshrl.u32 %v576, 7
        %v578 = vsub.s32 4, %v577
        %v579 = vrot.slane %v487, %v578
        %581 = vbcast.lane.b32.xlu0 %v579, 256
        %v582 = vpop.permute.xlu0 %581
        %v583 = vlaneseq
        %v584 = vshrl.u32 %v583, 7
        %v585 = vsub.s32 5, %v584
        %v586 = vrot.slane %v487, %v585
        %588 = vbcast.lane.b32.xlu0 %v586, 256
        %v589 = vpop.permute.xlu0 %588
        %v590 = vlaneseq
        %v591 = vshrl.u32 %v590, 7
        %v592 = vsub.s32 6, %v591
        %v593 = vrot.slane %v487, %v592
        %595 = vbcast.lane.b32.xlu0 %v593, 256
        %v596 = vpop.permute.xlu0 %595
        %v597 = vlaneseq
        %v598 = vshrl.u32 %v597, 7
        %v599 = vsub.s32 7, %v598
        %v600 = vrot.slane %v487, %v599
        %602 = vbcast.lane.b32.xlu0 %v600, 256
        %v603 = vpop.permute.xlu0 %602
        %vm604 = vcmp.eq.s32.totalorder %v491, %v498
        %vm605 = vcmp.eq.s32.totalorder %v491, %v505
        %vm606 = vcmp.eq.s32.totalorder %v491, %v512
        %vm607 = vcmp.eq.s32.totalorder %v491, %v519
        %vm608 = vcmp.eq.s32.totalorder %v491, %v526
        %vm609 = vcmp.eq.s32.totalorder %v491, %v533
        %vm610 = vcmp.eq.s32.totalorder %v491, %v540
        %vm611 = vcmp.eq.s32.totalorder %v491, %v547
        %vm612 = vcmp.eq.s32.totalorder %v491, %v554
        %vm613 = vcmp.eq.s32.totalorder %v491, %v561
        %vm614 = vcmp.eq.s32.totalorder %v491, %v568
        %vm615 = vcmp.eq.s32.totalorder %v491, %v575
        %vm616 = vcmp.eq.s32.totalorder %v491, %v582
        %vm617 = vcmp.eq.s32.totalorder %v491, %v589
        %vm618 = vcmp.eq.s32.totalorder %v491, %v596
        %vm619 = vcmp.eq.s32.totalorder %v491, %v603
        %v620 = vsel %vm604, 1, 0
        %v621 = vsel %vm605, 1, 0
        %v622 = vsel %vm606, 1, 0
        %v623 = vsel %vm607, 1, 0
        %v624 = vsel %vm608, 1, 0
        %v625 = vsel %vm609, 1, 0
        %v626 = vsel %vm610, 1, 0
        %v627 = vsel %vm611, 1, 0
        %v628 = vsel %vm612, 1, 0
        %v629 = vsel %vm613, 1, 0
        %v630 = vsel %vm614, 1, 0
        %v631 = vsel %vm615, 1, 0
        %v632 = vsel %vm616, 1, 0
        %v633 = vsel %vm617, 1, 0
        %v634 = vsel %vm618, 1, 0
        %v635 = vsel %vm619, 1, 0
        %v636 = vcvt.s32.f32 %v620
        %v637 = vcvt.s32.f32 %v621
        %v638 = vcvt.s32.f32 %v622
        %v639 = vcvt.s32.f32 %v623
        %v640 = vcvt.s32.f32 %v624
        %v641 = vcvt.s32.f32 %v625
        %v642 = vcvt.s32.f32 %v626
        %v643 = vcvt.s32.f32 %v627
        %v644 = vcvt.s32.f32 %v628
        %v645 = vcvt.s32.f32 %v629
        %v646 = vcvt.s32.f32 %v630
        %v647 = vcvt.s32.f32 %v631
        %v648 = vcvt.s32.f32 %v632
        %v649 = vcvt.s32.f32 %v633
        %v650 = vcvt.s32.f32 %v634
        %v651 = vcvt.s32.f32 %v635
        %v652 = vpack.c.bf16 %v636, %v636
        %v653 = vpack.c.bf16 %v637, %v637
        %v654 = vpack.c.bf16 %v638, %v638
        %v655 = vpack.c.bf16 %v639, %v639
        %v656 = vpack.c.bf16 %v640, %v640
        %v657 = vpack.c.bf16 %v641, %v641
        %v658 = vpack.c.bf16 %v642, %v642
        %v659 = vpack.c.bf16 %v643, %v643
        %v660 = vpack.c.bf16 %v644, %v644
        %v661 = vpack.c.bf16 %v645, %v645
        %v662 = vpack.c.bf16 %v646, %v646
        %v663 = vpack.c.bf16 %v647, %v647
        %v664 = vpack.c.bf16 %v648, %v648
        %v665 = vpack.c.bf16 %v649, %v649
        %v666 = vpack.c.bf16 %v650, %v650
        %v667 = vpack.c.bf16 %v651, %v651
        %v684 = vunpack.c.l.b16 %v652
        %v685 = vunpack.c.l.b16 %v653
        %v686 = vunpack.c.l.b16 %v654
        %v687 = vunpack.c.l.b16 %v655
        %v688 = vunpack.c.l.b16 %v656
        %v689 = vunpack.c.l.b16 %v657
        %v690 = vunpack.c.l.b16 %v658
        %v691 = vunpack.c.l.b16 %v659
        %v692 = vunpack.c.l.b16 %v660
        %v693 = vunpack.c.l.b16 %v661
        %v694 = vunpack.c.l.b16 %v662
        %v695 = vunpack.c.l.b16 %v663
        %v696 = vunpack.c.l.b16 %v664
        %v697 = vunpack.c.l.b16 %v665
        %v698 = vunpack.c.l.b16 %v666
        %v699 = vunpack.c.l.b16 %v667
        %v700 = vpack.c.b16 %v685, %v684
        %v701 = vpack.c.b16 %v687, %v686
        %v702 = vpack.c.b16 %v689, %v688
        %v703 = vpack.c.b16 %v691, %v690
        %v704 = vpack.c.b16 %v693, %v692
        %v705 = vpack.c.b16 %v695, %v694
        %v706 = vpack.c.b16 %v697, %v696
        %v707 = vpack.c.b16 %v699, %v698
        %v710 = vunpack.c.l.b16 %v484
        %v711 = vunpack.c.l.b16 %v485
        %v712 = vpack.c.b16 %v711, %v710
        %vm714 = vcmask 130048
        %v716 = vsel %vm714, %v700, 0
        %v719 = vsel %vm714, %v701, 0
        %v722 = vsel %vm714, %v702, 0
        %v725 = vsel %vm714, %v703, 0
        %v728 = vsel %vm714, %v704, 0
        %v731 = vsel %vm714, %v705, 0
        %v734 = vsel %vm714, %v706, 0
        %v737 = vsel %vm714, %v707, 0
        %739 = vmatprep.subr.bf16.mxu0 0
        %740 = vmatpush1.bf16.msra.mxu0 %v712
        %741 = vmatprep.subr.bf16.mxu0 0
        %742 = vmatpush1.bf16.msra.mxu0 0
        %743 = vmatprep.subr.bf16.mxu0 0
        %744 = vmatpush1.bf16.msra.mxu0 0
        %745 = vmatprep.subr.bf16.mxu0 0
        %746 = vmatpush1.bf16.msra.mxu0 0
        %747 = vmatprep.subr.bf16.mxu0 0
        %748 = vmatpush1.bf16.msra.mxu0 0
        %749 = vmatprep.subr.bf16.mxu0 0
        %750 = vmatpush1.bf16.msra.mxu0 0
        %751 = vmatprep.subr.bf16.mxu0 0
        %752 = vmatpush1.bf16.msra.mxu0 0
        %753 = vmatprep.subr.bf16.mxu0 0
        %754 = vmatpush1.bf16.msra.mxu0 0
        %755 = vmatprep.subr.bf16.mxu0 0
        %756 = vmatpush1.bf16.msra.mxu0 0
        %757 = vmatprep.subr.bf16.mxu0 0
        %758 = vmatpush1.bf16.msra.mxu0 0
        %759 = vmatprep.subr.bf16.mxu0 0
        %760 = vmatpush1.bf16.msra.mxu0 0
        %761 = vmatprep.subr.bf16.mxu0 0
        %762 = vmatpush1.bf16.msra.mxu0 0
        %763 = vmatprep.subr.bf16.mxu0 0
        %764 = vmatpush1.bf16.msra.mxu0 0
        %765 = vmatprep.subr.bf16.mxu0 0
        %766 = vmatpush1.bf16.msra.mxu0 0
        %767 = vmatprep.subr.bf16.mxu0 0
        %768 = vmatpush1.bf16.msra.mxu0 0
        %769 = vmatprep.subr.bf16.mxu0 0
        %770 = vmatpush1.bf16.msra.mxu0 0
        %771 = vmatprep.mubr.bf16.mxu0 0
        %772 = vmatmul.mubr.bf16.gmra.mrb[0].mxu0 %v716
        %v773 = vpop.f32.mrb[0].mxu0
        %v774 = vadd.f32 0.0, %v773
        %v775 = vpop.f32.mrb[0].mxu0
        %v776 = vpop.f32.mrb[0].mxu0
        %v777 = vadd.f32 0.0, %v776
        %v778 = vpop.f32.mrb[0].mxu0
        %779 = vmatprep.mubr.bf16.mxu0 0
        %780 = vmatmul.mubr.bf16.gmra.mrb[0].mxu0 %v719
        %v781 = vpop.f32.mrb[0].mxu0
        %v782 = vadd.f32 0.0, %v781
        %v783 = vpop.f32.mrb[0].mxu0
        %v784 = vpop.f32.mrb[0].mxu0
        %v785 = vadd.f32 0.0, %v784
        %v786 = vpop.f32.mrb[0].mxu0
        %787 = vmatprep.mubr.bf16.mxu0 0
        %788 = vmatmul.mubr.bf16.gmra.mrb[0].mxu0 %v722
        %v789 = vpop.f32.mrb[0].mxu0
        %v790 = vadd.f32 0.0, %v789
        %v791 = vpop.f32.mrb[0].mxu0
        %v792 = vpop.f32.mrb[0].mxu0
        %v793 = vadd.f32 0.0, %v792
        %v794 = vpop.f32.mrb[0].mxu0
        %795 = vmatprep.mubr.bf16.mxu0 0
        %796 = vmatmul.mubr.bf16.gmra.mrb[0].mxu0 %v725
        %v797 = vpop.f32.mrb[0].mxu0
        %v798 = vadd.f32 0.0, %v797
        %v799 = vpop.f32.mrb[0].mxu0
        %v800 = vpop.f32.mrb[0].mxu0
        %v801 = vadd.f32 0.0, %v800
        %v802 = vpop.f32.mrb[0].mxu0
        %803 = vmatprep.mubr.bf16.mxu0 0
        %804 = vmatmul.mubr.bf16.gmra.mrb[0].mxu0 %v728
        %v805 = vpop.f32.mrb[0].mxu0
        %v806 = vadd.f32 0.0, %v805
        %v807 = vpop.f32.mrb[0].mxu0
        %v808 = vpop.f32.mrb[0].mxu0
        %v809 = vadd.f32 0.0, %v808
        %v810 = vpop.f32.mrb[0].mxu0
        %811 = vmatprep.mubr.bf16.mxu0 0
        %812 = vmatmul.mubr.bf16.gmra.mrb[0].mxu0 %v731
        %v813 = vpop.f32.mrb[0].mxu0
        %v814 = vadd.f32 0.0, %v813
        %v815 = vpop.f32.mrb[0].mxu0
        %v816 = vpop.f32.mrb[0].mxu0
        %v817 = vadd.f32 0.0, %v816
        %v818 = vpop.f32.mrb[0].mxu0
        %819 = vmatprep.mubr.bf16.mxu0 0
        %820 = vmatmul.mubr.bf16.gmra.mrb[0].mxu0 %v734
        %v821 = vpop.f32.mrb[0].mxu0
        %v822 = vadd.f32 0.0, %v821
        %v823 = vpop.f32.mrb[0].mxu0
        %v824 = vpop.f32.mrb[0].mxu0
        %v825 = vadd.f32 0.0, %v824
        %v826 = vpop.f32.mrb[0].mxu0
        %827 = vmatprep.mubr.bf16.mxu0 0
        %828 = vmatmul.mubr.bf16.gmra.mrb[0].mxu0 %v737
        %v829 = vpop.f32.mrb[0].mxu0
        %v830 = vadd.f32 0.0, %v829
        %v831 = vpop.f32.mrb[0].mxu0
        %v832 = vpop.f32.mrb[0].mxu0
        %v833 = vadd.f32 0.0, %v832
        %v834 = vpop.f32.mrb[0].mxu0
        %835 = vdwg.mxu0
        %v836 = vld [vmem:[%s4] sm:$0x7]
        %v837 = vlaneseq
        %v838 = vshrl.u32 %v837, 7
        %v839 = vsub.s32 0, %v838
        %v840 = vrot.slane %v488, %v839
        %842 = vbcast.lane.b32.xlu0 %v840, 256
        %v843 = vpop.permute.xlu0 %842
        %v844 = vlaneseq
        %v845 = vshrl.u32 %v844, 7
        %v846 = vsub.s32 1, %v845
        %v847 = vrot.slane %v488, %v846
        %849 = vbcast.lane.b32.xlu0 %v847, 256
        %v850 = vpop.permute.xlu0 %849
        %v851 = vlaneseq
        %v852 = vshrl.u32 %v851, 7
        %v853 = vsub.s32 2, %v852
        %v854 = vrot.slane %v488, %v853
        %856 = vbcast.lane.b32.xlu0 %v854, 256
        %v857 = vpop.permute.xlu0 %856
        %v858 = vlaneseq
        %v859 = vshrl.u32 %v858, 7
        %v860 = vsub.s32 3, %v859
        %v861 = vrot.slane %v488, %v860
        %863 = vbcast.lane.b32.xlu0 %v861, 256
        %v864 = vpop.permute.xlu0 %863
        %v865 = vlaneseq
        %v866 = vshrl.u32 %v865, 7
        %v867 = vsub.s32 4, %v866
        %v868 = vrot.slane %v488, %v867
        %870 = vbcast.lane.b32.xlu0 %v868, 256
        %v871 = vpop.permute.xlu0 %870
        %v872 = vlaneseq
        %v873 = vshrl.u32 %v872, 7
        %v874 = vsub.s32 5, %v873
        %v875 = vrot.slane %v488, %v874
        %877 = vbcast.lane.b32.xlu0 %v875, 256
        %v878 = vpop.permute.xlu0 %877
        %v879 = vlaneseq
        %v880 = vshrl.u32 %v879, 7
        %v881 = vsub.s32 6, %v880
        %v882 = vrot.slane %v488, %v881
        %884 = vbcast.lane.b32.xlu0 %v882, 256
        %v885 = vpop.permute.xlu0 %884
        %v886 = vlaneseq
        %v887 = vshrl.u32 %v886, 7
        %v888 = vsub.s32 7, %v887
        %v889 = vrot.slane %v488, %v888
        %891 = vbcast.lane.b32.xlu0 %v889, 256
        %v892 = vpop.permute.xlu0 %891
        %v893 = vlaneseq
        %v894 = vshrl.u32 %v893, 7
        %v895 = vsub.s32 0, %v894
        %v896 = vrot.slane %v489, %v895
        %898 = vbcast.lane.b32.xlu0 %v896, 256
        %v899 = vpop.permute.xlu0 %898
        %v900 = vlaneseq
        %v901 = vshrl.u32 %v900, 7
        %v902 = vsub.s32 1, %v901
        %v903 = vrot.slane %v489, %v902
        %905 = vbcast.lane.b32.xlu0 %v903, 256
        %v906 = vpop.permute.xlu0 %905
        %v907 = vlaneseq
        %v908 = vshrl.u32 %v907, 7
        %v909 = vsub.s32 2, %v908
        %v910 = vrot.slane %v489, %v909
        %912 = vbcast.lane.b32.xlu0 %v910, 256
        %v913 = vpop.permute.xlu0 %912
        %v914 = vlaneseq
        %v915 = vshrl.u32 %v914, 7
        %v916 = vsub.s32 3, %v915
        %v917 = vrot.slane %v489, %v916
        %919 = vbcast.lane.b32.xlu0 %v917, 256
        %v920 = vpop.permute.xlu0 %919
        %v921 = vlaneseq
        %v922 = vshrl.u32 %v921, 7
        %v923 = vsub.s32 4, %v922
        %v924 = vrot.slane %v489, %v923
        %926 = vbcast.lane.b32.xlu0 %v924, 256
        %v927 = vpop.permute.xlu0 %926
        %v928 = vlaneseq
        %v929 = vshrl.u32 %v928, 7
        %v930 = vsub.s32 5, %v929
        %v931 = vrot.slane %v489, %v930
        %933 = vbcast.lane.b32.xlu0 %v931, 256
        %v934 = vpop.permute.xlu0 %933
        %v935 = vlaneseq
        %v936 = vshrl.u32 %v935, 7
        %v937 = vsub.s32 6, %v936
        %v938 = vrot.slane %v489, %v937
        %940 = vbcast.lane.b32.xlu0 %v938, 256
        %v941 = vpop.permute.xlu0 %940
        %v942 = vlaneseq
        %v943 = vshrl.u32 %v942, 7
        %v944 = vsub.s32 7, %v943
        %v945 = vrot.slane %v489, %v944
        %947 = vbcast.lane.b32.xlu0 %v945, 256
        %v948 = vpop.permute.xlu0 %947
        %v949 = vlaneseq
        %v950 = vshrl.u32 %v949, 7
        %v951 = vsub.s32 0, %v950
        %v952 = vrot.slane %v836, %v951
        %v953 = vmul.f32 %v843, %v952
        %v954 = vmul.f32 %v850, %v952
        %v955 = vmul.f32 %v857, %v952
        %v956 = vmul.f32 %v864, %v952
        %v957 = vmul.f32 %v871, %v952
        %v958 = vmul.f32 %v878, %v952
        %v959 = vmul.f32 %v885, %v952
        %v960 = vmul.f32 %v892, %v952
        %v961 = vmul.f32 %v899, %v952
        %v962 = vmul.f32 %v906, %v952
        %v963 = vmul.f32 %v913, %v952
        %v964 = vmul.f32 %v920, %v952
        %v965 = vmul.f32 %v927, %v952
        %v966 = vmul.f32 %v934, %v952
        %v967 = vmul.f32 %v941, %v952
        %v968 = vmul.f32 %v948, %v952
        %s970 = sor.u32 256, 8
        %971 = vbcast.lane.b32.xlu0 %v840, %s970
        %v972 = vpop.permute.xlu0 %971
        %s974 = sor.u32 256, 8
        %975 = vbcast.lane.b32.xlu0 %v847, %s974
        %v976 = vpop.permute.xlu0 %975
        %s978 = sor.u32 256, 8
        %979 = vbcast.lane.b32.xlu0 %v854, %s978
        %v980 = vpop.permute.xlu0 %979
        %s982 = sor.u32 256, 8
        %983 = vbcast.lane.b32.xlu0 %v861, %s982
        %v984 = vpop.permute.xlu0 %983
        %s986 = sor.u32 256, 8
        %987 = vbcast.lane.b32.xlu0 %v868, %s986
        %v988 = vpop.permute.xlu0 %987
        %s990 = sor.u32 256, 8
        %991 = vbcast.lane.b32.xlu0 %v875, %s990
        %v992 = vpop.permute.xlu0 %991
        %s994 = sor.u32 256, 8
        %995 = vbcast.lane.b32.xlu0 %v882, %s994
        %v996 = vpop.permute.xlu0 %995
        %s998 = sor.u32 256, 8
        %999 = vbcast.lane.b32.xlu0 %v889, %s998
        %v1000 = vpop.permute.xlu0 %999
        %s1002 = sor.u32 256, 8
        %1003 = vbcast.lane.b32.xlu0 %v896, %s1002
        %v1004 = vpop.permute.xlu0 %1003
        %s1006 = sor.u32 256, 8
        %1007 = vbcast.lane.b32.xlu0 %v903, %s1006
        %v1008 = vpop.permute.xlu0 %1007
        %s1010 = sor.u32 256, 8
        %1011 = vbcast.lane.b32.xlu0 %v910, %s1010
        %v1012 = vpop.permute.xlu0 %1011
        %s1014 = sor.u32 256, 8
        %1015 = vbcast.lane.b32.xlu0 %v917, %s1014
        %v1016 = vpop.permute.xlu0 %1015
        %s1018 = sor.u32 256, 8
        %1019 = vbcast.lane.b32.xlu0 %v924, %s1018
        %v1020 = vpop.permute.xlu0 %1019
        %s1022 = sor.u32 256, 8
        %1023 = vbcast.lane.b32.xlu0 %v931, %s1022
        %v1024 = vpop.permute.xlu0 %1023
        %s1026 = sor.u32 256, 8
        %1027 = vbcast.lane.b32.xlu0 %v938, %s1026
        %v1028 = vpop.permute.xlu0 %1027
        %s1030 = sor.u32 256, 8
        %1031 = vbcast.lane.b32.xlu0 %v945, %s1030
        %v1032 = vpop.permute.xlu0 %1031
        %v1033 = vlaneseq
        %v1034 = vshrl.u32 %v1033, 7
        %v1035 = vsub.s32 1, %v1034
        %v1036 = vrot.slane %v836, %v1035
        %v1037 = vmul.f32 %v972, %v1036
        %v1038 = vmul.f32 %v976, %v1036
        %v1039 = vmul.f32 %v980, %v1036
        %v1040 = vmul.f32 %v984, %v1036
        %v1041 = vmul.f32 %v988, %v1036
        %v1042 = vmul.f32 %v992, %v1036
        %v1043 = vmul.f32 %v996, %v1036
        %v1044 = vmul.f32 %v1000, %v1036
        %v1045 = vmul.f32 %v1004, %v1036
        %v1046 = vmul.f32 %v1008, %v1036
        %v1047 = vmul.f32 %v1012, %v1036
        %v1048 = vmul.f32 %v1016, %v1036
        %v1049 = vmul.f32 %v1020, %v1036
        %v1050 = vmul.f32 %v1024, %v1036
        %v1051 = vmul.f32 %v1028, %v1036
        %v1052 = vmul.f32 %v1032, %v1036
        %v1053 = vadd.f32 %v953, %v1037
        %v1054 = vadd.f32 %v954, %v1038
        %v1055 = vadd.f32 %v955, %v1039
        %v1056 = vadd.f32 %v956, %v1040
        %v1057 = vadd.f32 %v957, %v1041
        %v1058 = vadd.f32 %v958, %v1042
        %v1059 = vadd.f32 %v959, %v1043
        %v1060 = vadd.f32 %v960, %v1044
        %v1061 = vadd.f32 %v961, %v1045
        %v1062 = vadd.f32 %v962, %v1046
        %v1063 = vadd.f32 %v963, %v1047
        %v1064 = vadd.f32 %v964, %v1048
        %v1065 = vadd.f32 %v965, %v1049
        %v1066 = vadd.f32 %v966, %v1050
        %v1067 = vadd.f32 %v967, %v1051
        %v1068 = vadd.f32 %v968, %v1052
        %s1070 = sor.u32 256, 16
        %1071 = vbcast.lane.b32.xlu0 %v840, %s1070
        %v1072 = vpop.permute.xlu0 %1071
        %s1074 = sor.u32 256, 16
        %1075 = vbcast.lane.b32.xlu0 %v847, %s1074
        %v1076 = vpop.permute.xlu0 %1075
        %s1078 = sor.u32 256, 16
        %1079 = vbcast.lane.b32.xlu0 %v854, %s1078
        %v1080 = vpop.permute.xlu0 %1079
        %s1082 = sor.u32 256, 16
        %1083 = vbcast.lane.b32.xlu0 %v861, %s1082
        %v1084 = vpop.permute.xlu0 %1083
        %s1086 = sor.u32 256, 16
        %1087 = vbcast.lane.b32.xlu0 %v868, %s1086
        %v1088 = vpop.permute.xlu0 %1087
        %s1090 = sor.u32 256, 16
        %1091 = vbcast.lane.b32.xlu0 %v875, %s1090
        %v1092 = vpop.permute.xlu0 %1091
        %s1094 = sor.u32 256, 16
        %1095 = vbcast.lane.b32.xlu0 %v882, %s1094
        %v1096 = vpop.permute.xlu0 %1095
        %s1098 = sor.u32 256, 16
        %1099 = vbcast.lane.b32.xlu0 %v889, %s1098
        %v1100 = vpop.permute.xlu0 %1099
        %s1102 = sor.u32 256, 16
        %1103 = vbcast.lane.b32.xlu0 %v896, %s1102
        %v1104 = vpop.permute.xlu0 %1103
        %s1106 = sor.u32 256, 16
        %1107 = vbcast.lane.b32.xlu0 %v903, %s1106
        %v1108 = vpop.permute.xlu0 %1107
        %s1110 = sor.u32 256, 16
        %1111 = vbcast.lane.b32.xlu0 %v910, %s1110
        %v1112 = vpop.permute.xlu0 %1111
        %s1114 = sor.u32 256, 16
        %1115 = vbcast.lane.b32.xlu0 %v917, %s1114
        %v1116 = vpop.permute.xlu0 %1115
        %s1118 = sor.u32 256, 16
        %1119 = vbcast.lane.b32.xlu0 %v924, %s1118
        %v1120 = vpop.permute.xlu0 %1119
        %s1122 = sor.u32 256, 16
        %1123 = vbcast.lane.b32.xlu0 %v931, %s1122
        %v1124 = vpop.permute.xlu0 %1123
        %s1126 = sor.u32 256, 16
        %1127 = vbcast.lane.b32.xlu0 %v938, %s1126
        %v1128 = vpop.permute.xlu0 %1127
        %s1130 = sor.u32 256, 16
        %1131 = vbcast.lane.b32.xlu0 %v945, %s1130
        %v1132 = vpop.permute.xlu0 %1131
        %v1133 = vlaneseq
        %v1134 = vshrl.u32 %v1133, 7
        %v1135 = vsub.s32 2, %v1134
        %v1136 = vrot.slane %v836, %v1135
        %v1137 = vmul.f32 %v1072, %v1136
        %v1138 = vmul.f32 %v1076, %v1136
        %v1139 = vmul.f32 %v1080, %v1136
        %v1140 = vmul.f32 %v1084, %v1136
        %v1141 = vmul.f32 %v1088, %v1136
        %v1142 = vmul.f32 %v1092, %v1136
        %v1143 = vmul.f32 %v1096, %v1136
        %v1144 = vmul.f32 %v1100, %v1136
        %v1145 = vmul.f32 %v1104, %v1136
        %v1146 = vmul.f32 %v1108, %v1136
        %v1147 = vmul.f32 %v1112, %v1136
        %v1148 = vmul.f32 %v1116, %v1136
        %v1149 = vmul.f32 %v1120, %v1136
        %v1150 = vmul.f32 %v1124, %v1136
        %v1151 = vmul.f32 %v1128, %v1136
        %v1152 = vmul.f32 %v1132, %v1136
        %v1153 = vadd.f32 %v1053, %v1137
        %v1154 = vadd.f32 %v1054, %v1138
        %v1155 = vadd.f32 %v1055, %v1139
        %v1156 = vadd.f32 %v1056, %v1140
        %v1157 = vadd.f32 %v1057, %v1141
        %v1158 = vadd.f32 %v1058, %v1142
        %v1159 = vadd.f32 %v1059, %v1143
        %v1160 = vadd.f32 %v1060, %v1144
        %v1161 = vadd.f32 %v1061, %v1145
        %v1162 = vadd.f32 %v1062, %v1146
        %v1163 = vadd.f32 %v1063, %v1147
        %v1164 = vadd.f32 %v1064, %v1148
        %v1165 = vadd.f32 %v1065, %v1149
        %v1166 = vadd.f32 %v1066, %v1150
        %v1167 = vadd.f32 %v1067, %v1151
        %v1168 = vadd.f32 %v1068, %v1152
        %v1169 = vld [vmem:[%s5] sm:$0x1]
        %v1171 = vlaneseq
        %v1172 = vshrl.u32 %v1171, 7
        %v1173 = vsub.s32 0, %v1172
        %v1174 = vrot.slane %v1169, %v1173
        %v1176 = vadd.f32 %v1153, %v1174
        %v1177 = vadd.f32 %v1154, %v1174
        %v1178 = vadd.f32 %v1155, %v1174
        %v1179 = vadd.f32 %v1156, %v1174
        %v1180 = vadd.f32 %v1157, %v1174
        %v1181 = vadd.f32 %v1158, %v1174
        %v1182 = vadd.f32 %v1159, %v1174
        %v1183 = vadd.f32 %v1160, %v1174
        %v1184 = vadd.f32 %v1161, %v1174
        %v1185 = vadd.f32 %v1162, %v1174
        %v1186 = vadd.f32 %v1163, %v1174
        %v1187 = vadd.f32 %v1164, %v1174
        %v1188 = vadd.f32 %v1165, %v1174
        %v1189 = vadd.f32 %v1166, %v1174
        %v1190 = vadd.f32 %v1167, %v1174
        %v1191 = vadd.f32 %v1168, %v1174
        %v1192 = vmax.f32 %v1176, 0.0
        %v1193 = vmax.f32 %v1177, 0.0
        %v1194 = vmax.f32 %v1178, 0.0
        %v1195 = vmax.f32 %v1179, 0.0
        %v1196 = vmax.f32 %v1180, 0.0
        %v1197 = vmax.f32 %v1181, 0.0
        %v1198 = vmax.f32 %v1182, 0.0
        %v1199 = vmax.f32 %v1183, 0.0
        %v1200 = vmax.f32 %v1184, 0.0
        %v1201 = vmax.f32 %v1185, 0.0
        %v1202 = vmax.f32 %v1186, 0.0
        %v1203 = vmax.f32 %v1187, 0.0
        %v1204 = vmax.f32 %v1188, 0.0
        %v1205 = vmax.f32 %v1189, 0.0
        %v1206 = vmax.f32 %v1190, 0.0
        %v1207 = vmax.f32 %v1191, 0.0
        %v1208 = vmul.f32 %v482, 4.0
        %v1209 = vmul.f32 %v483, 4.0
        %v1212 = vcombine.high %v482, %v482
        %v1214 = vunpack.c.l.s4 1966171168
        %v1215 = vunpack.c.0.s8 %v1214
        %v1216 = vlaneseq
        %v1217 = vshrl.u32 %v1216, 7
        %v1218 = vsub.s32 %v1215, %v1217
        %v1219 = vrot.slane %v482, %v1218
        %v1221 = vunpack.c.l.s4 1966171168
        %v1222 = vunpack.c.0.s8 %v1221
        %v1223 = vlaneseq
        %v1224 = vshrl.u32 %v1223, 7
        %v1225 = vsub.s32 %v1222, %v1224
        %v1226 = vrot.slane %v1212, %v1225
        %v1227 = vcombine.high %v1219, %v1219
        %v1228 = vcombine.high %v1226, %v1226
        %v1230 = vunpack.c.l.s4 1966171168
        %v1231 = vunpack.c.0.s8 %v1230
        %v1232 = vlaneseq
        %v1233 = vshrl.u32 %v1232, 7
        %v1234 = vsub.s32 %v1231, %v1233
        %v1235 = vrot.slane %v1219, %v1234
        %v1237 = vunpack.c.l.s4 1966171168
        %v1238 = vunpack.c.0.s8 %v1237
        %v1239 = vlaneseq
        %v1240 = vshrl.u32 %v1239, 7
        %v1241 = vsub.s32 %v1238, %v1240
        %v1242 = vrot.slane %v1226, %v1241
        %v1244 = vunpack.c.l.s4 1966171168
        %v1245 = vunpack.c.0.s8 %v1244
        %v1246 = vlaneseq
        %v1247 = vshrl.u32 %v1246, 7
        %v1248 = vsub.s32 %v1245, %v1247
        %v1249 = vrot.slane %v1227, %v1248
        %v1251 = vunpack.c.l.s4 1966171168
        %v1252 = vunpack.c.0.s8 %v1251
        %v1253 = vlaneseq
        %v1254 = vshrl.u32 %v1253, 7
        %v1255 = vsub.s32 %v1252, %v1254
        %v1256 = vrot.slane %v1228, %v1255
        %v1257 = vcombine.high %v1235, %v1235
        %v1258 = vcombine.high %v1242, %v1242
        %v1259 = vcombine.high %v1249, %v1249
        %v1260 = vcombine.high %v1256, %v1256
        %v1261 = vcombine.high %v483, %v483
        %v1263 = vunpack.c.l.s4 1966171168
        %v1264 = vunpack.c.0.s8 %v1263
        %v1265 = vlaneseq
        %v1266 = vshrl.u32 %v1265, 7
        %v1267 = vsub.s32 %v1264, %v1266
        %v1268 = vrot.slane %v483, %v1267
        %v1270 = vunpack.c.l.s4 1966171168
        %v1271 = vunpack.c.0.s8 %v1270
        %v1272 = vlaneseq
        %v1273 = vshrl.u32 %v1272, 7
        %v1274 = vsub.s32 %v1271, %v1273
        %v1275 = vrot.slane %v1261, %v1274
        %v1276 = vcombine.high %v1268, %v1268
        %v1277 = vcombine.high %v1275, %v1275
        %v1279 = vunpack.c.l.s4 1966171168
        %v1280 = vunpack.c.0.s8 %v1279
        %v1281 = vlaneseq
        %v1282 = vshrl.u32 %v1281, 7
        %v1283 = vsub.s32 %v1280, %v1282
        %v1284 = vrot.slane %v1268, %v1283
        %v1286 = vunpack.c.l.s4 1966171168
        %v1287 = vunpack.c.0.s8 %v1286
        %v1288 = vlaneseq
        %v1289 = vshrl.u32 %v1288, 7
        %v1290 = vsub.s32 %v1287, %v1289
        %v1291 = vrot.slane %v1275, %v1290
        %v1293 = vunpack.c.l.s4 1966171168
        %v1294 = vunpack.c.0.s8 %v1293
        %v1295 = vlaneseq
        %v1296 = vshrl.u32 %v1295, 7
        %v1297 = vsub.s32 %v1294, %v1296
        %v1298 = vrot.slane %v1276, %v1297
        %v1300 = vunpack.c.l.s4 1966171168
        %v1301 = vunpack.c.0.s8 %v1300
        %v1302 = vlaneseq
        %v1303 = vshrl.u32 %v1302, 7
        %v1304 = vsub.s32 %v1301, %v1303
        %v1305 = vrot.slane %v1277, %v1304
        %v1306 = vcombine.high %v1284, %v1284
        %v1307 = vcombine.high %v1291, %v1291
        %v1308 = vcombine.high %v1298, %v1298
        %v1309 = vcombine.high %v1305, %v1305
        %v1310 = vlaneseq
        %v1311 = vshrl.u32 %v1310, 7
        %v1312 = vsub.s32 0, %v1311
        %v1313 = vrot.slane %v1235, %v1312
        %v1314 = vlaneseq
        %v1315 = vshrl.u32 %v1314, 7
        %v1316 = vsub.s32 0, %v1315
        %v1317 = vrot.slane %v1249, %v1316
        %v1318 = vlaneseq
        %v1319 = vshrl.u32 %v1318, 7
        %v1320 = vsub.s32 0, %v1319
        %v1321 = vrot.slane %v1257, %v1320
        %v1322 = vlaneseq
        %v1323 = vshrl.u32 %v1322, 7
        %v1324 = vsub.s32 0, %v1323
        %v1325 = vrot.slane %v1259, %v1324
        %v1326 = vlaneseq
        %v1327 = vshrl.u32 %v1326, 7
        %v1328 = vsub.s32 0, %v1327
        %v1329 = vrot.slane %v1242, %v1328
        %v1330 = vlaneseq
        %v1331 = vshrl.u32 %v1330, 7
        %v1332 = vsub.s32 0, %v1331
        %v1333 = vrot.slane %v1256, %v1332
        %v1334 = vlaneseq
        %v1335 = vshrl.u32 %v1334, 7
        %v1336 = vsub.s32 0, %v1335
        %v1337 = vrot.slane %v1258, %v1336
        %v1338 = vlaneseq
        %v1339 = vshrl.u32 %v1338, 7
        %v1340 = vsub.s32 0, %v1339
        %v1341 = vrot.slane %v1260, %v1340
        %v1342 = vlaneseq
        %v1343 = vshrl.u32 %v1342, 7
        %v1344 = vsub.s32 0, %v1343
        %v1345 = vrot.slane %v1284, %v1344
        %v1346 = vlaneseq
        %v1347 = vshrl.u32 %v1346, 7
        %v1348 = vsub.s32 0, %v1347
        %v1349 = vrot.slane %v1298, %v1348
        %v1350 = vlaneseq
        %v1351 = vshrl.u32 %v1350, 7
        %v1352 = vsub.s32 0, %v1351
        %v1353 = vrot.slane %v1306, %v1352
        %v1354 = vlaneseq
        %v1355 = vshrl.u32 %v1354, 7
        %v1356 = vsub.s32 0, %v1355
        %v1357 = vrot.slane %v1308, %v1356
        %v1358 = vlaneseq
        %v1359 = vshrl.u32 %v1358, 7
        %v1360 = vsub.s32 0, %v1359
        %v1361 = vrot.slane %v1291, %v1360
        %v1362 = vlaneseq
        %v1363 = vshrl.u32 %v1362, 7
        %v1364 = vsub.s32 0, %v1363
        %v1365 = vrot.slane %v1305, %v1364
        %v1366 = vlaneseq
        %v1367 = vshrl.u32 %v1366, 7
        %v1368 = vsub.s32 0, %v1367
        %v1369 = vrot.slane %v1307, %v1368
        %v1370 = vlaneseq
        %v1371 = vshrl.u32 %v1370, 7
        %v1372 = vsub.s32 0, %v1371
        %v1373 = vrot.slane %v1309, %v1372
        %v1390 = vmul.f32 %v1313, %v774
        %v1391 = vmul.f32 %v1317, %v777
        %v1392 = vmul.f32 %v1321, %v782
        %v1393 = vmul.f32 %v1325, %v785
        %v1394 = vmul.f32 %v1329, %v790
        %v1395 = vmul.f32 %v1333, %v793
        %v1396 = vmul.f32 %v1337, %v798
        %v1397 = vmul.f32 %v1341, %v801
        %v1398 = vmul.f32 %v1345, %v806
        %v1399 = vmul.f32 %v1349, %v809
        %v1400 = vmul.f32 %v1353, %v814
        %v1401 = vmul.f32 %v1357, %v817
        %v1402 = vmul.f32 %v1361, %v822
        %v1403 = vmul.f32 %v1365, %v825
        %v1404 = vmul.f32 %v1369, %v830
        %v1405 = vmul.f32 %v1373, %v833
        %v1408 = vcombine.high %v1208, %v1208
        %v1410 = vunpack.c.l.s4 1966171168
        %v1411 = vunpack.c.0.s8 %v1410
        %v1412 = vlaneseq
        %v1413 = vshrl.u32 %v1412, 7
        %v1414 = vsub.s32 %v1411, %v1413
        %v1415 = vrot.slane %v1208, %v1414
        %v1417 = vunpack.c.l.s4 1966171168
        %v1418 = vunpack.c.0.s8 %v1417
        %v1419 = vlaneseq
        %v1420 = vshrl.u32 %v1419, 7
        %v1421 = vsub.s32 %v1418, %v1420
        %v1422 = vrot.slane %v1408, %v1421
        %v1423 = vcombine.high %v1415, %v1415
        %v1424 = vcombine.high %v1422, %v1422
        %v1426 = vunpack.c.l.s4 1966171168
        %v1427 = vunpack.c.0.s8 %v1426
        %v1428 = vlaneseq
        %v1429 = vshrl.u32 %v1428, 7
        %v1430 = vsub.s32 %v1427, %v1429
        %v1431 = vrot.slane %v1415, %v1430
        %v1433 = vunpack.c.l.s4 1966171168
        %v1434 = vunpack.c.0.s8 %v1433
        %v1435 = vlaneseq
        %v1436 = vshrl.u32 %v1435, 7
        %v1437 = vsub.s32 %v1434, %v1436
        %v1438 = vrot.slane %v1422, %v1437
        %v1440 = vunpack.c.l.s4 1966171168
        %v1441 = vunpack.c.0.s8 %v1440
        %v1442 = vlaneseq
        %v1443 = vshrl.u32 %v1442, 7
        %v1444 = vsub.s32 %v1441, %v1443
        %v1445 = vrot.slane %v1423, %v1444
        %v1447 = vunpack.c.l.s4 1966171168
        %v1448 = vunpack.c.0.s8 %v1447
        %v1449 = vlaneseq
        %v1450 = vshrl.u32 %v1449, 7
        %v1451 = vsub.s32 %v1448, %v1450
        %v1452 = vrot.slane %v1424, %v1451
        %v1453 = vcombine.high %v1431, %v1431
        %v1454 = vcombine.high %v1438, %v1438
        %v1455 = vcombine.high %v1445, %v1445
        %v1456 = vcombine.high %v1452, %v1452
        %v1457 = vcombine.high %v1209, %v1209
        %v1459 = vunpack.c.l.s4 1966171168
        %v1460 = vunpack.c.0.s8 %v1459
        %v1461 = vlaneseq
        %v1462 = vshrl.u32 %v1461, 7
        %v1463 = vsub.s32 %v1460, %v1462
        %v1464 = vrot.slane %v1209, %v1463
        %v1466 = vunpack.c.l.s4 1966171168
        %v1467 = vunpack.c.0.s8 %v1466
        %v1468 = vlaneseq
        %v1469 = vshrl.u32 %v1468, 7
        %v1470 = vsub.s32 %v1467, %v1469
        %v1471 = vrot.slane %v1457, %v1470
        %v1472 = vcombine.high %v1464, %v1464
        %v1473 = vcombine.high %v1471, %v1471
        %v1475 = vunpack.c.l.s4 1966171168
        %v1476 = vunpack.c.0.s8 %v1475
        %v1477 = vlaneseq
        %v1478 = vshrl.u32 %v1477, 7
        %v1479 = vsub.s32 %v1476, %v1478
        %v1480 = vrot.slane %v1464, %v1479
        %v1482 = vunpack.c.l.s4 1966171168
        %v1483 = vunpack.c.0.s8 %v1482
        %v1484 = vlaneseq
        %v1485 = vshrl.u32 %v1484, 7
        %v1486 = vsub.s32 %v1483, %v1485
        %v1487 = vrot.slane %v1471, %v1486
        %v1489 = vunpack.c.l.s4 1966171168
        %v1490 = vunpack.c.0.s8 %v1489
        %v1491 = vlaneseq
        %v1492 = vshrl.u32 %v1491, 7
        %v1493 = vsub.s32 %v1490, %v1492
        %v1494 = vrot.slane %v1472, %v1493
        %v1496 = vunpack.c.l.s4 1966171168
        %v1497 = vunpack.c.0.s8 %v1496
        %v1498 = vlaneseq
        %v1499 = vshrl.u32 %v1498, 7
        %v1500 = vsub.s32 %v1497, %v1499
        %v1501 = vrot.slane %v1473, %v1500
        %v1502 = vcombine.high %v1480, %v1480
        %v1503 = vcombine.high %v1487, %v1487
        %v1504 = vcombine.high %v1494, %v1494
        %v1505 = vcombine.high %v1501, %v1501
        %v1506 = vlaneseq
        %v1507 = vshrl.u32 %v1506, 7
        %v1508 = vsub.s32 0, %v1507
        %v1509 = vrot.slane %v1431, %v1508
        %v1510 = vlaneseq
        %v1511 = vshrl.u32 %v1510, 7
        %v1512 = vsub.s32 0, %v1511
        %v1513 = vrot.slane %v1445, %v1512
        %v1514 = vlaneseq
        %v1515 = vshrl.u32 %v1514, 7
        %v1516 = vsub.s32 0, %v1515
        %v1517 = vrot.slane %v1453, %v1516
        %v1518 = vlaneseq
        %v1519 = vshrl.u32 %v1518, 7
        %v1520 = vsub.s32 0, %v1519
        %v1521 = vrot.slane %v1455, %v1520
        %v1522 = vlaneseq
        %v1523 = vshrl.u32 %v1522, 7
        %v1524 = vsub.s32 0, %v1523
        %v1525 = vrot.slane %v1438, %v1524
        %v1526 = vlaneseq
        %v1527 = vshrl.u32 %v1526, 7
        %v1528 = vsub.s32 0, %v1527
        %v1529 = vrot.slane %v1452, %v1528
        %v1530 = vlaneseq
        %v1531 = vshrl.u32 %v1530, 7
        %v1532 = vsub.s32 0, %v1531
        %v1533 = vrot.slane %v1454, %v1532
        %v1534 = vlaneseq
        %v1535 = vshrl.u32 %v1534, 7
        %v1536 = vsub.s32 0, %v1535
        %v1537 = vrot.slane %v1456, %v1536
        %v1538 = vlaneseq
        %v1539 = vshrl.u32 %v1538, 7
        %v1540 = vsub.s32 0, %v1539
        %v1541 = vrot.slane %v1480, %v1540
        %v1542 = vlaneseq
        %v1543 = vshrl.u32 %v1542, 7
        %v1544 = vsub.s32 0, %v1543
        %v1545 = vrot.slane %v1494, %v1544
        %v1546 = vlaneseq
        %v1547 = vshrl.u32 %v1546, 7
        %v1548 = vsub.s32 0, %v1547
        %v1549 = vrot.slane %v1502, %v1548
        %v1550 = vlaneseq
        %v1551 = vshrl.u32 %v1550, 7
        %v1552 = vsub.s32 0, %v1551
        %v1553 = vrot.slane %v1504, %v1552
        %v1554 = vlaneseq
        %v1555 = vshrl.u32 %v1554, 7
        %v1556 = vsub.s32 0, %v1555
        %v1557 = vrot.slane %v1487, %v1556
        %v1558 = vlaneseq
        %v1559 = vshrl.u32 %v1558, 7
        %v1560 = vsub.s32 0, %v1559
        %v1561 = vrot.slane %v1501, %v1560
        %v1562 = vlaneseq
        %v1563 = vshrl.u32 %v1562, 7
        %v1564 = vsub.s32 0, %v1563
        %v1565 = vrot.slane %v1503, %v1564
        %v1566 = vlaneseq
        %v1567 = vshrl.u32 %v1566, 7
        %v1568 = vsub.s32 0, %v1567
        %v1569 = vrot.slane %v1505, %v1568
        %v1586 = vmul.f32 %v1509, %v1192
        %v1587 = vmul.f32 %v1513, %v1193
        %v1588 = vmul.f32 %v1517, %v1194
        %v1589 = vmul.f32 %v1521, %v1195
        %v1590 = vmul.f32 %v1525, %v1196
        %v1591 = vmul.f32 %v1529, %v1197
        %v1592 = vmul.f32 %v1533, %v1198
        %v1593 = vmul.f32 %v1537, %v1199
        %v1594 = vmul.f32 %v1541, %v1200
        %v1595 = vmul.f32 %v1545, %v1201
        %v1596 = vmul.f32 %v1549, %v1202
        %v1597 = vmul.f32 %v1553, %v1203
        %v1598 = vmul.f32 %v1557, %v1204
        %v1599 = vmul.f32 %v1561, %v1205
        %v1600 = vmul.f32 %v1565, %v1206
        %v1601 = vmul.f32 %v1569, %v1207
        %v1602 = vadd.f32 %v1390, %v1586
        %v1603 = vadd.f32 %v1391, %v1587
        %v1604 = vadd.f32 %v1392, %v1588
        %v1605 = vadd.f32 %v1393, %v1589
        %v1606 = vadd.f32 %v1394, %v1590
        %v1607 = vadd.f32 %v1395, %v1591
        %v1608 = vadd.f32 %v1396, %v1592
        %v1609 = vadd.f32 %v1397, %v1593
        %v1610 = vadd.f32 %v1398, %v1594
        %v1611 = vadd.f32 %v1399, %v1595
        %v1612 = vadd.f32 %v1400, %v1596
        %v1613 = vadd.f32 %v1401, %v1597
        %v1614 = vadd.f32 %v1402, %v1598
        %v1615 = vadd.f32 %v1403, %v1599
        %v1616 = vadd.f32 %v1404, %v1600
        %v1617 = vadd.f32 %v1405, %v1601
        %v1618 = vld [vmem:[%s6] sm:$0xff]
        %v1619 = vld [vmem:[%s6 + $0x8] sm:$0xff]
        %v1620 = vld [vmem:[%s6 + $0x10] sm:$0xff]
        %v1621 = vld [vmem:[%s6 + $0x18] sm:$0xff]
        %v1622 = vld [vmem:[%s6 + $0x20] sm:$0xff]
        %v1623 = vld [vmem:[%s6 + $0x28] sm:$0xff]
        %v1624 = vld [vmem:[%s6 + $0x30] sm:$0xff]
        %v1625 = vld [vmem:[%s6 + $0x38] sm:$0xff]
        %vm1626 = vcmask 523264
        %v1628 = vsel %vm1626, %v1602, 0
        %v1631 = vsel %vm1626, %v1603, 0
        %v1634 = vsel %vm1626, %v1604, 0
        %v1637 = vsel %vm1626, %v1605, 0
        %v1640 = vsel %vm1626, %v1606, 0
        %v1643 = vsel %vm1626, %v1607, 0
        %v1646 = vsel %vm1626, %v1608, 0
        %v1649 = vsel %vm1626, %v1609, 0
        %v1652 = vsel %vm1626, %v1610, 0
        %v1655 = vsel %vm1626, %v1611, 0
        %v1658 = vsel %vm1626, %v1612, 0
        %v1661 = vsel %vm1626, %v1613, 0
        %v1664 = vsel %vm1626, %v1614, 0
        %v1667 = vsel %vm1626, %v1615, 0
        %v1670 = vsel %vm1626, %v1616, 0
        %v1673 = vsel %vm1626, %v1617, 0
        %1675 = vmatprep.subr.mxu0 0.0
        %1676 = vmatpush1.msra.mxu0 %v1618
        %1677 = vmatprep.subr.mxu0 0.0
        %1678 = vmatpush1.msra.mxu0 %v1619
        %1679 = vmatprep.subr.mxu0 0.0
        %1680 = vmatpush1.msra.mxu0 %v1620
        %1681 = vmatprep.subr.mxu0 0.0
        %1682 = vmatpush1.msra.mxu0 %v1621
        %1683 = vmatprep.subr.mxu0 0.0
        %1684 = vmatpush1.msra.mxu0 %v1622
        %1685 = vmatprep.subr.mxu0 0.0
        %1686 = vmatpush1.msra.mxu0 %v1623
        %1687 = vmatprep.subr.mxu0 0.0
        %1688 = vmatpush1.msra.mxu0 %v1624
        %1689 = vmatprep.subr.mxu0 0.0
        %1690 = vmatpush1.msra.mxu0 %v1625
        %1691 = vmatprep.subr.mxu0 0.0
        %1692 = vmatpush1.msra.mxu0 0.0
        %1693 = vmatprep.subr.mxu0 0.0
        %1694 = vmatpush1.msra.mxu0 0.0
        %1695 = vmatprep.subr.mxu0 0.0
        %1696 = vmatpush1.msra.mxu0 0.0
        %1697 = vmatprep.subr.mxu0 0.0
        %1698 = vmatpush1.msra.mxu0 0.0
        %1699 = vmatprep.subr.mxu0 0.0
        %1700 = vmatpush1.msra.mxu0 0.0
        %1701 = vmatprep.subr.mxu0 0.0
        %1702 = vmatpush1.msra.mxu0 0.0
        %1703 = vmatprep.subr.mxu0 0.0
        %1704 = vmatpush1.msra.mxu0 0.0
        %1705 = vmatprep.subr.mxu0 0.0
        %1706 = vmatpush1.msra.mxu0 0.0
        %1707 = vmatprep.subr.mxu0 0.0
        %1708 = vmatpush1.msra.mxu0 0.0
        %1709 = vmatprep.subr.mxu0 0.0
        %1710 = vmatpush1.msra.mxu0 0.0
        %1711 = vmatprep.subr.mxu0 0.0
        %1712 = vmatpush1.msra.mxu0 0.0
        %1713 = vmatprep.subr.mxu0 0.0
        %1714 = vmatpush1.msra.mxu0 0.0
        %1715 = vmatprep.subr.mxu0 0.0
        %1716 = vmatpush1.msra.mxu0 0.0
        %1717 = vmatprep.subr.mxu0 0.0
        %1718 = vmatpush1.msra.mxu0 0.0
        %1719 = vmatprep.subr.mxu0 0.0
        %1720 = vmatpush1.msra.mxu0 0.0
        %1721 = vmatprep.subr.mxu0 0.0
        %1722 = vmatpush1.msra.mxu0 0.0
        %1723 = vmatprep.subr.mxu0 0.0
        %1724 = vmatpush1.msra.mxu0 0.0
        %1725 = vmatprep.subr.mxu0 0.0
        %1726 = vmatpush1.msra.mxu0 0.0
        %1727 = vmatprep.subr.mxu0 0.0
        %1728 = vmatpush1.msra.mxu0 0.0
        %1729 = vmatprep.subr.mxu0 0.0
        %1730 = vmatpush1.msra.mxu0 0.0
        %1731 = vmatprep.subr.mxu0 0.0
        %1732 = vmatpush1.msra.mxu0 0.0
        %1733 = vmatprep.subr.mxu0 0.0
        %1734 = vmatpush1.msra.mxu0 0.0
        %1735 = vmatprep.subr.mxu0 0.0
        %1736 = vmatpush1.msra.mxu0 0.0
        %1737 = vmatprep.subr.mxu0 0.0
        %1738 = vmatpush1.msra.mxu0 0.0
        %1739 = vmatprep.mubr.f32.mxu0 0.0
        %1740 = vmatmul.mubr.f32.gmra.mrb[0].mxu0 %v1628
        %v1741 = vpop.f32.mrb[0].mxu0
        %v1742 = vadd.f32 0.0, %v1741
        %v1743 = vpop.f32.mrb[0].mxu0
        %1744 = vmatprep.mubr.f32.mxu0 0.0
        %1745 = vmatmul.mubr.f32.gmra.mrb[0].mxu0 %v1631
        %v1746 = vpop.f32.mrb[0].mxu0
        %v1747 = vadd.f32 0.0, %v1746
        %v1748 = vpop.f32.mrb[0].mxu0
        %1749 = vmatprep.mubr.f32.mxu0 0.0
        %1750 = vmatmul.mubr.f32.gmra.mrb[0].mxu0 %v1634
        %v1751 = vpop.f32.mrb[0].mxu0
        %v1752 = vadd.f32 0.0, %v1751
        %v1753 = vpop.f32.mrb[0].mxu0
        %1754 = vmatprep.mubr.f32.mxu0 0.0
        %1755 = vmatmul.mubr.f32.gmra.mrb[0].mxu0 %v1637
        %v1756 = vpop.f32.mrb[0].mxu0
        %v1757 = vadd.f32 0.0, %v1756
        %v1758 = vpop.f32.mrb[0].mxu0
        %1759 = vmatprep.mubr.f32.mxu0 0.0
        %1760 = vmatmul.mubr.f32.gmra.mrb[0].mxu0 %v1640
        %v1761 = vpop.f32.mrb[0].mxu0
        %v1762 = vadd.f32 0.0, %v1761
        %v1763 = vpop.f32.mrb[0].mxu0
        %1764 = vmatprep.mubr.f32.mxu0 0.0
        %1765 = vmatmul.mubr.f32.gmra.mrb[0].mxu0 %v1643
        %v1766 = vpop.f32.mrb[0].mxu0
        %v1767 = vadd.f32 0.0, %v1766
        %v1768 = vpop.f32.mrb[0].mxu0
        %1769 = vmatprep.mubr.f32.mxu0 0.0
        %1770 = vmatmul.mubr.f32.gmra.mrb[0].mxu0 %v1646
        %v1771 = vpop.f32.mrb[0].mxu0
        %v1772 = vadd.f32 0.0, %v1771
        %v1773 = vpop.f32.mrb[0].mxu0
        %1774 = vmatprep.mubr.f32.mxu0 0.0
        %1775 = vmatmul.mubr.f32.gmra.mrb[0].mxu0 %v1649
        %v1776 = vpop.f32.mrb[0].mxu0
        %v1777 = vadd.f32 0.0, %v1776
        %v1778 = vpop.f32.mrb[0].mxu0
        %1779 = vmatprep.mubr.f32.mxu0 0.0
        %1780 = vmatmul.mubr.f32.gmra.mrb[0].mxu0 %v1652
        %v1781 = vpop.f32.mrb[0].mxu0
        %v1782 = vadd.f32 0.0, %v1781
        %v1783 = vpop.f32.mrb[0].mxu0
        %1784 = vmatprep.mubr.f32.mxu0 0.0
        %1785 = vmatmul.mubr.f32.gmra.mrb[0].mxu0 %v1655
        %v1786 = vpop.f32.mrb[0].mxu0
        %v1787 = vadd.f32 0.0, %v1786
        %v1788 = vpop.f32.mrb[0].mxu0
        %1789 = vmatprep.mubr.f32.mxu0 0.0
        %1790 = vmatmul.mubr.f32.gmra.mrb[0].mxu0 %v1658
        %v1791 = vpop.f32.mrb[0].mxu0
        %v1792 = vadd.f32 0.0, %v1791
        %v1793 = vpop.f32.mrb[0].mxu0
        %1794 = vmatprep.mubr.f32.mxu0 0.0
        %1795 = vmatmul.mubr.f32.gmra.mrb[0].mxu0 %v1661
        %v1796 = vpop.f32.mrb[0].mxu0
        %v1797 = vadd.f32 0.0, %v1796
        %v1798 = vpop.f32.mrb[0].mxu0
        %1799 = vmatprep.mubr.f32.mxu0 0.0
        %1800 = vmatmul.mubr.f32.gmra.mrb[0].mxu0 %v1664
        %v1801 = vpop.f32.mrb[0].mxu0
        %v1802 = vadd.f32 0.0, %v1801
        %v1803 = vpop.f32.mrb[0].mxu0
        %1804 = vmatprep.mubr.f32.mxu0 0.0
        %1805 = vmatmul.mubr.f32.gmra.mrb[0].mxu0 %v1667
        %v1806 = vpop.f32.mrb[0].mxu0
        %v1807 = vadd.f32 0.0, %v1806
        %v1808 = vpop.f32.mrb[0].mxu0
        %1809 = vmatprep.mubr.f32.mxu0 0.0
        %1810 = vmatmul.mubr.f32.gmra.mrb[0].mxu0 %v1670
        %v1811 = vpop.f32.mrb[0].mxu0
        %v1812 = vadd.f32 0.0, %v1811
        %v1813 = vpop.f32.mrb[0].mxu0
        %1814 = vmatprep.mubr.f32.mxu0 0.0
        %1815 = vmatmul.mubr.f32.gmra.mrb[0].mxu0 %v1673
        %v1816 = vpop.f32.mrb[0].mxu0
        %v1817 = vadd.f32 0.0, %v1816
        %v1818 = vpop.f32.mrb[0].mxu0
        %1819 = vdwg.mxu0
        %s1821 = sor.u32 256, 24
        %1822 = vbcast.lane.b32.xlu0 %v840, %s1821
        %v1823 = vpop.permute.xlu0 %1822
        %s1825 = sor.u32 256, 24
        %1826 = vbcast.lane.b32.xlu0 %v847, %s1825
        %v1827 = vpop.permute.xlu0 %1826
        %s1829 = sor.u32 256, 24
        %1830 = vbcast.lane.b32.xlu0 %v854, %s1829
        %v1831 = vpop.permute.xlu0 %1830
        %s1833 = sor.u32 256, 24
        %1834 = vbcast.lane.b32.xlu0 %v861, %s1833
        %v1835 = vpop.permute.xlu0 %1834
        %s1837 = sor.u32 256, 24
        %1838 = vbcast.lane.b32.xlu0 %v868, %s1837
        %v1839 = vpop.permute.xlu0 %1838
        %s1841 = sor.u32 256, 24
        %1842 = vbcast.lane.b32.xlu0 %v875, %s1841
        %v1843 = vpop.permute.xlu0 %1842
        %s1845 = sor.u32 256, 24
        %1846 = vbcast.lane.b32.xlu0 %v882, %s1845
        %v1847 = vpop.permute.xlu0 %1846
        %s1849 = sor.u32 256, 24
        %1850 = vbcast.lane.b32.xlu0 %v889, %s1849
        %v1851 = vpop.permute.xlu0 %1850
        %s1853 = sor.u32 256, 24
        %1854 = vbcast.lane.b32.xlu0 %v896, %s1853
        %v1855 = vpop.permute.xlu0 %1854
        %s1857 = sor.u32 256, 24
        %1858 = vbcast.lane.b32.xlu0 %v903, %s1857
        %v1859 = vpop.permute.xlu0 %1858
        %s1861 = sor.u32 256, 24
        %1862 = vbcast.lane.b32.xlu0 %v910, %s1861
        %v1863 = vpop.permute.xlu0 %1862
        %s1865 = sor.u32 256, 24
        %1866 = vbcast.lane.b32.xlu0 %v917, %s1865
        %v1867 = vpop.permute.xlu0 %1866
        %s1869 = sor.u32 256, 24
        %1870 = vbcast.lane.b32.xlu0 %v924, %s1869
        %v1871 = vpop.permute.xlu0 %1870
        %s1873 = sor.u32 256, 24
        %1874 = vbcast.lane.b32.xlu0 %v931, %s1873
        %v1875 = vpop.permute.xlu0 %1874
        %s1877 = sor.u32 256, 24
        %1878 = vbcast.lane.b32.xlu0 %v938, %s1877
        %v1879 = vpop.permute.xlu0 %1878
        %s1881 = sor.u32 256, 24
        %1882 = vbcast.lane.b32.xlu0 %v945, %s1881
        %v1883 = vpop.permute.xlu0 %1882
        %v1886 = vcombine.high %v488, %v488
        %v1888 = vunpack.c.l.s4 1966171168
        %v1889 = vunpack.c.0.s8 %v1888
        %v1890 = vlaneseq
        %v1891 = vshrl.u32 %v1890, 7
        %v1892 = vsub.s32 %v1889, %v1891
        %v1893 = vrot.slane %v488, %v1892
        %v1895 = vunpack.c.l.s4 1966171168
        %v1896 = vunpack.c.0.s8 %v1895
        %v1897 = vlaneseq
        %v1898 = vshrl.u32 %v1897, 7
        %v1899 = vsub.s32 %v1896, %v1898
        %v1900 = vrot.slane %v1886, %v1899
        %v1901 = vcombine.high %v1893, %v1893
        %v1902 = vcombine.high %v1900, %v1900
        %v1904 = vunpack.c.l.s4 1966171168
        %v1905 = vunpack.c.0.s8 %v1904
        %v1906 = vlaneseq
        %v1907 = vshrl.u32 %v1906, 7
        %v1908 = vsub.s32 %v1905, %v1907
        %v1909 = vrot.slane %v1893, %v1908
        %v1911 = vunpack.c.l.s4 1966171168
        %v1912 = vunpack.c.0.s8 %v1911
        %v1913 = vlaneseq
        %v1914 = vshrl.u32 %v1913, 7
        %v1915 = vsub.s32 %v1912, %v1914
        %v1916 = vrot.slane %v1900, %v1915
        %v1918 = vunpack.c.l.s4 1966171168
        %v1919 = vunpack.c.0.s8 %v1918
        %v1920 = vlaneseq
        %v1921 = vshrl.u32 %v1920, 7
        %v1922 = vsub.s32 %v1919, %v1921
        %v1923 = vrot.slane %v1901, %v1922
        %v1925 = vunpack.c.l.s4 1966171168
        %v1926 = vunpack.c.0.s8 %v1925
        %v1927 = vlaneseq
        %v1928 = vshrl.u32 %v1927, 7
        %v1929 = vsub.s32 %v1926, %v1928
        %v1930 = vrot.slane %v1902, %v1929
        %v1931 = vcombine.high %v1909, %v1909
        %v1932 = vcombine.high %v1916, %v1916
        %v1933 = vcombine.high %v1923, %v1923
        %v1934 = vcombine.high %v1930, %v1930
        %v1935 = vcombine.high %v489, %v489
        %v1937 = vunpack.c.l.s4 1966171168
        %v1938 = vunpack.c.0.s8 %v1937
        %v1939 = vlaneseq
        %v1940 = vshrl.u32 %v1939, 7
        %v1941 = vsub.s32 %v1938, %v1940
        %v1942 = vrot.slane %v489, %v1941
        %v1944 = vunpack.c.l.s4 1966171168
        %v1945 = vunpack.c.0.s8 %v1944
        %v1946 = vlaneseq
        %v1947 = vshrl.u32 %v1946, 7
        %v1948 = vsub.s32 %v1945, %v1947
        %v1949 = vrot.slane %v1935, %v1948
        %v1950 = vcombine.high %v1942, %v1942
        %v1951 = vcombine.high %v1949, %v1949
        %v1953 = vunpack.c.l.s4 1966171168
        %v1954 = vunpack.c.0.s8 %v1953
        %v1955 = vlaneseq
        %v1956 = vshrl.u32 %v1955, 7
        %v1957 = vsub.s32 %v1954, %v1956
        %v1958 = vrot.slane %v1942, %v1957
        %v1960 = vunpack.c.l.s4 1966171168
        %v1961 = vunpack.c.0.s8 %v1960
        %v1962 = vlaneseq
        %v1963 = vshrl.u32 %v1962, 7
        %v1964 = vsub.s32 %v1961, %v1963
        %v1965 = vrot.slane %v1949, %v1964
        %v1967 = vunpack.c.l.s4 1966171168
        %v1968 = vunpack.c.0.s8 %v1967
        %v1969 = vlaneseq
        %v1970 = vshrl.u32 %v1969, 7
        %v1971 = vsub.s32 %v1968, %v1970
        %v1972 = vrot.slane %v1950, %v1971
        %v1974 = vunpack.c.l.s4 1966171168
        %v1975 = vunpack.c.0.s8 %v1974
        %v1976 = vlaneseq
        %v1977 = vshrl.u32 %v1976, 7
        %v1978 = vsub.s32 %v1975, %v1977
        %v1979 = vrot.slane %v1951, %v1978
        %v1980 = vcombine.high %v1958, %v1958
        %v1981 = vcombine.high %v1965, %v1965
        %v1982 = vcombine.high %v1972, %v1972
        %v1983 = vcombine.high %v1979, %v1979
        %v1984 = vlaneseq
        %v1985 = vshrl.u32 %v1984, 7
        %v1986 = vsub.s32 0, %v1985
        %v1987 = vrot.slane %v1909, %v1986
        %v1988 = vlaneseq
        %v1989 = vshrl.u32 %v1988, 7
        %v1990 = vsub.s32 0, %v1989
        %v1991 = vrot.slane %v1923, %v1990
        %v1992 = vlaneseq
        %v1993 = vshrl.u32 %v1992, 7
        %v1994 = vsub.s32 0, %v1993
        %v1995 = vrot.slane %v1931, %v1994
        %v1996 = vlaneseq
        %v1997 = vshrl.u32 %v1996, 7
        %v1998 = vsub.s32 0, %v1997
        %v1999 = vrot.slane %v1933, %v1998
        %v2000 = vlaneseq
        %v2001 = vshrl.u32 %v2000, 7
        %v2002 = vsub.s32 0, %v2001
        %v2003 = vrot.slane %v1916, %v2002
        %v2004 = vlaneseq
        %v2005 = vshrl.u32 %v2004, 7
        %v2006 = vsub.s32 0, %v2005
        %v2007 = vrot.slane %v1930, %v2006
        %v2008 = vlaneseq
        %v2009 = vshrl.u32 %v2008, 7
        %v2010 = vsub.s32 0, %v2009
        %v2011 = vrot.slane %v1932, %v2010
        %v2012 = vlaneseq
        %v2013 = vshrl.u32 %v2012, 7
        %v2014 = vsub.s32 0, %v2013
        %v2015 = vrot.slane %v1934, %v2014
        %v2016 = vlaneseq
        %v2017 = vshrl.u32 %v2016, 7
        %v2018 = vsub.s32 0, %v2017
        %v2019 = vrot.slane %v1958, %v2018
        %v2020 = vlaneseq
        %v2021 = vshrl.u32 %v2020, 7
        %v2022 = vsub.s32 0, %v2021
        %v2023 = vrot.slane %v1972, %v2022
        %v2024 = vlaneseq
        %v2025 = vshrl.u32 %v2024, 7
        %v2026 = vsub.s32 0, %v2025
        %v2027 = vrot.slane %v1980, %v2026
        %v2028 = vlaneseq
        %v2029 = vshrl.u32 %v2028, 7
        %v2030 = vsub.s32 0, %v2029
        %v2031 = vrot.slane %v1982, %v2030
        %v2032 = vlaneseq
        %v2033 = vshrl.u32 %v2032, 7
        %v2034 = vsub.s32 0, %v2033
        %v2035 = vrot.slane %v1965, %v2034
        %v2036 = vlaneseq
        %v2037 = vshrl.u32 %v2036, 7
        %v2038 = vsub.s32 0, %v2037
        %v2039 = vrot.slane %v1979, %v2038
        %v2040 = vlaneseq
        %v2041 = vshrl.u32 %v2040, 7
        %v2042 = vsub.s32 0, %v2041
        %v2043 = vrot.slane %v1981, %v2042
        %v2044 = vlaneseq
        %v2045 = vshrl.u32 %v2044, 7
        %v2046 = vsub.s32 0, %v2045
        %v2047 = vrot.slane %v1983, %v2046
        %v2064 = vmul.f32 %v1823, %v1987
        %v2065 = vmul.f32 %v1827, %v1991
        %v2066 = vmul.f32 %v1831, %v1995
        %v2067 = vmul.f32 %v1835, %v1999
        %v2068 = vmul.f32 %v1839, %v2003
        %v2069 = vmul.f32 %v1843, %v2007
        %v2070 = vmul.f32 %v1847, %v2011
        %v2071 = vmul.f32 %v1851, %v2015
        %v2072 = vmul.f32 %v1855, %v2019
        %v2073 = vmul.f32 %v1859, %v2023
        %v2074 = vmul.f32 %v1863, %v2027
        %v2075 = vmul.f32 %v1867, %v2031
        %v2076 = vmul.f32 %v1871, %v2035
        %v2077 = vmul.f32 %v1875, %v2039
        %v2078 = vmul.f32 %v1879, %v2043
        %v2079 = vmul.f32 %v1883, %v2047
        %2096 = vrot.lane.b32.xlu0 %v2064, 96
        %v2097 = vpop.permute.xlu0 %2096
        %2098 = vrot.lane.b32.xlu0 %v2065, 96
        %v2099 = vpop.permute.xlu0 %2098
        %2100 = vrot.lane.b32.xlu0 %v2066, 96
        %v2101 = vpop.permute.xlu0 %2100
        %2102 = vrot.lane.b32.xlu0 %v2067, 96
        %v2103 = vpop.permute.xlu0 %2102
        %2104 = vrot.lane.b32.xlu0 %v2068, 96
        %v2105 = vpop.permute.xlu0 %2104
        %2106 = vrot.lane.b32.xlu0 %v2069, 96
        %v2107 = vpop.permute.xlu0 %2106
        %2108 = vrot.lane.b32.xlu0 %v2070, 96
        %v2109 = vpop.permute.xlu0 %2108
        %2110 = vrot.lane.b32.xlu0 %v2071, 96
        %v2111 = vpop.permute.xlu0 %2110
        %2112 = vrot.lane.b32.xlu0 %v2072, 96
        %v2113 = vpop.permute.xlu0 %2112
        %2114 = vrot.lane.b32.xlu0 %v2073, 96
        %v2115 = vpop.permute.xlu0 %2114
        %2116 = vrot.lane.b32.xlu0 %v2074, 96
        %v2117 = vpop.permute.xlu0 %2116
        %2118 = vrot.lane.b32.xlu0 %v2075, 96
        %v2119 = vpop.permute.xlu0 %2118
        %2120 = vrot.lane.b32.xlu0 %v2076, 96
        %v2121 = vpop.permute.xlu0 %2120
        %2122 = vrot.lane.b32.xlu0 %v2077, 96
        %v2123 = vpop.permute.xlu0 %2122
        %2124 = vrot.lane.b32.xlu0 %v2078, 96
        %v2125 = vpop.permute.xlu0 %2124
        %2126 = vrot.lane.b32.xlu0 %v2079, 96
        %v2127 = vpop.permute.xlu0 %2126
        %v2144 = vadd.f32 %v1742, %v2097
        %v2145 = vadd.f32 %v1747, %v2099
        %v2146 = vadd.f32 %v1752, %v2101
        %v2147 = vadd.f32 %v1757, %v2103
        %v2148 = vadd.f32 %v1762, %v2105
        %v2149 = vadd.f32 %v1767, %v2107
        %v2150 = vadd.f32 %v1772, %v2109
        %v2151 = vadd.f32 %v1777, %v2111
        %v2152 = vadd.f32 %v1782, %v2113
        %v2153 = vadd.f32 %v1787, %v2115
        %v2154 = vadd.f32 %v1792, %v2117
        %v2155 = vadd.f32 %v1797, %v2119
        %v2156 = vadd.f32 %v1802, %v2121
        %v2157 = vadd.f32 %v1807, %v2123
        %v2158 = vadd.f32 %v1812, %v2125
        %v2159 = vadd.f32 %v1817, %v2127
        %vm2160 = vcmask 64512
        %v2161 = vsel %vm2160, %v2144, -inf
        %v2162 = vrot.slane %v2161, 4
        %v2163 = vmax.f32 %v2161, %v2162
        %v2164 = vrot.slane %v2163, 2
        %v2165 = vmax.f32 %v2163, %v2164
        %v2166 = vrot.slane %v2165, 1
        %v2167 = vmax.f32 %v2165, %v2166
        %v2168 = vsel %vm2160, %v2145, -inf
        %v2169 = vrot.slane %v2168, 4
        %v2170 = vmax.f32 %v2168, %v2169
        %v2171 = vrot.slane %v2170, 2
        %v2172 = vmax.f32 %v2170, %v2171
        %v2173 = vrot.slane %v2172, 1
        %v2174 = vmax.f32 %v2172, %v2173
        %v2175 = vsel %vm2160, %v2146, -inf
        %v2176 = vrot.slane %v2175, 4
        %v2177 = vmax.f32 %v2175, %v2176
        %v2178 = vrot.slane %v2177, 2
        %v2179 = vmax.f32 %v2177, %v2178
        %v2180 = vrot.slane %v2179, 1
        %v2181 = vmax.f32 %v2179, %v2180
        %v2182 = vsel %vm2160, %v2147, -inf
        %v2183 = vrot.slane %v2182, 4
        %v2184 = vmax.f32 %v2182, %v2183
        %v2185 = vrot.slane %v2184, 2
        %v2186 = vmax.f32 %v2184, %v2185
        %v2187 = vrot.slane %v2186, 1
        %v2188 = vmax.f32 %v2186, %v2187
        %v2189 = vsel %vm2160, %v2148, -inf
        %v2190 = vrot.slane %v2189, 4
        %v2191 = vmax.f32 %v2189, %v2190
        %v2192 = vrot.slane %v2191, 2
        %v2193 = vmax.f32 %v2191, %v2192
        %v2194 = vrot.slane %v2193, 1
        %v2195 = vmax.f32 %v2193, %v2194
        %v2196 = vsel %vm2160, %v2149, -inf
        %v2197 = vrot.slane %v2196, 4
        %v2198 = vmax.f32 %v2196, %v2197
        %v2199 = vrot.slane %v2198, 2
        %v2200 = vmax.f32 %v2198, %v2199
        %v2201 = vrot.slane %v2200, 1
        %v2202 = vmax.f32 %v2200, %v2201
        %v2203 = vsel %vm2160, %v2150, -inf
        %v2204 = vrot.slane %v2203, 4
        %v2205 = vmax.f32 %v2203, %v2204
        %v2206 = vrot.slane %v2205, 2
        %v2207 = vmax.f32 %v2205, %v2206
        %v2208 = vrot.slane %v2207, 1
        %v2209 = vmax.f32 %v2207, %v2208
        %v2210 = vsel %vm2160, %v2151, -inf
        %v2211 = vrot.slane %v2210, 4
        %v2212 = vmax.f32 %v2210, %v2211
        %v2213 = vrot.slane %v2212, 2
        %v2214 = vmax.f32 %v2212, %v2213
        %v2215 = vrot.slane %v2214, 1
        %v2216 = vmax.f32 %v2214, %v2215
        %v2217 = vsel %vm2160, %v2152, -inf
        %v2218 = vrot.slane %v2217, 4
        %v2219 = vmax.f32 %v2217, %v2218
        %v2220 = vrot.slane %v2219, 2
        %v2221 = vmax.f32 %v2219, %v2220
        %v2222 = vrot.slane %v2221, 1
        %v2223 = vmax.f32 %v2221, %v2222
        %v2224 = vsel %vm2160, %v2153, -inf
        %v2225 = vrot.slane %v2224, 4
        %v2226 = vmax.f32 %v2224, %v2225
        %v2227 = vrot.slane %v2226, 2
        %v2228 = vmax.f32 %v2226, %v2227
        %v2229 = vrot.slane %v2228, 1
        %v2230 = vmax.f32 %v2228, %v2229
        %v2231 = vsel %vm2160, %v2154, -inf
        %v2232 = vrot.slane %v2231, 4
        %v2233 = vmax.f32 %v2231, %v2232
        %v2234 = vrot.slane %v2233, 2
        %v2235 = vmax.f32 %v2233, %v2234
        %v2236 = vrot.slane %v2235, 1
        %v2237 = vmax.f32 %v2235, %v2236
        %v2238 = vsel %vm2160, %v2155, -inf
        %v2239 = vrot.slane %v2238, 4
        %v2240 = vmax.f32 %v2238, %v2239
        %v2241 = vrot.slane %v2240, 2
        %v2242 = vmax.f32 %v2240, %v2241
        %v2243 = vrot.slane %v2242, 1
        %v2244 = vmax.f32 %v2242, %v2243
        %v2245 = vsel %vm2160, %v2156, -inf
        %v2246 = vrot.slane %v2245, 4
        %v2247 = vmax.f32 %v2245, %v2246
        %v2248 = vrot.slane %v2247, 2
        %v2249 = vmax.f32 %v2247, %v2248
        %v2250 = vrot.slane %v2249, 1
        %v2251 = vmax.f32 %v2249, %v2250
        %v2252 = vsel %vm2160, %v2157, -inf
        %v2253 = vrot.slane %v2252, 4
        %v2254 = vmax.f32 %v2252, %v2253
        %v2255 = vrot.slane %v2254, 2
        %v2256 = vmax.f32 %v2254, %v2255
        %v2257 = vrot.slane %v2256, 1
        %v2258 = vmax.f32 %v2256, %v2257
        %v2259 = vsel %vm2160, %v2158, -inf
        %v2260 = vrot.slane %v2259, 4
        %v2261 = vmax.f32 %v2259, %v2260
        %v2262 = vrot.slane %v2261, 2
        %v2263 = vmax.f32 %v2261, %v2262
        %v2264 = vrot.slane %v2263, 1
        %v2265 = vmax.f32 %v2263, %v2264
        %v2266 = vsel %vm2160, %v2159, -inf
        %v2267 = vrot.slane %v2266, 4
        %v2268 = vmax.f32 %v2266, %v2267
        %v2269 = vrot.slane %v2268, 2
        %v2270 = vmax.f32 %v2268, %v2269
        %v2271 = vrot.slane %v2270, 1
        %v2272 = vmax.f32 %v2270, %v2271
        %v2273 = vsub.f32 %v2144, %v2167
        %v2274 = vsub.f32 %v2145, %v2174
        %v2275 = vsub.f32 %v2146, %v2181
        %v2276 = vsub.f32 %v2147, %v2188
        %v2277 = vsub.f32 %v2148, %v2195
        %v2278 = vsub.f32 %v2149, %v2202
        %v2279 = vsub.f32 %v2150, %v2209
        %v2280 = vsub.f32 %v2151, %v2216
        %v2281 = vsub.f32 %v2152, %v2223
        %v2282 = vsub.f32 %v2153, %v2230
        %v2283 = vsub.f32 %v2154, %v2237
        %v2284 = vsub.f32 %v2155, %v2244
        %v2285 = vsub.f32 %v2156, %v2251
        %v2286 = vsub.f32 %v2157, %v2258
        %v2287 = vsub.f32 %v2158, %v2265
        %v2288 = vsub.f32 %v2159, %v2272
        %v2289 = vmul.f32 %v2273, 1.442695
        %v2290 = vpow.pop %v2289
        %v2291 = vmul.f32 %v2274, 1.442695
        %v2292 = vpow.pop %v2291
        %v2293 = vmul.f32 %v2275, 1.442695
        %v2294 = vpow.pop %v2293
        %v2295 = vmul.f32 %v2276, 1.442695
        %v2296 = vpow.pop %v2295
        %v2297 = vmul.f32 %v2277, 1.442695
        %v2298 = vpow.pop %v2297
        %v2299 = vmul.f32 %v2278, 1.442695
        %v2300 = vpow.pop %v2299
        %v2301 = vmul.f32 %v2279, 1.442695
        %v2302 = vpow.pop %v2301
        %v2303 = vmul.f32 %v2280, 1.442695
        %v2304 = vpow.pop %v2303
        %v2305 = vmul.f32 %v2281, 1.442695
        %v2306 = vpow.pop %v2305
        %v2307 = vmul.f32 %v2282, 1.442695
        %v2308 = vpow.pop %v2307
        %v2309 = vmul.f32 %v2283, 1.442695
        %v2310 = vpow.pop %v2309
        %v2311 = vmul.f32 %v2284, 1.442695
        %v2312 = vpow.pop %v2311
        %v2313 = vmul.f32 %v2285, 1.442695
        %v2314 = vpow.pop %v2313
        %v2315 = vmul.f32 %v2286, 1.442695
        %v2316 = vpow.pop %v2315
        %v2317 = vmul.f32 %v2287, 1.442695
        %v2318 = vpow.pop %v2317
        %v2319 = vmul.f32 %v2288, 1.442695
        %v2320 = vpow.pop %v2319
        %v2321 = vsel %vm2160, %v2290, 0.0
        %v2322 = vrot.slane %v2321, 4
        %v2323 = vadd.f32 %v2321, %v2322
        %v2324 = vrot.slane %v2323, 2
        %v2325 = vadd.f32 %v2323, %v2324
        %v2326 = vrot.slane %v2325, 1
        %v2327 = vadd.f32 %v2325, %v2326
        %v2328 = vsel %vm2160, %v2292, 0.0
        %v2329 = vrot.slane %v2328, 4
        %v2330 = vadd.f32 %v2328, %v2329
        %v2331 = vrot.slane %v2330, 2
        %v2332 = vadd.f32 %v2330, %v2331
        %v2333 = vrot.slane %v2332, 1
        %v2334 = vadd.f32 %v2332, %v2333
        %v2335 = vsel %vm2160, %v2294, 0.0
        %v2336 = vrot.slane %v2335, 4
        %v2337 = vadd.f32 %v2335, %v2336
        %v2338 = vrot.slane %v2337, 2
        %v2339 = vadd.f32 %v2337, %v2338
        %v2340 = vrot.slane %v2339, 1
        %v2341 = vadd.f32 %v2339, %v2340
        %v2342 = vsel %vm2160, %v2296, 0.0
        %v2343 = vrot.slane %v2342, 4
        %v2344 = vadd.f32 %v2342, %v2343
        %v2345 = vrot.slane %v2344, 2
        %v2346 = vadd.f32 %v2344, %v2345
        %v2347 = vrot.slane %v2346, 1
        %v2348 = vadd.f32 %v2346, %v2347
        %v2349 = vsel %vm2160, %v2298, 0.0
        %v2350 = vrot.slane %v2349, 4
        %v2351 = vadd.f32 %v2349, %v2350
        %v2352 = vrot.slane %v2351, 2
        %v2353 = vadd.f32 %v2351, %v2352
        %v2354 = vrot.slane %v2353, 1
        %v2355 = vadd.f32 %v2353, %v2354
        %v2356 = vsel %vm2160, %v2300, 0.0
        %v2357 = vrot.slane %v2356, 4
        %v2358 = vadd.f32 %v2356, %v2357
        %v2359 = vrot.slane %v2358, 2
        %v2360 = vadd.f32 %v2358, %v2359
        %v2361 = vrot.slane %v2360, 1
        %v2362 = vadd.f32 %v2360, %v2361
        %v2363 = vsel %vm2160, %v2302, 0.0
        %v2364 = vrot.slane %v2363, 4
        %v2365 = vadd.f32 %v2363, %v2364
        %v2366 = vrot.slane %v2365, 2
        %v2367 = vadd.f32 %v2365, %v2366
        %v2368 = vrot.slane %v2367, 1
        %v2369 = vadd.f32 %v2367, %v2368
        %v2370 = vsel %vm2160, %v2304, 0.0
        %v2371 = vrot.slane %v2370, 4
        %v2372 = vadd.f32 %v2370, %v2371
        %v2373 = vrot.slane %v2372, 2
        %v2374 = vadd.f32 %v2372, %v2373
        %v2375 = vrot.slane %v2374, 1
        %v2376 = vadd.f32 %v2374, %v2375
        %v2377 = vsel %vm2160, %v2306, 0.0
        %v2378 = vrot.slane %v2377, 4
        %v2379 = vadd.f32 %v2377, %v2378
        %v2380 = vrot.slane %v2379, 2
        %v2381 = vadd.f32 %v2379, %v2380
        %v2382 = vrot.slane %v2381, 1
        %v2383 = vadd.f32 %v2381, %v2382
        %v2384 = vsel %vm2160, %v2308, 0.0
        %v2385 = vrot.slane %v2384, 4
        %v2386 = vadd.f32 %v2384, %v2385
        %v2387 = vrot.slane %v2386, 2
        %v2388 = vadd.f32 %v2386, %v2387
        %v2389 = vrot.slane %v2388, 1
        %v2390 = vadd.f32 %v2388, %v2389
        %v2391 = vsel %vm2160, %v2310, 0.0
        %v2392 = vrot.slane %v2391, 4
        %v2393 = vadd.f32 %v2391, %v2392
        %v2394 = vrot.slane %v2393, 2
        %v2395 = vadd.f32 %v2393, %v2394
        %v2396 = vrot.slane %v2395, 1
        %v2397 = vadd.f32 %v2395, %v2396
        %v2398 = vsel %vm2160, %v2312, 0.0
        %v2399 = vrot.slane %v2398, 4
        %v2400 = vadd.f32 %v2398, %v2399
        %v2401 = vrot.slane %v2400, 2
        %v2402 = vadd.f32 %v2400, %v2401
        %v2403 = vrot.slane %v2402, 1
        %v2404 = vadd.f32 %v2402, %v2403
        %v2405 = vsel %vm2160, %v2314, 0.0
        %v2406 = vrot.slane %v2405, 4
        %v2407 = vadd.f32 %v2405, %v2406
        %v2408 = vrot.slane %v2407, 2
        %v2409 = vadd.f32 %v2407, %v2408
        %v2410 = vrot.slane %v2409, 1
        %v2411 = vadd.f32 %v2409, %v2410
        %v2412 = vsel %vm2160, %v2316, 0.0
        %v2413 = vrot.slane %v2412, 4
        %v2414 = vadd.f32 %v2412, %v2413
        %v2415 = vrot.slane %v2414, 2
        %v2416 = vadd.f32 %v2414, %v2415
        %v2417 = vrot.slane %v2416, 1
        %v2418 = vadd.f32 %v2416, %v2417
        %v2419 = vsel %vm2160, %v2318, 0.0
        %v2420 = vrot.slane %v2419, 4
        %v2421 = vadd.f32 %v2419, %v2420
        %v2422 = vrot.slane %v2421, 2
        %v2423 = vadd.f32 %v2421, %v2422
        %v2424 = vrot.slane %v2423, 1
        %v2425 = vadd.f32 %v2423, %v2424
        %v2426 = vsel %vm2160, %v2320, 0.0
        %v2427 = vrot.slane %v2426, 4
        %v2428 = vadd.f32 %v2426, %v2427
        %v2429 = vrot.slane %v2428, 2
        %v2430 = vadd.f32 %v2428, %v2429
        %v2431 = vrot.slane %v2430, 1
        %v2432 = vadd.f32 %v2430, %v2431
        %v2433 = vrcp.pop %v2327
        %v2434 = vrcp.pop %v2334
        %v2435 = vrcp.pop %v2341
        %v2436 = vrcp.pop %v2348
        %v2437 = vrcp.pop %v2355
        %v2438 = vrcp.pop %v2362
        %v2439 = vrcp.pop %v2369
        %v2440 = vrcp.pop %v2376
        %v2441 = vrcp.pop %v2383
        %v2442 = vrcp.pop %v2390
        %v2443 = vrcp.pop %v2397
        %v2444 = vrcp.pop %v2404
        %v2445 = vrcp.pop %v2411
        %v2446 = vrcp.pop %v2418
        %v2447 = vrcp.pop %v2425
        %v2448 = vrcp.pop %v2432
        %v2449 = vmul.f32 %v2290, %v2433
        %v2450 = vmul.f32 %v2292, %v2434
        %v2451 = vmul.f32 %v2294, %v2435
        %v2452 = vmul.f32 %v2296, %v2436
        %v2453 = vmul.f32 %v2298, %v2437
        %v2454 = vmul.f32 %v2300, %v2438
        %v2455 = vmul.f32 %v2302, %v2439
        %v2456 = vmul.f32 %v2304, %v2440
        %v2457 = vmul.f32 %v2306, %v2441
        %v2458 = vmul.f32 %v2308, %v2442
        %v2459 = vmul.f32 %v2310, %v2443
        %v2460 = vmul.f32 %v2312, %v2444
        %v2461 = vmul.f32 %v2314, %v2445
        %v2462 = vmul.f32 %v2316, %v2446
        %v2463 = vmul.f32 %v2318, %v2447
        %v2464 = vmul.f32 %v2320, %v2448
        %v2465 = vld [vmem:[%s7] sm:$0xff]
        %v2467 = vsel %vm2160, %v2449, 0
        %v2470 = vsel %vm2160, %v2450, 0
        %v2473 = vsel %vm2160, %v2451, 0
        %v2476 = vsel %vm2160, %v2452, 0
        %v2479 = vsel %vm2160, %v2453, 0
        %v2482 = vsel %vm2160, %v2454, 0
        %v2485 = vsel %vm2160, %v2455, 0
        %v2488 = vsel %vm2160, %v2456, 0
        %v2491 = vsel %vm2160, %v2457, 0
        %v2494 = vsel %vm2160, %v2458, 0
        %v2497 = vsel %vm2160, %v2459, 0
        %v2500 = vsel %vm2160, %v2460, 0
        %v2503 = vsel %vm2160, %v2461, 0
        %v2506 = vsel %vm2160, %v2462, 0
        %v2509 = vsel %vm2160, %v2463, 0
        %v2512 = vsel %vm2160, %v2464, 0
        %2514 = vmatprep.subr.mxu0 0.0
        %2515 = vmatpush1.msra.mxu0 %v2465
        %2516 = vmatprep.subr.mxu0 0.0
        %2517 = vmatpush1.msra.mxu0 0.0
        %2518 = vmatprep.subr.mxu0 0.0
        %2519 = vmatpush1.msra.mxu0 0.0
        %2520 = vmatprep.subr.mxu0 0.0
        %2521 = vmatpush1.msra.mxu0 0.0
        %2522 = vmatprep.subr.mxu0 0.0
        %2523 = vmatpush1.msra.mxu0 0.0
        %2524 = vmatprep.subr.mxu0 0.0
        %2525 = vmatpush1.msra.mxu0 0.0
        %2526 = vmatprep.subr.mxu0 0.0
        %2527 = vmatpush1.msra.mxu0 0.0
        %2528 = vmatprep.subr.mxu0 0.0
        %2529 = vmatpush1.msra.mxu0 0.0
        %2530 = vmatprep.subr.mxu0 0.0
        %2531 = vmatpush1.msra.mxu0 0.0
        %2532 = vmatprep.subr.mxu0 0.0
        %2533 = vmatpush1.msra.mxu0 0.0
        %2534 = vmatprep.subr.mxu0 0.0
        %2535 = vmatpush1.msra.mxu0 0.0
        %2536 = vmatprep.subr.mxu0 0.0
        %2537 = vmatpush1.msra.mxu0 0.0
        %2538 = vmatprep.subr.mxu0 0.0
        %2539 = vmatpush1.msra.mxu0 0.0
        %2540 = vmatprep.subr.mxu0 0.0
        %2541 = vmatpush1.msra.mxu0 0.0
        %2542 = vmatprep.subr.mxu0 0.0
        %2543 = vmatpush1.msra.mxu0 0.0
        %2544 = vmatprep.subr.mxu0 0.0
        %2545 = vmatpush1.msra.mxu0 0.0
        %2546 = vmatprep.subr.mxu0 0.0
        %2547 = vmatpush1.msra.mxu0 0.0
        %2548 = vmatprep.subr.mxu0 0.0
        %2549 = vmatpush1.msra.mxu0 0.0
        %2550 = vmatprep.subr.mxu0 0.0
        %2551 = vmatpush1.msra.mxu0 0.0
        %2552 = vmatprep.subr.mxu0 0.0
        %2553 = vmatpush1.msra.mxu0 0.0
        %2554 = vmatprep.subr.mxu0 0.0
        %2555 = vmatpush1.msra.mxu0 0.0
        %2556 = vmatprep.subr.mxu0 0.0
        %2557 = vmatpush1.msra.mxu0 0.0
        %2558 = vmatprep.subr.mxu0 0.0
        %2559 = vmatpush1.msra.mxu0 0.0
        %2560 = vmatprep.subr.mxu0 0.0
        %2561 = vmatpush1.msra.mxu0 0.0
        %2562 = vmatprep.subr.mxu0 0.0
        %2563 = vmatpush1.msra.mxu0 0.0
        %2564 = vmatprep.subr.mxu0 0.0
        %2565 = vmatpush1.msra.mxu0 0.0
        %2566 = vmatprep.subr.mxu0 0.0
        %2567 = vmatpush1.msra.mxu0 0.0
        %2568 = vmatprep.subr.mxu0 0.0
        %2569 = vmatpush1.msra.mxu0 0.0
        %2570 = vmatprep.subr.mxu0 0.0
        %2571 = vmatpush1.msra.mxu0 0.0
        %2572 = vmatprep.subr.mxu0 0.0
        %2573 = vmatpush1.msra.mxu0 0.0
        %2574 = vmatprep.subr.mxu0 0.0
        %2575 = vmatpush1.msra.mxu0 0.0
        %2576 = vmatprep.subr.mxu0 0.0
        %2577 = vmatpush1.msra.mxu0 0.0
        %2578 = vmatprep.mubr.f32.mxu0 0.0
        %2579 = vmatmul.mubr.f32.gmra.mrb[0].mxu0 %v2467
        %v2580 = vpop.f32.mrb[0].mxu0
        %v2581 = vadd.f32 0.0, %v2580
        %v2582 = vpop.f32.mrb[0].mxu0
        %2583 = vmatprep.mubr.f32.mxu0 0.0
        %2584 = vmatmul.mubr.f32.gmra.mrb[0].mxu0 %v2470
        %v2585 = vpop.f32.mrb[0].mxu0
        %v2586 = vadd.f32 0.0, %v2585
        %v2587 = vpop.f32.mrb[0].mxu0
        %2588 = vmatprep.mubr.f32.mxu0 0.0
        %2589 = vmatmul.mubr.f32.gmra.mrb[0].mxu0 %v2473
        %v2590 = vpop.f32.mrb[0].mxu0
        %v2591 = vadd.f32 0.0, %v2590
        %v2592 = vpop.f32.mrb[0].mxu0
        %2593 = vmatprep.mubr.f32.mxu0 0.0
        %2594 = vmatmul.mubr.f32.gmra.mrb[0].mxu0 %v2476
        %v2595 = vpop.f32.mrb[0].mxu0
        %v2596 = vadd.f32 0.0, %v2595
        %v2597 = vpop.f32.mrb[0].mxu0
        %2598 = vmatprep.mubr.f32.mxu0 0.0
        %2599 = vmatmul.mubr.f32.gmra.mrb[0].mxu0 %v2479
        %v2600 = vpop.f32.mrb[0].mxu0
        %v2601 = vadd.f32 0.0, %v2600
        %v2602 = vpop.f32.mrb[0].mxu0
        %2603 = vmatprep.mubr.f32.mxu0 0.0
        %2604 = vmatmul.mubr.f32.gmra.mrb[0].mxu0 %v2482
        %v2605 = vpop.f32.mrb[0].mxu0
        %v2606 = vadd.f32 0.0, %v2605
        %v2607 = vpop.f32.mrb[0].mxu0
        %2608 = vmatprep.mubr.f32.mxu0 0.0
        %2609 = vmatmul.mubr.f32.gmra.mrb[0].mxu0 %v2485
        %v2610 = vpop.f32.mrb[0].mxu0
        %v2611 = vadd.f32 0.0, %v2610
        %v2612 = vpop.f32.mrb[0].mxu0
        %2613 = vmatprep.mubr.f32.mxu0 0.0
        %2614 = vmatmul.mubr.f32.gmra.mrb[0].mxu0 %v2488
        %v2615 = vpop.f32.mrb[0].mxu0
        %v2616 = vadd.f32 0.0, %v2615
        %v2617 = vpop.f32.mrb[0].mxu0
        %2618 = vmatprep.mubr.f32.mxu0 0.0
        %2619 = vmatmul.mubr.f32.gmra.mrb[0].mxu0 %v2491
        %v2620 = vpop.f32.mrb[0].mxu0
        %v2621 = vadd.f32 0.0, %v2620
        %v2622 = vpop.f32.mrb[0].mxu0
        %2623 = vmatprep.mubr.f32.mxu0 0.0
        %2624 = vmatmul.mubr.f32.gmra.mrb[0].mxu0 %v2494
        %v2625 = vpop.f32.mrb[0].mxu0
        %v2626 = vadd.f32 0.0, %v2625
        %v2627 = vpop.f32.mrb[0].mxu0
        %2628 = vmatprep.mubr.f32.mxu0 0.0
        %2629 = vmatmul.mubr.f32.gmra.mrb[0].mxu0 %v2497
        %v2630 = vpop.f32.mrb[0].mxu0
        %v2631 = vadd.f32 0.0, %v2630
        %v2632 = vpop.f32.mrb[0].mxu0
        %2633 = vmatprep.mubr.f32.mxu0 0.0
        %2634 = vmatmul.mubr.f32.gmra.mrb[0].mxu0 %v2500
        %v2635 = vpop.f32.mrb[0].mxu0
        %v2636 = vadd.f32 0.0, %v2635
        %v2637 = vpop.f32.mrb[0].mxu0
        %2638 = vmatprep.mubr.f32.mxu0 0.0
        %2639 = vmatmul.mubr.f32.gmra.mrb[0].mxu0 %v2503
        %v2640 = vpop.f32.mrb[0].mxu0
        %v2641 = vadd.f32 0.0, %v2640
        %v2642 = vpop.f32.mrb[0].mxu0
        %2643 = vmatprep.mubr.f32.mxu0 0.0
        %2644 = vmatmul.mubr.f32.gmra.mrb[0].mxu0 %v2506
        %v2645 = vpop.f32.mrb[0].mxu0
        %v2646 = vadd.f32 0.0, %v2645
        %v2647 = vpop.f32.mrb[0].mxu0
        %2648 = vmatprep.mubr.f32.mxu0 0.0
        %2649 = vmatmul.mubr.f32.gmra.mrb[0].mxu0 %v2509
        %v2650 = vpop.f32.mrb[0].mxu0
        %v2651 = vadd.f32 0.0, %v2650
        %v2652 = vpop.f32.mrb[0].mxu0
        %2653 = vmatprep.mubr.f32.mxu0 0.0
        %2654 = vmatmul.mubr.f32.gmra.mrb[0].mxu0 %v2512
        %v2655 = vpop.f32.mrb[0].mxu0
        %v2656 = vadd.f32 0.0, %v2655
        %v2657 = vpop.f32.mrb[0].mxu0
        %2658 = vdwg.mxu0
        %2675 = vrot.lane.b32.xlu0 %v1192, 64
        %v2676 = vpop.permute.xlu0 %2675
        %2677 = vrot.lane.b32.xlu0 %v1193, 64
        %v2678 = vpop.permute.xlu0 %2677
        %2679 = vrot.lane.b32.xlu0 %v1194, 64
        %v2680 = vpop.permute.xlu0 %2679
        %2681 = vrot.lane.b32.xlu0 %v1195, 64
        %v2682 = vpop.permute.xlu0 %2681
        %2683 = vrot.lane.b32.xlu0 %v1196, 64
        %v2684 = vpop.permute.xlu0 %2683
        %2685 = vrot.lane.b32.xlu0 %v1197, 64
        %v2686 = vpop.permute.xlu0 %2685
        %2687 = vrot.lane.b32.xlu0 %v1198, 64
        %v2688 = vpop.permute.xlu0 %2687
        %2689 = vrot.lane.b32.xlu0 %v1199, 64
        %v2690 = vpop.permute.xlu0 %2689
        %2691 = vrot.lane.b32.xlu0 %v1200, 64
        %v2692 = vpop.permute.xlu0 %2691
        %2693 = vrot.lane.b32.xlu0 %v1201, 64
        %v2694 = vpop.permute.xlu0 %2693
        %2695 = vrot.lane.b32.xlu0 %v1202, 64
        %v2696 = vpop.permute.xlu0 %2695
        %2697 = vrot.lane.b32.xlu0 %v1203, 64
        %v2698 = vpop.permute.xlu0 %2697
        %2699 = vrot.lane.b32.xlu0 %v1204, 64
        %v2700 = vpop.permute.xlu0 %2699
        %2701 = vrot.lane.b32.xlu0 %v1205, 64
        %v2702 = vpop.permute.xlu0 %2701
        %2703 = vrot.lane.b32.xlu0 %v1206, 64
        %v2704 = vpop.permute.xlu0 %2703
        %2705 = vrot.lane.b32.xlu0 %v1207, 64
        %v2706 = vpop.permute.xlu0 %2705
        %v2723 = vadd.f32 %v774, %v2676
        %v2724 = vadd.f32 %v777, %v2678
        %v2725 = vadd.f32 %v782, %v2680
        %v2726 = vadd.f32 %v785, %v2682
        %v2727 = vadd.f32 %v790, %v2684
        %v2728 = vadd.f32 %v793, %v2686
        %v2729 = vadd.f32 %v798, %v2688
        %v2730 = vadd.f32 %v801, %v2690
        %v2731 = vadd.f32 %v806, %v2692
        %v2732 = vadd.f32 %v809, %v2694
        %v2733 = vadd.f32 %v814, %v2696
        %v2734 = vadd.f32 %v817, %v2698
        %v2735 = vadd.f32 %v822, %v2700
        %v2736 = vadd.f32 %v825, %v2702
        %v2737 = vadd.f32 %v830, %v2704
        %v2738 = vadd.f32 %v833, %v2706
        %2755 = vrot.lane.b32.xlu0 %v2723, 64
        %v2756 = vpop.permute.xlu0 %2755
        %2757 = vrot.lane.b32.xlu0 %v2724, 64
        %v2758 = vpop.permute.xlu0 %2757
        %2759 = vrot.lane.b32.xlu0 %v2725, 64
        %v2760 = vpop.permute.xlu0 %2759
        %2761 = vrot.lane.b32.xlu0 %v2726, 64
        %v2762 = vpop.permute.xlu0 %2761
        %2763 = vrot.lane.b32.xlu0 %v2727, 64
        %v2764 = vpop.permute.xlu0 %2763
        %2765 = vrot.lane.b32.xlu0 %v2728, 64
        %v2766 = vpop.permute.xlu0 %2765
        %2767 = vrot.lane.b32.xlu0 %v2729, 64
        %v2768 = vpop.permute.xlu0 %2767
        %2769 = vrot.lane.b32.xlu0 %v2730, 64
        %v2770 = vpop.permute.xlu0 %2769
        %2771 = vrot.lane.b32.xlu0 %v2731, 64
        %v2772 = vpop.permute.xlu0 %2771
        %2773 = vrot.lane.b32.xlu0 %v2732, 64
        %v2774 = vpop.permute.xlu0 %2773
        %2775 = vrot.lane.b32.xlu0 %v2733, 64
        %v2776 = vpop.permute.xlu0 %2775
        %2777 = vrot.lane.b32.xlu0 %v2734, 64
        %v2778 = vpop.permute.xlu0 %2777
        %2779 = vrot.lane.b32.xlu0 %v2735, 64
        %v2780 = vpop.permute.xlu0 %2779
        %2781 = vrot.lane.b32.xlu0 %v2736, 64
        %v2782 = vpop.permute.xlu0 %2781
        %2783 = vrot.lane.b32.xlu0 %v2737, 64
        %v2784 = vpop.permute.xlu0 %2783
        %2785 = vrot.lane.b32.xlu0 %v2738, 64
        %v2786 = vpop.permute.xlu0 %2785
        %v2803 = vmul.f32 %v2581, %v2756
        %v2804 = vmul.f32 %v2586, %v2758
        %v2805 = vmul.f32 %v2591, %v2760
        %v2806 = vmul.f32 %v2596, %v2762
        %v2807 = vmul.f32 %v2601, %v2764
        %v2808 = vmul.f32 %v2606, %v2766
        %v2809 = vmul.f32 %v2611, %v2768
        %v2810 = vmul.f32 %v2616, %v2770
        %v2811 = vmul.f32 %v2621, %v2772
        %v2812 = vmul.f32 %v2626, %v2774
        %v2813 = vmul.f32 %v2631, %v2776
        %v2814 = vmul.f32 %v2636, %v2778
        %v2815 = vmul.f32 %v2641, %v2780
        %v2816 = vmul.f32 %v2646, %v2782
        %v2817 = vmul.f32 %v2651, %v2784
        %v2818 = vmul.f32 %v2656, %v2786
        %v2819 = vsel %vm1626, %v2803, 0.0
        %v2820 = vrot.slane %v2819, 4
        %v2821 = vadd.f32 %v2819, %v2820
        %v2822 = vrot.slane %v2821, 2
        %v2823 = vadd.f32 %v2821, %v2822
        %v2824 = vrot.slane %v2823, 1
        %v2825 = vadd.f32 %v2823, %v2824
        %v2826 = vsel %vm1626, %v2804, 0.0
        %v2827 = vrot.slane %v2826, 4
        %v2828 = vadd.f32 %v2826, %v2827
        %v2829 = vrot.slane %v2828, 2
        %v2830 = vadd.f32 %v2828, %v2829
        %v2831 = vrot.slane %v2830, 1
        %v2832 = vadd.f32 %v2830, %v2831
        %v2833 = vsel %vm1626, %v2805, 0.0
        %v2834 = vrot.slane %v2833, 4
        %v2835 = vadd.f32 %v2833, %v2834
        %v2836 = vrot.slane %v2835, 2
        %v2837 = vadd.f32 %v2835, %v2836
        %v2838 = vrot.slane %v2837, 1
        %v2839 = vadd.f32 %v2837, %v2838
        %v2840 = vsel %vm1626, %v2806, 0.0
        %v2841 = vrot.slane %v2840, 4
        %v2842 = vadd.f32 %v2840, %v2841
        %v2843 = vrot.slane %v2842, 2
        %v2844 = vadd.f32 %v2842, %v2843
        %v2845 = vrot.slane %v2844, 1
        %v2846 = vadd.f32 %v2844, %v2845
        %v2847 = vsel %vm1626, %v2807, 0.0
        %v2848 = vrot.slane %v2847, 4
        %v2849 = vadd.f32 %v2847, %v2848
        %v2850 = vrot.slane %v2849, 2
        %v2851 = vadd.f32 %v2849, %v2850
        %v2852 = vrot.slane %v2851, 1
        %v2853 = vadd.f32 %v2851, %v2852
        %v2854 = vsel %vm1626, %v2808, 0.0
        %v2855 = vrot.slane %v2854, 4
        %v2856 = vadd.f32 %v2854, %v2855
        %v2857 = vrot.slane %v2856, 2
        %v2858 = vadd.f32 %v2856, %v2857
        %v2859 = vrot.slane %v2858, 1
        %v2860 = vadd.f32 %v2858, %v2859
        %v2861 = vsel %vm1626, %v2809, 0.0
        %v2862 = vrot.slane %v2861, 4
        %v2863 = vadd.f32 %v2861, %v2862
        %v2864 = vrot.slane %v2863, 2
        %v2865 = vadd.f32 %v2863, %v2864
        %v2866 = vrot.slane %v2865, 1
        %v2867 = vadd.f32 %v2865, %v2866
        %v2868 = vsel %vm1626, %v2810, 0.0
        %v2869 = vrot.slane %v2868, 4
        %v2870 = vadd.f32 %v2868, %v2869
        %v2871 = vrot.slane %v2870, 2
        %v2872 = vadd.f32 %v2870, %v2871
        %v2873 = vrot.slane %v2872, 1
        %v2874 = vadd.f32 %v2872, %v2873
        %v2875 = vsel %vm1626, %v2811, 0.0
        %v2876 = vrot.slane %v2875, 4
        %v2877 = vadd.f32 %v2875, %v2876
        %v2878 = vrot.slane %v2877, 2
        %v2879 = vadd.f32 %v2877, %v2878
        %v2880 = vrot.slane %v2879, 1
        %v2881 = vadd.f32 %v2879, %v2880
        %v2882 = vsel %vm1626, %v2812, 0.0
        %v2883 = vrot.slane %v2882, 4
        %v2884 = vadd.f32 %v2882, %v2883
        %v2885 = vrot.slane %v2884, 2
        %v2886 = vadd.f32 %v2884, %v2885
        %v2887 = vrot.slane %v2886, 1
        %v2888 = vadd.f32 %v2886, %v2887
        %v2889 = vsel %vm1626, %v2813, 0.0
        %v2890 = vrot.slane %v2889, 4
        %v2891 = vadd.f32 %v2889, %v2890
        %v2892 = vrot.slane %v2891, 2
        %v2893 = vadd.f32 %v2891, %v2892
        %v2894 = vrot.slane %v2893, 1
        %v2895 = vadd.f32 %v2893, %v2894
        %v2896 = vsel %vm1626, %v2814, 0.0
        %v2897 = vrot.slane %v2896, 4
        %v2898 = vadd.f32 %v2896, %v2897
        %v2899 = vrot.slane %v2898, 2
        %v2900 = vadd.f32 %v2898, %v2899
        %v2901 = vrot.slane %v2900, 1
        %v2902 = vadd.f32 %v2900, %v2901
        %v2903 = vsel %vm1626, %v2815, 0.0
        %v2904 = vrot.slane %v2903, 4
        %v2905 = vadd.f32 %v2903, %v2904
        %v2906 = vrot.slane %v2905, 2
        %v2907 = vadd.f32 %v2905, %v2906
        %v2908 = vrot.slane %v2907, 1
        %v2909 = vadd.f32 %v2907, %v2908
        %v2910 = vsel %vm1626, %v2816, 0.0
        %v2911 = vrot.slane %v2910, 4
        %v2912 = vadd.f32 %v2910, %v2911
        %v2913 = vrot.slane %v2912, 2
        %v2914 = vadd.f32 %v2912, %v2913
        %v2915 = vrot.slane %v2914, 1
        %v2916 = vadd.f32 %v2914, %v2915
        %v2917 = vsel %vm1626, %v2817, 0.0
        %v2918 = vrot.slane %v2917, 4
        %v2919 = vadd.f32 %v2917, %v2918
        %v2920 = vrot.slane %v2919, 2
        %v2921 = vadd.f32 %v2919, %v2920
        %v2922 = vrot.slane %v2921, 1
        %v2923 = vadd.f32 %v2921, %v2922
        %v2924 = vsel %vm1626, %v2818, 0.0
        %v2925 = vrot.slane %v2924, 4
        %v2926 = vadd.f32 %v2924, %v2925
        %v2927 = vrot.slane %v2926, 2
        %v2928 = vadd.f32 %v2926, %v2927
        %v2929 = vrot.slane %v2928, 1
        %v2930 = vadd.f32 %v2928, %v2929
        %v2931 = vld [vmem:[%s8] sm:$0xff]
        %v2932 = vld [vmem:[%s8 + $0x8] sm:$0xff]
        %v2933 = vld [vmem:[%s8 + $0x10] sm:$0xff]
        %v2934 = vld [vmem:[%s8 + $0x18] sm:$0xff]
        %v2935 = vld [vmem:[%s8 + $0x20] sm:$0xff]
        %v2936 = vld [vmem:[%s8 + $0x28] sm:$0xff]
        %v2937 = vld [vmem:[%s8 + $0x30] sm:$0xff]
        %v2938 = vld [vmem:[%s8 + $0x38] sm:$0xff]
        %v2939 = vld [vmem:[%s9] sm:$0x1]
        %v2941 = vlaneseq
        %v2942 = vshrl.u32 %v2941, 7
        %v2943 = vsub.s32 0, %v2942
        %v2944 = vrot.slane %v2939, %v2943
        %vm2962 = vcmask 1041409
        %v2963 = vsel %vm2962, %v2832, %v2825
        %vm2964 = vcmask 1042434
        %v2965 = vsel %vm2964, %v2839, %v2963
        %vm2966 = vcmask 1043459
        %v2967 = vsel %vm2966, %v2846, %v2965
        %vm2968 = vcmask 1044484
        %v2969 = vsel %vm2968, %v2853, %v2967
        %vm2970 = vcmask 1045509
        %v2971 = vsel %vm2970, %v2860, %v2969
        %vm2972 = vcmask 1046534
        %v2973 = vsel %vm2972, %v2867, %v2971
        %vm2974 = vcmask 1047559
        %v2975 = vsel %vm2974, %v2874, %v2973
        %v2976 = vsel %vm2962, %v2888, %v2881
        %v2977 = vsel %vm2964, %v2895, %v2976
        %v2978 = vsel %vm2966, %v2902, %v2977
        %v2979 = vsel %vm2968, %v2909, %v2978
        %v2980 = vsel %vm2970, %v2916, %v2979
        %v2981 = vsel %vm2972, %v2923, %v2980
        %v2982 = vsel %vm2974, %v2930, %v2981
        %v2983 = vsel %vm1626, %v2975, 0
        %v2985 = vsel %vm1626, %v2982, 0
        %2987 = vmatprep.subr.mxu0 0.0
        %2988 = vmatpush1.msra.mxu0 %v2931
        %2989 = vmatprep.subr.mxu0 0.0
        %2990 = vmatpush1.msra.mxu0 %v2932
        %2991 = vmatprep.subr.mxu0 0.0
        %2992 = vmatpush1.msra.mxu0 %v2933
        %2993 = vmatprep.subr.mxu0 0.0
        %2994 = vmatpush1.msra.mxu0 %v2934
        %2995 = vmatprep.subr.mxu0 0.0
        %2996 = vmatpush1.msra.mxu0 %v2935
        %2997 = vmatprep.subr.mxu0 0.0
        %2998 = vmatpush1.msra.mxu0 %v2936
        %2999 = vmatprep.subr.mxu0 0.0
        %3000 = vmatpush1.msra.mxu0 %v2937
        %3001 = vmatprep.subr.mxu0 0.0
        %3002 = vmatpush1.msra.mxu0 %v2938
        %3003 = vmatprep.subr.mxu0 0.0
        %3004 = vmatpush1.msra.mxu0 0.0
        %3005 = vmatprep.subr.mxu0 0.0
        %3006 = vmatpush1.msra.mxu0 0.0
        %3007 = vmatprep.subr.mxu0 0.0
        %3008 = vmatpush1.msra.mxu0 0.0
        %3009 = vmatprep.subr.mxu0 0.0
        %3010 = vmatpush1.msra.mxu0 0.0
        %3011 = vmatprep.subr.mxu0 0.0
        %3012 = vmatpush1.msra.mxu0 0.0
        %3013 = vmatprep.subr.mxu0 0.0
        %3014 = vmatpush1.msra.mxu0 0.0
        %3015 = vmatprep.subr.mxu0 0.0
        %3016 = vmatpush1.msra.mxu0 0.0
        %3017 = vmatprep.subr.mxu0 0.0
        %3018 = vmatpush1.msra.mxu0 0.0
        %3019 = vmatprep.subr.mxu0 0.0
        %3020 = vmatpush1.msra.mxu0 0.0
        %3021 = vmatprep.subr.mxu0 0.0
        %3022 = vmatpush1.msra.mxu0 0.0
        %3023 = vmatprep.subr.mxu0 0.0
        %3024 = vmatpush1.msra.mxu0 0.0
        %3025 = vmatprep.subr.mxu0 0.0
        %3026 = vmatpush1.msra.mxu0 0.0
        %3027 = vmatprep.subr.mxu0 0.0
        %3028 = vmatpush1.msra.mxu0 0.0
        %3029 = vmatprep.subr.mxu0 0.0
        %3030 = vmatpush1.msra.mxu0 0.0
        %3031 = vmatprep.subr.mxu0 0.0
        %3032 = vmatpush1.msra.mxu0 0.0
        %3033 = vmatprep.subr.mxu0 0.0
        %3034 = vmatpush1.msra.mxu0 0.0
        %3035 = vmatprep.subr.mxu0 0.0
        %3036 = vmatpush1.msra.mxu0 0.0
        %3037 = vmatprep.subr.mxu0 0.0
        %3038 = vmatpush1.msra.mxu0 0.0
        %3039 = vmatprep.subr.mxu0 0.0
        %3040 = vmatpush1.msra.mxu0 0.0
        %3041 = vmatprep.subr.mxu0 0.0
        %3042 = vmatpush1.msra.mxu0 0.0
        %3043 = vmatprep.subr.mxu0 0.0
        %3044 = vmatpush1.msra.mxu0 0.0
        %3045 = vmatprep.subr.mxu0 0.0
        %3046 = vmatpush1.msra.mxu0 0.0
        %3047 = vmatprep.subr.mxu0 0.0
        %3048 = vmatpush1.msra.mxu0 0.0
        %3049 = vmatprep.subr.mxu0 0.0
        %3050 = vmatpush1.msra.mxu0 0.0
        %3051 = vmatprep.mubr.f32.mxu0 0.0
        %3052 = vmatmul.mubr.f32.gmra.mrb[0].mxu0 %v2983
        %v3053 = vpop.f32.mrb[0].mxu0
        %v3054 = vadd.f32 %v2944, %v3053
        %v3055 = vpop.f32.mrb[0].mxu0
        %3056 = vmatprep.mubr.f32.mxu0 0.0
        %3057 = vmatmul.mubr.f32.gmra.mrb[0].mxu0 %v2985
        %v3058 = vpop.f32.mrb[0].mxu0
        %v3059 = vadd.f32 %v2944, %v3058
        %v3060 = vpop.f32.mrb[0].mxu0
        %3061 = vdwg.mxu0
        %3062 = vst.msk [vmem:[%s444] sm:$0xff] %vm1626, %v3054
        %3063 = vst.msk [vmem:[%s444 + $0x8] sm:$0xff] %vm1626, %v3059
        %s3064 = sand.u32 %s282, 1
        %s3065 = scalar_lea.sflag [#allocation3], %s3064
        %s3066 = sand.u32 %s282, 1
        %s3067 = smul.addr %s3066, 16
        %s3068 = scalar_lea.vmem [#allocation2], %s3067
        // Predicated region
        $region61: #{geometric_attention.3} parent=59 // pred_check
          %p3069 = pneg %p292
        $region62: #{geometric_attention.3} parent=59 // pred_check_branch
          %3071 = sbr.rel (%p3069) target = $region64
        $region63: #{geometric_attention.3} parent=59 // pred_region
          %s3072 = smul.u32 2, %s29
          %s3074 = ssub.s32 256, 256
          %3075 = vsyncadd %s3065, %s3074
          %s3076 = smul.addr %s28, 2
          %s3077 = sadd.s32 %s3072, %s3076
          %s3078 = smul.addr %s3077, 128
          %s3079 = scalar_lea.hbm %s10, %s3078
          %s3080 = sshll.u32 %s3068, 4
          %s3081 = int_to_ptr.vmem [resolvable:$true] %s3080
          %3086 = dma.vmem_to_hbm [thread:$0]  %s3081, 256, %s3079, %s3065, 128, 128, 8
        $region64: #{geometric_attention.3} parent=59 // pred_fallthru
          _
      $region60: #{geometric_attention.3} parent=5 // pred_fallthru
        _
      %p3087 = scmp.le.s32.totalorder 2, %s19
      // Predicated region
      $region65: #{geometric_attention.3} parent=5 // pred_check
        %p3088 = pneg %p3087
      $region66: #{geometric_attention.3} parent=5 // pred_check_branch
        %3090 = sbr.rel (%p3088) target = $region68
      $region67: #{geometric_attention.3} parent=5 // pred_region
        %s3091 = ssub.s32 %s19, 2
        // Predicated region
        $region69: #{geometric_attention.3} parent=67 // pred_check
          %p3092 = pneg %p298
        $region70: #{geometric_attention.3} parent=67 // pred_check_branch
          %3094 = sbr.rel (%p3092) target = $region72
        $region71: #{geometric_attention.3} parent=67 // pred_region
          %s3095 = sand.u32 %s283, 1
          %s3096 = scalar_lea.sflag [#allocation3], %s3095
          %s3097 = sand.u32 %s283, 1
          %s3098 = smul.addr %s3097, 16
          %s3099 = scalar_lea.vmem [#allocation2], %s3098
          %3100 = dma.done %s3096, 256
        $region72: #{geometric_attention.3} parent=67 // pred_fallthru
          _
      $region68: #{geometric_attention.3} parent=5 // pred_fallthru
        _
    $region6: #{geometric_attention.3} parent=1 // loop_footer
      %s23 = sadd.s32 1, %s19
    $region7: #{geometric_attention.3} parent=1 // loop_footer_branch
      %18 = sbr.rel target = $region3
    $region8: #{geometric_attention.3} parent=1 // loop_exit
      _
    %3101 = vsyncpa [#allocation3], 1
    %s3102 = scalar_lea.sflag [#allocation3], 1
    %3103 = vsyncpa %s3102, 1

</llo_original>
